<compile_context>
chip_gen: v6e
topology: v6e:2x2x1
jax: 0.10.0
libtpu: 0.0.40
codegen_flags: <defaults>
</compile_context>

<pallas_src>
import math

import jax
import jax.numpy as jnp
from jax.experimental import pallas as pl
from jax.experimental.pallas import tpu as pltpu

_PI = math.pi
_SIDE = 5                      # dendrite receptive field (5x5), fixed by the module
_POOL = 4                      # Soma = MaxPool3d((4, 4, 1))
_LOG_OFF = 1.1 * math.pi       # log(y + 0.6) = log(atan(t) + 1.1*pi) - log(pi)
_ACC_INIT = -25.0 * math.log(math.pi)   # 25 taps' worth of the -log(pi) offset


def _atan_f32(x):
    """float32 atan from ops guaranteed to lower in Pallas TPU (Cephes-style).

    Single divide per element (numerator/denominator selected first)."""
    ax = jnp.abs(x)
    big = ax > 2.414213562373095          # tan(3*pi/8)
    mid = ax > 0.41421356237309503        # tan(pi/8)
    num = jnp.where(big, -1.0, jnp.where(mid, ax - 1.0, ax))
    den = jnp.where(big, ax, jnp.where(mid, ax + 1.0, 1.0))
    xr = num / den
    y0 = jnp.where(big, _PI / 2.0, jnp.where(mid, _PI / 4.0, 0.0))
    z = xr * xr
    p = (((8.05374449538e-2 * z - 1.38776856032e-1) * z
          + 1.99777106478e-1) * z - 3.33329491539e-1)
    y = y0 + (p * z * xr + xr)
    return jnp.where(x < 0.0, -y, y)


def _make_kernel(m):
    R = 3 * m

    def kernel(xp_ref, wd_ref, qd_ref, w1_ref, b1_ref, w2_ref, b2_ref,
               o_ref, acc_ref):
        # xp_ref : (1, 48, Bt, P)   rows = c*16 + (hr*4 + wr), lanes = pooled pos
        # wd/qd  : (1, 3m, 1, 1)    per-(tap, c, m) dendrite params (x10 folded)
        # w1_ref : (3m, P, 128)     Axon fc weights grouped by (c, m) row
        # b1_ref : (1, 128)  w2_ref: (128, classes)  b2_ref: (1, classes)
        # o_ref  : (Bt, classes)    acc_ref: VMEM (3m, 16, Bt, P)
        tap = pl.program_id(1)

        @pl.when(tap == 0)
        def _init():
            # fold the -25*log(pi) affine constant into the accumulator init
            acc_ref[...] = jnp.full(acc_ref.shape, _ACC_INIT, jnp.float32)

        # ---- Dendrite: acc += log(atan(10*(x*w - q)) + 1.1*pi) for this tap ----
        for c in range(3):
            xc = xp_ref[0, c * 16:(c + 1) * 16]          # (16, Bt, P)
            for mi in range(m):
                cm = c * m + mi
                w = wd_ref[0, cm]                        # (1, 1) -> broadcast
                q = qd_ref[0, cm]
                t = xc * w - q
                acc_ref[cm] = acc_ref[cm] + jnp.log(_atan_f32(t) + _LOG_OFF)

        # ---- Soma (maxpool over 16 window offsets) + Axon fc + Synapse fc ----
        @pl.when(tap == pl.num_programs(1) - 1)
        def _finish():
            h = b1_ref[...]                              # (1, 128)
            for cm in range(R):
                pooled = jnp.max(acc_ref[cm], axis=0)    # (Bt, P) pure VPU maxes
                h = h + jnp.dot(pooled, w1_ref[cm],      # MXU
                                preferred_element_type=jnp.float32)
            h = jnp.maximum(h, 0.0)                      # ReLU
            o_ref[...] = (jnp.dot(h, w2_ref[...],
                                  preferred_element_type=jnp.float32)
                          + b2_ref[...])

    return kernel


def mdpn3_forward(x, w_d, q_d, w1, b1, w2, b2, *, block_batch=8):
    """x: (B, 3, H, W) f32 NCHW.  w_d/q_d: (3, 1, 1, m, 5, 5).  -> (B, classes)."""
    B, C, H, W = x.shape
    assert C == 3
    m = w_d.shape[3]
    Hp, Wp = H - _SIDE + 1, W - _SIDE + 1          # Dendrite output spatial size
    Hq, Wq = Hp // _POOL, Wp // _POOL              # Soma output spatial size
    P = Hq * Wq                                    # pooled positions per channel
    R = 3 * m                                      # (channel, m) row groups
    classes = w2.shape[1]

    # batch blocking: Bt fills sublanes for B >= 8, one block otherwise
    Bt = min(B, block_batch)
    nb = (B + Bt - 1) // Bt
    Bpad = nb * Bt
    if Bpad != B:
        x = jnp.pad(x, ((0, Bpad - B), (0, 0), (0, 0), (0, 0)))

    # ---------- plain-JAX patch extraction (cheap slicing, fused by XLA) ------
    # xpat[tap, c*16 + hr*4 + wr, b, hq*Wq + wq] = x[b, c, hq*4+hr+di, wq*4+wr+dj]
    views = [x[:, :, di:di + Hq * _POOL, dj:dj + Wq * _POOL]
             for di in range(_SIDE) for dj in range(_SIDE)]
    u = jnp.stack(views, axis=0).reshape(25, Bpad, 3, Hq, _POOL, Wq, _POOL)
    u = u.transpose(0, 2, 4, 6, 1, 3, 5)           # (25, 3, hr, wr, B, hq, wq)
    xpat = u.reshape(25, 3 * 16, Bpad, P).astype(jnp.float32)

    # Dendrite params: fold the x10, rows ordered (tap, c*m + mi)
    wd = (10.0 * w_d).reshape(3, m, 25).transpose(2, 0, 1)
    qd = (10.0 * q_d).reshape(3, m, 25).transpose(2, 0, 1)
    wd = wd.reshape(25, R, 1, 1).astype(jnp.float32)
    qd = qd.reshape(25, R, 1, 1).astype(jnp.float32)

    # Axon fc weights regrouped: PyTorch flatten order is (c, hq, wq, mi)
    # -> w1g[c*m+mi, hq*Wq+wq, :]
    w1g = (w1.reshape(3, Hq, Wq, m, 128).transpose(0, 3, 1, 2, 4)
             .reshape(R, P, 128).astype(jnp.float32))

    kernel = _make_kernel(m)

    out = pl.pallas_call(
        kernel,
        out_shape=jax.ShapeDtypeStruct((Bpad, classes), jnp.float32),
        grid=(nb, 25),
        in_specs=[
            pl.BlockSpec((1, 3 * 16, Bt, P), lambda b, t: (t, 0, b, 0)),
            pl.BlockSpec((1, R, 1, 1), lambda b, t: (t, 0, 0, 0)),
            pl.BlockSpec((1, R, 1, 1), lambda b, t: (t, 0, 0, 0)),
            pl.BlockSpec((R, P, 128), lambda b, t: (0, 0, 0)),
            pl.BlockSpec((1, 128), lambda b, t: (0, 0)),
            pl.BlockSpec((128, classes), lambda b, t: (0, 0)),
            pl.BlockSpec((1, classes), lambda b, t: (0, 0)),
        ],
        out_specs=pl.BlockSpec((Bt, classes), lambda b, t: (b, 0)),
        scratch_shapes=[pltpu.VMEM((R, 16, Bt, P), jnp.float32)],
        compiler_params=pltpu.CompilerParams(
            dimension_semantics=("parallel", "arbitrary")),
    )(xpat, wd, qd, w1g, b1.astype(jnp.float32), w2.astype(jnp.float32),
      b2.astype(jnp.float32))
    return out[:B]


def reference_forward(x, w_d, q_d, w1, b1, w2, b2):
    """Pure-JAX re-implementation of the PyTorch forward (for validation)."""
    B, _, H, W = x.shape
    m = w_d.shape[3]
    Hp, Wp = H - _SIDE + 1, W - _SIDE + 1
    Hq, Wq = Hp // _POOL, Wp // _POOL
    cols = []
    for di in range(_SIDE):
        rows = [x[:, :, di:di + Hp, dj:dj + Wp] for dj in range(_SIDE)]
        cols.append(jnp.stack(rows, axis=-1))
    patches = jnp.stack(cols, axis=-2)[:, :, :, :, None, :, :]   # (B,3,Hp,Wp,1,5,5)
    y = (jnp.pi + 2.0 * jnp.arctan(10.0 * (patches * w_d[None] - q_d[None]))) \
        / (2.0 * jnp.pi)
    y = jnp.log(jnp.prod(y + 0.6, axis=6))
    y = jnp.sum(y, axis=5)                                        # (B,3,Hp,Wp,m)
    y = y[:, :, :Hq * _POOL, :Wq * _POOL, :]
    y = y.reshape(B, 3, Hq, _POOL, Wq, _POOL, m).max(axis=(3, 5))  # (B,3,Hq,Wq,m)
    feat = y.reshape(B, 3 * Hq * Wq * m)
    h = jnp.maximum(
        jnp.dot(feat, w1, precision=jax.lax.Precision.HIGHEST) + b1, 0.0)
    return jnp.dot(h, w2, precision=jax.lax.Precision.HIGHEST) + b2


if __name__ == "__main__":
    B, m, classes, imgsize = 2, 2, 8, 16   # small shapes consistent with the module

    key = jax.random.PRNGKey(0)
    kx, kw, kq, k1, k2, k3, k4 = jax.random.split(key, 7)
    x = jax.random.uniform(kx, (B, 3, imgsize, imgsize), jnp.float32)
    w_d = jax.random.uniform(kw, (3, 1, 1, m, 5, 5), jnp.float32)   # torch.rand
    q_d = jax.random.uniform(kq, (3, 1, 1, m, 5, 5), jnp.float32)   # torch.rand

    pooled_img = (imgsize - 4) // 4
    D = m * 3 * pooled_img * pooled_img
    bnd1 = 1.0 / math.sqrt(D)
    w1 = jax.random.uniform(k1, (D, 128), jnp.float32, -bnd1, bnd1)  # Axon.fc
    b1 = jax.random.uniform(k2, (1, 128), jnp.float32, -bnd1, bnd1)
    bnd2 = 1.0 / math.sqrt(128)
    w2 = jax.random.uniform(k3, (128, classes), jnp.float32, -bnd2, bnd2)  # Synapse.fc
    b2 = jax.random.uniform(k4, (1, classes), jnp.float32, -bnd2, bnd2)

    out = jax.jit(mdpn3_forward)(x, w_d, q_d, w1, b1, w2, b2)
    out = jax.block_until_ready(out)
    assert out.shape == (B, classes), out.shape

    ref = reference_forward(x, w_d, q_d, w1, b1, w2, b2)
    err = float(jnp.max(jnp.abs(out - ref)))
    assert err < 5e-3, f"max abs error vs reference: {err}"
    print("KERNEL_OK")
</pallas_src>

<mosaic_0001>
module attributes {stable_mosaic.version = 11 : i64} {
  func.func @kernel(%arg0: i32, %arg1: i32, %arg2: memref<1x48x2x9xf32, #tpu.memory_space<vmem>>, %arg3: memref<1x6x1x1xf32, #tpu.memory_space<vmem>>, %arg4: memref<1x6x1x1xf32, #tpu.memory_space<vmem>>, %arg5: memref<6x9x128xf32, #tpu.memory_space<vmem>>, %arg6: memref<1x128xf32, #tpu.memory_space<vmem>>, %arg7: memref<128x8xf32, #tpu.memory_space<vmem>>, %arg8: memref<1x8xf32, #tpu.memory_space<vmem>>, %arg9: memref<2x8xf32, #tpu.memory_space<vmem>>, %arg10: memref<6x16x2x9xf32, #tpu.memory_space<vmem>>) attributes {dimension_semantics = [#tpu.dimension_semantics<parallel>, #tpu.dimension_semantics<arbitrary>], iteration_bounds = array<i64: 1, 25>, scalar_prefetch = 0 : i64, scratch_operands = 1 : i64, tpu.core_type = #tpu.core_type<tc>, window_params = [{transform_indices = @transform_0, window_bounds = array<i64: 1, 48, 2, 9>}, {transform_indices = @transform_1, window_bounds = array<i64: 1, 6, 1, 1>}, {transform_indices = @transform_2, window_bounds = array<i64: 1, 6, 1, 1>}, {pipeline_mode = #tpu.pipeline_mode<synchronous>, transform_indices = @transform_3, window_bounds = array<i64: 6, 9, 128>}, {pipeline_mode = #tpu.pipeline_mode<synchronous>, transform_indices = @transform_4, window_bounds = array<i64: 1, 128>}, {pipeline_mode = #tpu.pipeline_mode<synchronous>, transform_indices = @transform_5, window_bounds = array<i64: 128, 8>}, {pipeline_mode = #tpu.pipeline_mode<synchronous>, transform_indices = @transform_6, window_bounds = array<i64: 1, 8>}, {transform_indices = @transform_7, window_bounds = array<i64: 2, 8>}]} {
    %c0_i32 = arith.constant 0 : i32
    %0 = arith.cmpi eq, %arg1, %c0_i32 : i32
    %1 = arith.extui %0 : i1 to i32
    %c0_i32_0 = arith.constant 0 : i32
    %2 = arith.cmpi ne, %1, %c0_i32_0 : i32
    scf.if %2 {
      %cst_197 = arith.constant -28.618248 : f32
      %372 = vector.broadcast %cst_197 : f32 to vector<6x16x2x9xf32>
      %c0_198 = arith.constant 0 : index
      %c0_199 = arith.constant 0 : index
      %c0_200 = arith.constant 0 : index
      %c0_201 = arith.constant 0 : index
      %373 = vector.load %arg10[%c0_198, %c0_199, %c0_200, %c0_201] : memref<6x16x2x9xf32, #tpu.memory_space<vmem>>, vector<6x16x2x9xf32>
      tpu.vector_store %arg10[%c0_198, %c0_199, %c0_200, %c0_201], %372 {strides = array<i32>} : memref<6x16x2x9xf32, #tpu.memory_space<vmem>>, vector<6x16x2x9xf32>,
    } else {
    }
    %c0 = arith.constant 0 : index
    %c0_1 = arith.constant 0 : index
    %c0_2 = arith.constant 0 : index
    %c0_3 = arith.constant 0 : index
    %3 = vector.load %arg2[%c0, %c0_1, %c0_2, %c0_3] : memref<1x48x2x9xf32, #tpu.memory_space<vmem>>, vector<1x16x2x9xf32>
    %4 = vector.shape_cast %3 : vector<1x16x2x9xf32> to vector<16x2x9xf32>
    %c0_4 = arith.constant 0 : index
    %c0_5 = arith.constant 0 : index
    %c0_6 = arith.constant 0 : index
    %c0_7 = arith.constant 0 : index
    %5 = vector.load %arg3[%c0_4, %c0_5, %c0_6, %c0_7] : memref<1x6x1x1xf32, #tpu.memory_space<vmem>>, vector<1x1x1x1xf32>
    %6 = vector.shape_cast %5 : vector<1x1x1x1xf32> to vector<1x1xf32>
    %c0_8 = arith.constant 0 : index
    %c0_9 = arith.constant 0 : index
    %c0_10 = arith.constant 0 : index
    %c0_11 = arith.constant 0 : index
    %7 = vector.load %arg4[%c0_8, %c0_9, %c0_10, %c0_11] : memref<1x6x1x1xf32, #tpu.memory_space<vmem>>, vector<1x1x1x1xf32>
    %8 = vector.shape_cast %7 : vector<1x1x1x1xf32> to vector<1x1xf32>
    %9 = vector.shape_cast %6 : vector<1x1xf32> to vector<1x1x1xf32>
    %10 = vector.broadcast %9 : vector<1x1x1xf32> to vector<16x2x9xf32>
    %11 = arith.mulf %4, %10 : vector<16x2x9xf32>
    %12 = vector.shape_cast %8 : vector<1x1xf32> to vector<1x1x1xf32>
    %13 = vector.broadcast %12 : vector<1x1x1xf32> to vector<16x2x9xf32>
    %14 = arith.subf %11, %13 : vector<16x2x9xf32>
    %c0_12 = arith.constant 0 : index
    %c0_13 = arith.constant 0 : index
    %c0_14 = arith.constant 0 : index
    %c0_15 = arith.constant 0 : index
    %15 = vector.load %arg10[%c0_12, %c0_13, %c0_14, %c0_15] : memref<6x16x2x9xf32, #tpu.memory_space<vmem>>, vector<1x16x2x9xf32>
    %16 = vector.shape_cast %15 : vector<1x16x2x9xf32> to vector<16x2x9xf32>
    %17 = math.absf %14 : vector<16x2x9xf32>
    %cst = arith.constant 2.41421366 : f32
    %18 = vector.broadcast %cst : f32 to vector<16x2x9xf32>
    %19 = arith.cmpf ogt, %17, %18 : vector<16x2x9xf32>
    %cst_16 = arith.constant 0.414213568 : f32
    %20 = vector.broadcast %cst_16 : f32 to vector<16x2x9xf32>
    %21 = arith.cmpf ogt, %17, %20 : vector<16x2x9xf32>
    %cst_17 = arith.constant 1.000000e+00 : f32
    %22 = vector.broadcast %cst_17 : f32 to vector<16x2x9xf32>
    %23 = arith.subf %17, %22 : vector<16x2x9xf32>
    %24 = arith.select %21, %23, %17 : vector<16x2x9xi1>, vector<16x2x9xf32>
    %cst_18 = arith.constant -1.000000e+00 : f32
    %25 = vector.broadcast %cst_18 : f32 to vector<16x2x9xf32>
    %26 = arith.select %19, %25, %24 : vector<16x2x9xi1>, vector<16x2x9xf32>
    %cst_19 = arith.constant 1.000000e+00 : f32
    %27 = vector.broadcast %cst_19 : f32 to vector<16x2x9xf32>
    %28 = arith.addf %17, %27 : vector<16x2x9xf32>
    %cst_20 = arith.constant 1.000000e+00 : f32
    %29 = vector.broadcast %cst_20 : f32 to vector<16x2x9xf32>
    %30 = arith.select %21, %28, %29 : vector<16x2x9xi1>, vector<16x2x9xf32>
    %31 = arith.select %19, %17, %30 : vector<16x2x9xi1>, vector<16x2x9xf32>
    %32 = arith.divf %26, %31 : vector<16x2x9xf32>
    %cst_21 = arith.constant 0.785398185 : f32
    %cst_22 = arith.constant 0.000000e+00 : f32
    %33 = vector.broadcast %cst_21 : f32 to vector<16x2x9xf32>
    %34 = vector.broadcast %cst_22 : f32 to vector<16x2x9xf32>
    %35 = arith.select %21, %33, %34 : vector<16x2x9xi1>, vector<16x2x9xf32>
    %cst_23 = arith.constant 1.57079637 : f32
    %36 = vector.broadcast %cst_23 : f32 to vector<16x2x9xf32>
    %37 = arith.select %19, %36, %35 : vector<16x2x9xi1>, vector<16x2x9xf32>
    %38 = arith.mulf %32, %32 : vector<16x2x9xf32>
    %cst_24 = arith.constant 0.0805374458 : f32
    %39 = vector.broadcast %cst_24 : f32 to vector<16x2x9xf32>
    %40 = arith.mulf %39, %38 : vector<16x2x9xf32>
    %cst_25 = arith.constant 0.138776854 : f32
    %41 = vector.broadcast %cst_25 : f32 to vector<16x2x9xf32>
    %42 = arith.subf %40, %41 : vector<16x2x9xf32>
    %43 = arith.mulf %42, %38 : vector<16x2x9xf32>
    %cst_26 = arith.constant 0.199777111 : f32
    %44 = vector.broadcast %cst_26 : f32 to vector<16x2x9xf32>
    %45 = arith.addf %43, %44 : vector<16x2x9xf32>
    %46 = arith.mulf %45, %38 : vector<16x2x9xf32>
    %cst_27 = arith.constant 0.333329499 : f32
    %47 = vector.broadcast %cst_27 : f32 to vector<16x2x9xf32>
    %48 = arith.subf %46, %47 : vector<16x2x9xf32>
    %49 = arith.mulf %48, %38 : vector<16x2x9xf32>
    %50 = arith.mulf %49, %32 : vector<16x2x9xf32>
    %51 = arith.addf %50, %32 : vector<16x2x9xf32>
    %52 = arith.addf %37, %51 : vector<16x2x9xf32>
    %cst_28 = arith.constant 0.000000e+00 : f32
    %53 = vector.broadcast %cst_28 : f32 to vector<16x2x9xf32>
    %54 = arith.cmpf olt, %14, %53 : vector<16x2x9xf32>
    %cst_29 = arith.constant 0.000000e+00 : f32
    %55 = vector.broadcast %cst_29 : f32 to vector<16x2x9xf32>
    %56 = arith.subf %55, %52 : vector<16x2x9xf32>
    %57 = arith.select %54, %56, %52 : vector<16x2x9xi1>, vector<16x2x9xf32>
    %cst_30 = arith.constant 3.4557519 : f32
    %58 = vector.broadcast %cst_30 : f32 to vector<16x2x9xf32>
    %59 = arith.addf %57, %58 : vector<16x2x9xf32>
    %60 = math.log %59 : vector<16x2x9xf32>
    %61 = arith.addf %16, %60 : vector<16x2x9xf32>
    %c0_31 = arith.constant 0 : index
    %c0_32 = arith.constant 0 : index
    %c0_33 = arith.constant 0 : index
    %c0_34 = arith.constant 0 : index
    %62 = vector.load %arg10[%c0_31, %c0_32, %c0_33, %c0_34] : memref<6x16x2x9xf32, #tpu.memory_space<vmem>>, vector<1x16x2x9xf32>
    %63 = vector.shape_cast %62 : vector<1x16x2x9xf32> to vector<16x2x9xf32>
    %64 = vector.shape_cast %61 : vector<16x2x9xf32> to vector<1x16x2x9xf32>
    tpu.vector_store %arg10[%c0_31, %c0_32, %c0_33, %c0_34], %64 {strides = array<i32>} : memref<6x16x2x9xf32, #tpu.memory_space<vmem>>, vector<1x16x2x9xf32>,
    %c0_35 = arith.constant 0 : index
    %c1 = arith.constant 1 : index
    %c0_36 = arith.constant 0 : index
    %c0_37 = arith.constant 0 : index
    %65 = vector.load %arg3[%c0_35, %c1, %c0_36, %c0_37] : memref<1x6x1x1xf32, #tpu.memory_space<vmem>>, vector<1x1x1x1xf32>
    %66 = vector.shape_cast %65 : vector<1x1x1x1xf32> to vector<1x1xf32>
    %c0_38 = arith.constant 0 : index
    %c1_39 = arith.constant 1 : index
    %c0_40 = arith.constant 0 : index
    %c0_41 = arith.constant 0 : index
    %67 = vector.load %arg4[%c0_38, %c1_39, %c0_40, %c0_41] : memref<1x6x1x1xf32, #tpu.memory_space<vmem>>, vector<1x1x1x1xf32>
    %68 = vector.shape_cast %67 : vector<1x1x1x1xf32> to vector<1x1xf32>
    %69 = vector.shape_cast %66 : vector<1x1xf32> to vector<1x1x1xf32>
    %70 = vector.broadcast %69 : vector<1x1x1xf32> to vector<16x2x9xf32>
    %71 = arith.mulf %4, %70 : vector<16x2x9xf32>
    %72 = vector.shape_cast %68 : vector<1x1xf32> to vector<1x1x1xf32>
    %73 = vector.broadcast %72 : vector<1x1x1xf32> to vector<16x2x9xf32>
    %74 = arith.subf %71, %73 : vector<16x2x9xf32>
    %c1_42 = arith.constant 1 : index
    %c0_43 = arith.constant 0 : index
    %c0_44 = arith.constant 0 : index
    %c0_45 = arith.constant 0 : index
    %75 = vector.load %arg10[%c1_42, %c0_43, %c0_44, %c0_45] : memref<6x16x2x9xf32, #tpu.memory_space<vmem>>, vector<1x16x2x9xf32>
    %76 = vector.shape_cast %75 : vector<1x16x2x9xf32> to vector<16x2x9xf32>
    %77 = math.absf %74 : vector<16x2x9xf32>
    %cst_46 = arith.constant 2.41421366 : f32
    %78 = vector.broadcast %cst_46 : f32 to vector<16x2x9xf32>
    %79 = arith.cmpf ogt, %77, %78 : vector<16x2x9xf32>
    %cst_47 = arith.constant 0.414213568 : f32
    %80 = vector.broadcast %cst_47 : f32 to vector<16x2x9xf32>
    %81 = arith.cmpf ogt, %77, %80 : vector<16x2x9xf32>
    %cst_48 = arith.constant 1.000000e+00 : f32
    %82 = vector.broadcast %cst_48 : f32 to vector<16x2x9xf32>
    %83 = arith.subf %77, %82 : vector<16x2x9xf32>
    %84 = arith.select %81, %83, %77 : vector<16x2x9xi1>, vector<16x2x9xf32>
    %cst_49 = arith.constant -1.000000e+00 : f32
    %85 = vector.broadcast %cst_49 : f32 to vector<16x2x9xf32>
    %86 = arith.select %79, %85, %84 : vector<16x2x9xi1>, vector<16x2x9xf32>
    %cst_50 = arith.constant 1.000000e+00 : f32
    %87 = vector.broadcast %cst_50 : f32 to vector<16x2x9xf32>
    %88 = arith.addf %77, %87 : vector<16x2x9xf32>
    %cst_51 = arith.constant 1.000000e+00 : f32
    %89 = vector.broadcast %cst_51 : f32 to vector<16x2x9xf32>
    %90 = arith.select %81, %88, %89 : vector<16x2x9xi1>, vector<16x2x9xf32>
    %91 = arith.select %79, %77, %90 : vector<16x2x9xi1>, vector<16x2x9xf32>
    %92 = arith.divf %86, %91 : vector<16x2x9xf32>
    %cst_52 = arith.constant 0.785398185 : f32
    %cst_53 = arith.constant 0.000000e+00 : f32
    %93 = vector.broadcast %cst_52 : f32 to vector<16x2x9xf32>
    %94 = vector.broadcast %cst_53 : f32 to vector<16x2x9xf32>
    %95 = arith.select %81, %93, %94 : vector<16x2x9xi1>, vector<16x2x9xf32>
    %cst_54 = arith.constant 1.57079637 : f32
    %96 = vector.broadcast %cst_54 : f32 to vector<16x2x9xf32>
    %97 = arith.select %79, %96, %95 : vector<16x2x9xi1>, vector<16x2x9xf32>
    %98 = arith.mulf %92, %92 : vector<16x2x9xf32>
    %cst_55 = arith.constant 0.0805374458 : f32
    %99 = vector.broadcast %cst_55 : f32 to vector<16x2x9xf32>
    %100 = arith.mulf %99, %98 : vector<16x2x9xf32>
    %cst_56 = arith.constant 0.138776854 : f32
    %101 = vector.broadcast %cst_56 : f32 to vector<16x2x9xf32>
    %102 = arith.subf %100, %101 : vector<16x2x9xf32>
    %103 = arith.mulf %102, %98 : vector<16x2x9xf32>
    %cst_57 = arith.constant 0.199777111 : f32
    %104 = vector.broadcast %cst_57 : f32 to vector<16x2x9xf32>
    %105 = arith.addf %103, %104 : vector<16x2x9xf32>
    %106 = arith.mulf %105, %98 : vector<16x2x9xf32>
    %cst_58 = arith.constant 0.333329499 : f32
    %107 = vector.broadcast %cst_58 : f32 to vector<16x2x9xf32>
    %108 = arith.subf %106, %107 : vector<16x2x9xf32>
    %109 = arith.mulf %108, %98 : vector<16x2x9xf32>
    %110 = arith.mulf %109, %92 : vector<16x2x9xf32>
    %111 = arith.addf %110, %92 : vector<16x2x9xf32>
    %112 = arith.addf %97, %111 : vector<16x2x9xf32>
    %cst_59 = arith.constant 0.000000e+00 : f32
    %113 = vector.broadcast %cst_59 : f32 to vector<16x2x9xf32>
    %114 = arith.cmpf olt, %74, %113 : vector<16x2x9xf32>
    %cst_60 = arith.constant 0.000000e+00 : f32
    %115 = vector.broadcast %cst_60 : f32 to vector<16x2x9xf32>
    %116 = arith.subf %115, %112 : vector<16x2x9xf32>
    %117 = arith.select %114, %116, %112 : vector<16x2x9xi1>, vector<16x2x9xf32>
    %cst_61 = arith.constant 3.4557519 : f32
    %118 = vector.broadcast %cst_61 : f32 to vector<16x2x9xf32>
    %119 = arith.addf %117, %118 : vector<16x2x9xf32>
    %120 = math.log %119 : vector<16x2x9xf32>
    %121 = arith.addf %76, %120 : vector<16x2x9xf32>
    %c1_62 = arith.constant 1 : index
    %c0_63 = arith.constant 0 : index
    %c0_64 = arith.constant 0 : index
    %c0_65 = arith.constant 0 : index
    %122 = vector.load %arg10[%c1_62, %c0_63, %c0_64, %c0_65] : memref<6x16x2x9xf32, #tpu.memory_space<vmem>>, vector<1x16x2x9xf32>
    %123 = vector.shape_cast %122 : vector<1x16x2x9xf32> to vector<16x2x9xf32>
    %124 = vector.shape_cast %121 : vector<16x2x9xf32> to vector<1x16x2x9xf32>
    tpu.vector_store %arg10[%c1_62, %c0_63, %c0_64, %c0_65], %124 {strides = array<i32>} : memref<6x16x2x9xf32, #tpu.memory_space<vmem>>, vector<1x16x2x9xf32>,
    %c0_66 = arith.constant 0 : index
    %c16 = arith.constant 16 : index
    %c0_67 = arith.constant 0 : index
    %c0_68 = arith.constant 0 : index
    %125 = vector.load %arg2[%c0_66, %c16, %c0_67, %c0_68] : memref<1x48x2x9xf32, #tpu.memory_space<vmem>>, vector<1x16x2x9xf32>
    %126 = vector.shape_cast %125 : vector<1x16x2x9xf32> to vector<16x2x9xf32>
    %c0_69 = arith.constant 0 : index
    %c2 = arith.constant 2 : index
    %c0_70 = arith.constant 0 : index
    %c0_71 = arith.constant 0 : index
    %127 = vector.load %arg3[%c0_69, %c2, %c0_70, %c0_71] : memref<1x6x1x1xf32, #tpu.memory_space<vmem>>, vector<1x1x1x1xf32>
    %128 = vector.shape_cast %127 : vector<1x1x1x1xf32> to vector<1x1xf32>
    %c0_72 = arith.constant 0 : index
    %c2_73 = arith.constant 2 : index
    %c0_74 = arith.constant 0 : index
    %c0_75 = arith.constant 0 : index
    %129 = vector.load %arg4[%c0_72, %c2_73, %c0_74, %c0_75] : memref<1x6x1x1xf32, #tpu.memory_space<vmem>>, vector<1x1x1x1xf32>
    %130 = vector.shape_cast %129 : vector<1x1x1x1xf32> to vector<1x1xf32>
    %131 = vector.shape_cast %128 : vector<1x1xf32> to vector<1x1x1xf32>
    %132 = vector.broadcast %131 : vector<1x1x1xf32> to vector<16x2x9xf32>
    %133 = arith.mulf %126, %132 : vector<16x2x9xf32>
    %134 = vector.shape_cast %130 : vector<1x1xf32> to vector<1x1x1xf32>
    %135 = vector.broadcast %134 : vector<1x1x1xf32> to vector<16x2x9xf32>
    %136 = arith.subf %133, %135 : vector<16x2x9xf32>
    %c2_76 = arith.constant 2 : index
    %c0_77 = arith.constant 0 : index
    %c0_78 = arith.constant 0 : index
    %c0_79 = arith.constant 0 : index
    %137 = vector.load %arg10[%c2_76, %c0_77, %c0_78, %c0_79] : memref<6x16x2x9xf32, #tpu.memory_space<vmem>>, vector<1x16x2x9xf32>
    %138 = vector.shape_cast %137 : vector<1x16x2x9xf32> to vector<16x2x9xf32>
    %139 = math.absf %136 : vector<16x2x9xf32>
    %cst_80 = arith.constant 2.41421366 : f32
    %140 = vector.broadcast %cst_80 : f32 to vector<16x2x9xf32>
    %141 = arith.cmpf ogt, %139, %140 : vector<16x2x9xf32>
    %cst_81 = arith.constant 0.414213568 : f32
    %142 = vector.broadcast %cst_81 : f32 to vector<16x2x9xf32>
    %143 = arith.cmpf ogt, %139, %142 : vector<16x2x9xf32>
    %cst_82 = arith.constant 1.000000e+00 : f32
    %144 = vector.broadcast %cst_82 : f32 to vector<16x2x9xf32>
    %145 = arith.subf %139, %144 : vector<16x2x9xf32>
    %146 = arith.select %143, %145, %139 : vector<16x2x9xi1>, vector<16x2x9xf32>
    %cst_83 = arith.constant -1.000000e+00 : f32
    %147 = vector.broadcast %cst_83 : f32 to vector<16x2x9xf32>
    %148 = arith.select %141, %147, %146 : vector<16x2x9xi1>, vector<16x2x9xf32>
    %cst_84 = arith.constant 1.000000e+00 : f32
    %149 = vector.broadcast %cst_84 : f32 to vector<16x2x9xf32>
    %150 = arith.addf %139, %149 : vector<16x2x9xf32>
    %cst_85 = arith.constant 1.000000e+00 : f32
    %151 = vector.broadcast %cst_85 : f32 to vector<16x2x9xf32>
    %152 = arith.select %143, %150, %151 : vector<16x2x9xi1>, vector<16x2x9xf32>
    %153 = arith.select %141, %139, %152 : vector<16x2x9xi1>, vector<16x2x9xf32>
    %154 = arith.divf %148, %153 : vector<16x2x9xf32>
    %cst_86 = arith.constant 0.785398185 : f32
    %cst_87 = arith.constant 0.000000e+00 : f32
    %155 = vector.broadcast %cst_86 : f32 to vector<16x2x9xf32>
    %156 = vector.broadcast %cst_87 : f32 to vector<16x2x9xf32>
    %157 = arith.select %143, %155, %156 : vector<16x2x9xi1>, vector<16x2x9xf32>
    %cst_88 = arith.constant 1.57079637 : f32
    %158 = vector.broadcast %cst_88 : f32 to vector<16x2x9xf32>
    %159 = arith.select %141, %158, %157 : vector<16x2x9xi1>, vector<16x2x9xf32>
    %160 = arith.mulf %154, %154 : vector<16x2x9xf32>
    %cst_89 = arith.constant 0.0805374458 : f32
    %161 = vector.broadcast %cst_89 : f32 to vector<16x2x9xf32>
    %162 = arith.mulf %161, %160 : vector<16x2x9xf32>
    %cst_90 = arith.constant 0.138776854 : f32
    %163 = vector.broadcast %cst_90 : f32 to vector<16x2x9xf32>
    %164 = arith.subf %162, %163 : vector<16x2x9xf32>
    %165 = arith.mulf %164, %160 : vector<16x2x9xf32>
    %cst_91 = arith.constant 0.199777111 : f32
    %166 = vector.broadcast %cst_91 : f32 to vector<16x2x9xf32>
    %167 = arith.addf %165, %166 : vector<16x2x9xf32>
    %168 = arith.mulf %167, %160 : vector<16x2x9xf32>
    %cst_92 = arith.constant 0.333329499 : f32
    %169 = vector.broadcast %cst_92 : f32 to vector<16x2x9xf32>
    %170 = arith.subf %168, %169 : vector<16x2x9xf32>
    %171 = arith.mulf %170, %160 : vector<16x2x9xf32>
    %172 = arith.mulf %171, %154 : vector<16x2x9xf32>
    %173 = arith.addf %172, %154 : vector<16x2x9xf32>
    %174 = arith.addf %159, %173 : vector<16x2x9xf32>
    %cst_93 = arith.constant 0.000000e+00 : f32
    %175 = vector.broadcast %cst_93 : f32 to vector<16x2x9xf32>
    %176 = arith.cmpf olt, %136, %175 : vector<16x2x9xf32>
    %cst_94 = arith.constant 0.000000e+00 : f32
    %177 = vector.broadcast %cst_94 : f32 to vector<16x2x9xf32>
    %178 = arith.subf %177, %174 : vector<16x2x9xf32>
    %179 = arith.select %176, %178, %174 : vector<16x2x9xi1>, vector<16x2x9xf32>
    %cst_95 = arith.constant 3.4557519 : f32
    %180 = vector.broadcast %cst_95 : f32 to vector<16x2x9xf32>
    %181 = arith.addf %179, %180 : vector<16x2x9xf32>
    %182 = math.log %181 : vector<16x2x9xf32>
    %183 = arith.addf %138, %182 : vector<16x2x9xf32>
    %c2_96 = arith.constant 2 : index
    %c0_97 = arith.constant 0 : index
    %c0_98 = arith.constant 0 : index
    %c0_99 = arith.constant 0 : index
    %184 = vector.load %arg10[%c2_96, %c0_97, %c0_98, %c0_99] : memref<6x16x2x9xf32, #tpu.memory_space<vmem>>, vector<1x16x2x9xf32>
    %185 = vector.shape_cast %184 : vector<1x16x2x9xf32> to vector<16x2x9xf32>
    %186 = vector.shape_cast %183 : vector<16x2x9xf32> to vector<1x16x2x9xf32>
    tpu.vector_store %arg10[%c2_96, %c0_97, %c0_98, %c0_99], %186 {strides = array<i32>} : memref<6x16x2x9xf32, #tpu.memory_space<vmem>>, vector<1x16x2x9xf32>,
    %c0_100 = arith.constant 0 : index
    %c3 = arith.constant 3 : index
    %c0_101 = arith.constant 0 : index
    %c0_102 = arith.constant 0 : index
    %187 = vector.load %arg3[%c0_100, %c3, %c0_101, %c0_102] : memref<1x6x1x1xf32, #tpu.memory_space<vmem>>, vector<1x1x1x1xf32>
    %188 = vector.shape_cast %187 : vector<1x1x1x1xf32> to vector<1x1xf32>
    %c0_103 = arith.constant 0 : index
    %c3_104 = arith.constant 3 : index
    %c0_105 = arith.constant 0 : index
    %c0_106 = arith.constant 0 : index
    %189 = vector.load %arg4[%c0_103, %c3_104, %c0_105, %c0_106] : memref<1x6x1x1xf32, #tpu.memory_space<vmem>>, vector<1x1x1x1xf32>
    %190 = vector.shape_cast %189 : vector<1x1x1x1xf32> to vector<1x1xf32>
    %191 = vector.shape_cast %188 : vector<1x1xf32> to vector<1x1x1xf32>
    %192 = vector.broadcast %191 : vector<1x1x1xf32> to vector<16x2x9xf32>
    %193 = arith.mulf %126, %192 : vector<16x2x9xf32>
    %194 = vector.shape_cast %190 : vector<1x1xf32> to vector<1x1x1xf32>
    %195 = vector.broadcast %194 : vector<1x1x1xf32> to vector<16x2x9xf32>
    %196 = arith.subf %193, %195 : vector<16x2x9xf32>
    %c3_107 = arith.constant 3 : index
    %c0_108 = arith.constant 0 : index
    %c0_109 = arith.constant 0 : index
    %c0_110 = arith.constant 0 : index
    %197 = vector.load %arg10[%c3_107, %c0_108, %c0_109, %c0_110] : memref<6x16x2x9xf32, #tpu.memory_space<vmem>>, vector<1x16x2x9xf32>
    %198 = vector.shape_cast %197 : vector<1x16x2x9xf32> to vector<16x2x9xf32>
    %199 = math.absf %196 : vector<16x2x9xf32>
    %cst_111 = arith.constant 2.41421366 : f32
    %200 = vector.broadcast %cst_111 : f32 to vector<16x2x9xf32>
    %201 = arith.cmpf ogt, %199, %200 : vector<16x2x9xf32>
    %cst_112 = arith.constant 0.414213568 : f32
    %202 = vector.broadcast %cst_112 : f32 to vector<16x2x9xf32>
    %203 = arith.cmpf ogt, %199, %202 : vector<16x2x9xf32>
    %cst_113 = arith.constant 1.000000e+00 : f32
    %204 = vector.broadcast %cst_113 : f32 to vector<16x2x9xf32>
    %205 = arith.subf %199, %204 : vector<16x2x9xf32>
    %206 = arith.select %203, %205, %199 : vector<16x2x9xi1>, vector<16x2x9xf32>
    %cst_114 = arith.constant -1.000000e+00 : f32
    %207 = vector.broadcast %cst_114 : f32 to vector<16x2x9xf32>
    %208 = arith.select %201, %207, %206 : vector<16x2x9xi1>, vector<16x2x9xf32>
    %cst_115 = arith.constant 1.000000e+00 : f32
    %209 = vector.broadcast %cst_115 : f32 to vector<16x2x9xf32>
    %210 = arith.addf %199, %209 : vector<16x2x9xf32>
    %cst_116 = arith.constant 1.000000e+00 : f32
    %211 = vector.broadcast %cst_116 : f32 to vector<16x2x9xf32>
    %212 = arith.select %203, %210, %211 : vector<16x2x9xi1>, vector<16x2x9xf32>
    %213 = arith.select %201, %199, %212 : vector<16x2x9xi1>, vector<16x2x9xf32>
    %214 = arith.divf %208, %213 : vector<16x2x9xf32>
    %cst_117 = arith.constant 0.785398185 : f32
    %cst_118 = arith.constant 0.000000e+00 : f32
    %215 = vector.broadcast %cst_117 : f32 to vector<16x2x9xf32>
    %216 = vector.broadcast %cst_118 : f32 to vector<16x2x9xf32>
    %217 = arith.select %203, %215, %216 : vector<16x2x9xi1>, vector<16x2x9xf32>
    %cst_119 = arith.constant 1.57079637 : f32
    %218 = vector.broadcast %cst_119 : f32 to vector<16x2x9xf32>
    %219 = arith.select %201, %218, %217 : vector<16x2x9xi1>, vector<16x2x9xf32>
    %220 = arith.mulf %214, %214 : vector<16x2x9xf32>
    %cst_120 = arith.constant 0.0805374458 : f32
    %221 = vector.broadcast %cst_120 : f32 to vector<16x2x9xf32>
    %222 = arith.mulf %221, %220 : vector<16x2x9xf32>
    %cst_121 = arith.constant 0.138776854 : f32
    %223 = vector.broadcast %cst_121 : f32 to vector<16x2x9xf32>
    %224 = arith.subf %222, %223 : vector<16x2x9xf32>
    %225 = arith.mulf %224, %220 : vector<16x2x9xf32>
    %cst_122 = arith.constant 0.199777111 : f32
    %226 = vector.broadcast %cst_122 : f32 to vector<16x2x9xf32>
    %227 = arith.addf %225, %226 : vector<16x2x9xf32>
    %228 = arith.mulf %227, %220 : vector<16x2x9xf32>
    %cst_123 = arith.constant 0.333329499 : f32
    %229 = vector.broadcast %cst_123 : f32 to vector<16x2x9xf32>
    %230 = arith.subf %228, %229 : vector<16x2x9xf32>
    %231 = arith.mulf %230, %220 : vector<16x2x9xf32>
    %232 = arith.mulf %231, %214 : vector<16x2x9xf32>
    %233 = arith.addf %232, %214 : vector<16x2x9xf32>
    %234 = arith.addf %219, %233 : vector<16x2x9xf32>
    %cst_124 = arith.constant 0.000000e+00 : f32
    %235 = vector.broadcast %cst_124 : f32 to vector<16x2x9xf32>
    %236 = arith.cmpf olt, %196, %235 : vector<16x2x9xf32>
    %cst_125 = arith.constant 0.000000e+00 : f32
    %237 = vector.broadcast %cst_125 : f32 to vector<16x2x9xf32>
    %238 = arith.subf %237, %234 : vector<16x2x9xf32>
    %239 = arith.select %236, %238, %234 : vector<16x2x9xi1>, vector<16x2x9xf32>
    %cst_126 = arith.constant 3.4557519 : f32
    %240 = vector.broadcast %cst_126 : f32 to vector<16x2x9xf32>
    %241 = arith.addf %239, %240 : vector<16x2x9xf32>
    %242 = math.log %241 : vector<16x2x9xf32>
    %243 = arith.addf %198, %242 : vector<16x2x9xf32>
    %c3_127 = arith.constant 3 : index
    %c0_128 = arith.constant 0 : index
    %c0_129 = arith.constant 0 : index
    %c0_130 = arith.constant 0 : index
    %244 = vector.load %arg10[%c3_127, %c0_128, %c0_129, %c0_130] : memref<6x16x2x9xf32, #tpu.memory_space<vmem>>, vector<1x16x2x9xf32>
    %245 = vector.shape_cast %244 : vector<1x16x2x9xf32> to vector<16x2x9xf32>
    %246 = vector.shape_cast %243 : vector<16x2x9xf32> to vector<1x16x2x9xf32>
    tpu.vector_store %arg10[%c3_127, %c0_128, %c0_129, %c0_130], %246 {strides = array<i32>} : memref<6x16x2x9xf32, #tpu.memory_space<vmem>>, vector<1x16x2x9xf32>,
    %c0_131 = arith.constant 0 : index
    %c32 = arith.constant 32 : index
    %c0_132 = arith.constant 0 : index
    %c0_133 = arith.constant 0 : index
    %247 = vector.load %arg2[%c0_131, %c32, %c0_132, %c0_133] : memref<1x48x2x9xf32, #tpu.memory_space<vmem>>, vector<1x16x2x9xf32>
    %248 = vector.shape_cast %247 : vector<1x16x2x9xf32> to vector<16x2x9xf32>
    %c0_134 = arith.constant 0 : index
    %c4 = arith.constant 4 : index
    %c0_135 = arith.constant 0 : index
    %c0_136 = arith.constant 0 : index
    %249 = vector.load %arg3[%c0_134, %c4, %c0_135, %c0_136] : memref<1x6x1x1xf32, #tpu.memory_space<vmem>>, vector<1x1x1x1xf32>
    %250 = vector.shape_cast %249 : vector<1x1x1x1xf32> to vector<1x1xf32>
    %c0_137 = arith.constant 0 : index
    %c4_138 = arith.constant 4 : index
    %c0_139 = arith.constant 0 : index
    %c0_140 = arith.constant 0 : index
    %251 = vector.load %arg4[%c0_137, %c4_138, %c0_139, %c0_140] : memref<1x6x1x1xf32, #tpu.memory_space<vmem>>, vector<1x1x1x1xf32>
    %252 = vector.shape_cast %251 : vector<1x1x1x1xf32> to vector<1x1xf32>
    %253 = vector.shape_cast %250 : vector<1x1xf32> to vector<1x1x1xf32>
    %254 = vector.broadcast %253 : vector<1x1x1xf32> to vector<16x2x9xf32>
    %255 = arith.mulf %248, %254 : vector<16x2x9xf32>
    %256 = vector.shape_cast %252 : vector<1x1xf32> to vector<1x1x1xf32>
    %257 = vector.broadcast %256 : vector<1x1x1xf32> to vector<16x2x9xf32>
    %258 = arith.subf %255, %257 : vector<16x2x9xf32>
    %c4_141 = arith.constant 4 : index
    %c0_142 = arith.constant 0 : index
    %c0_143 = arith.constant 0 : index
    %c0_144 = arith.constant 0 : index
    %259 = vector.load %arg10[%c4_141, %c0_142, %c0_143, %c0_144] : memref<6x16x2x9xf32, #tpu.memory_space<vmem>>, vector<1x16x2x9xf32>
    %260 = vector.shape_cast %259 : vector<1x16x2x9xf32> to vector<16x2x9xf32>
    %261 = math.absf %258 : vector<16x2x9xf32>
    %cst_145 = arith.constant 2.41421366 : f32
    %262 = vector.broadcast %cst_145 : f32 to vector<16x2x9xf32>
    %263 = arith.cmpf ogt, %261, %262 : vector<16x2x9xf32>
    %cst_146 = arith.constant 0.414213568 : f32
    %264 = vector.broadcast %cst_146 : f32 to vector<16x2x9xf32>
    %265 = arith.cmpf ogt, %261, %264 : vector<16x2x9xf32>
    %cst_147 = arith.constant 1.000000e+00 : f32
    %266 = vector.broadcast %cst_147 : f32 to vector<16x2x9xf32>
    %267 = arith.subf %261, %266 : vector<16x2x9xf32>
    %268 = arith.select %265, %267, %261 : vector<16x2x9xi1>, vector<16x2x9xf32>
    %cst_148 = arith.constant -1.000000e+00 : f32
    %269 = vector.broadcast %cst_148 : f32 to vector<16x2x9xf32>
    %270 = arith.select %263, %269, %268 : vector<16x2x9xi1>, vector<16x2x9xf32>
    %cst_149 = arith.constant 1.000000e+00 : f32
    %271 = vector.broadcast %cst_149 : f32 to vector<16x2x9xf32>
    %272 = arith.addf %261, %271 : vector<16x2x9xf32>
    %cst_150 = arith.constant 1.000000e+00 : f32
    %273 = vector.broadcast %cst_150 : f32 to vector<16x2x9xf32>
    %274 = arith.select %265, %272, %273 : vector<16x2x9xi1>, vector<16x2x9xf32>
    %275 = arith.select %263, %261, %274 : vector<16x2x9xi1>, vector<16x2x9xf32>
    %276 = arith.divf %270, %275 : vector<16x2x9xf32>
    %cst_151 = arith.constant 0.785398185 : f32
    %cst_152 = arith.constant 0.000000e+00 : f32
    %277 = vector.broadcast %cst_151 : f32 to vector<16x2x9xf32>
    %278 = vector.broadcast %cst_152 : f32 to vector<16x2x9xf32>
    %279 = arith.select %265, %277, %278 : vector<16x2x9xi1>, vector<16x2x9xf32>
    %cst_153 = arith.constant 1.57079637 : f32
    %280 = vector.broadcast %cst_153 : f32 to vector<16x2x9xf32>
    %281 = arith.select %263, %280, %279 : vector<16x2x9xi1>, vector<16x2x9xf32>
    %282 = arith.mulf %276, %276 : vector<16x2x9xf32>
    %cst_154 = arith.constant 0.0805374458 : f32
    %283 = vector.broadcast %cst_154 : f32 to vector<16x2x9xf32>
    %284 = arith.mulf %283, %282 : vector<16x2x9xf32>
    %cst_155 = arith.constant 0.138776854 : f32
    %285 = vector.broadcast %cst_155 : f32 to vector<16x2x9xf32>
    %286 = arith.subf %284, %285 : vector<16x2x9xf32>
    %287 = arith.mulf %286, %282 : vector<16x2x9xf32>
    %cst_156 = arith.constant 0.199777111 : f32
    %288 = vector.broadcast %cst_156 : f32 to vector<16x2x9xf32>
    %289 = arith.addf %287, %288 : vector<16x2x9xf32>
    %290 = arith.mulf %289, %282 : vector<16x2x9xf32>
    %cst_157 = arith.constant 0.333329499 : f32
    %291 = vector.broadcast %cst_157 : f32 to vector<16x2x9xf32>
    %292 = arith.subf %290, %291 : vector<16x2x9xf32>
    %293 = arith.mulf %292, %282 : vector<16x2x9xf32>
    %294 = arith.mulf %293, %276 : vector<16x2x9xf32>
    %295 = arith.addf %294, %276 : vector<16x2x9xf32>
    %296 = arith.addf %281, %295 : vector<16x2x9xf32>
    %cst_158 = arith.constant 0.000000e+00 : f32
    %297 = vector.broadcast %cst_158 : f32 to vector<16x2x9xf32>
    %298 = arith.cmpf olt, %258, %297 : vector<16x2x9xf32>
    %cst_159 = arith.constant 0.000000e+00 : f32
    %299 = vector.broadcast %cst_159 : f32 to vector<16x2x9xf32>
    %300 = arith.subf %299, %296 : vector<16x2x9xf32>
    %301 = arith.select %298, %300, %296 : vector<16x2x9xi1>, vector<16x2x9xf32>
    %cst_160 = arith.constant 3.4557519 : f32
    %302 = vector.broadcast %cst_160 : f32 to vector<16x2x9xf32>
    %303 = arith.addf %301, %302 : vector<16x2x9xf32>
    %304 = math.log %303 : vector<16x2x9xf32>
    %305 = arith.addf %260, %304 : vector<16x2x9xf32>
    %c4_161 = arith.constant 4 : index
    %c0_162 = arith.constant 0 : index
    %c0_163 = arith.constant 0 : index
    %c0_164 = arith.constant 0 : index
    %306 = vector.load %arg10[%c4_161, %c0_162, %c0_163, %c0_164] : memref<6x16x2x9xf32, #tpu.memory_space<vmem>>, vector<1x16x2x9xf32>
    %307 = vector.shape_cast %306 : vector<1x16x2x9xf32> to vector<16x2x9xf32>
    %308 = vector.shape_cast %305 : vector<16x2x9xf32> to vector<1x16x2x9xf32>
    tpu.vector_store %arg10[%c4_161, %c0_162, %c0_163, %c0_164], %308 {strides = array<i32>} : memref<6x16x2x9xf32, #tpu.memory_space<vmem>>, vector<1x16x2x9xf32>,
    %c0_165 = arith.constant 0 : index
    %c5 = arith.constant 5 : index
    %c0_166 = arith.constant 0 : index
    %c0_167 = arith.constant 0 : index
    %309 = vector.load %arg3[%c0_165, %c5, %c0_166, %c0_167] : memref<1x6x1x1xf32, #tpu.memory_space<vmem>>, vector<1x1x1x1xf32>
    %310 = vector.shape_cast %309 : vector<1x1x1x1xf32> to vector<1x1xf32>
    %c0_168 = arith.constant 0 : index
    %c5_169 = arith.constant 5 : index
    %c0_170 = arith.constant 0 : index
    %c0_171 = arith.constant 0 : index
    %311 = vector.load %arg4[%c0_168, %c5_169, %c0_170, %c0_171] : memref<1x6x1x1xf32, #tpu.memory_space<vmem>>, vector<1x1x1x1xf32>
    %312 = vector.shape_cast %311 : vector<1x1x1x1xf32> to vector<1x1xf32>
    %313 = vector.shape_cast %310 : vector<1x1xf32> to vector<1x1x1xf32>
    %314 = vector.broadcast %313 : vector<1x1x1xf32> to vector<16x2x9xf32>
    %315 = arith.mulf %248, %314 : vector<16x2x9xf32>
    %316 = vector.shape_cast %312 : vector<1x1xf32> to vector<1x1x1xf32>
    %317 = vector.broadcast %316 : vector<1x1x1xf32> to vector<16x2x9xf32>
    %318 = arith.subf %315, %317 : vector<16x2x9xf32>
    %c5_172 = arith.constant 5 : index
    %c0_173 = arith.constant 0 : index
    %c0_174 = arith.constant 0 : index
    %c0_175 = arith.constant 0 : index
    %319 = vector.load %arg10[%c5_172, %c0_173, %c0_174, %c0_175] : memref<6x16x2x9xf32, #tpu.memory_space<vmem>>, vector<1x16x2x9xf32>
    %320 = vector.shape_cast %319 : vector<1x16x2x9xf32> to vector<16x2x9xf32>
    %321 = math.absf %318 : vector<16x2x9xf32>
    %cst_176 = arith.constant 2.41421366 : f32
    %322 = vector.broadcast %cst_176 : f32 to vector<16x2x9xf32>
    %323 = arith.cmpf ogt, %321, %322 : vector<16x2x9xf32>
    %cst_177 = arith.constant 0.414213568 : f32
    %324 = vector.broadcast %cst_177 : f32 to vector<16x2x9xf32>
    %325 = arith.cmpf ogt, %321, %324 : vector<16x2x9xf32>
    %cst_178 = arith.constant 1.000000e+00 : f32
    %326 = vector.broadcast %cst_178 : f32 to vector<16x2x9xf32>
    %327 = arith.subf %321, %326 : vector<16x2x9xf32>
    %328 = arith.select %325, %327, %321 : vector<16x2x9xi1>, vector<16x2x9xf32>
    %cst_179 = arith.constant -1.000000e+00 : f32
    %329 = vector.broadcast %cst_179 : f32 to vector<16x2x9xf32>
    %330 = arith.select %323, %329, %328 : vector<16x2x9xi1>, vector<16x2x9xf32>
    %cst_180 = arith.constant 1.000000e+00 : f32
    %331 = vector.broadcast %cst_180 : f32 to vector<16x2x9xf32>
    %332 = arith.addf %321, %331 : vector<16x2x9xf32>
    %cst_181 = arith.constant 1.000000e+00 : f32
    %333 = vector.broadcast %cst_181 : f32 to vector<16x2x9xf32>
    %334 = arith.select %325, %332, %333 : vector<16x2x9xi1>, vector<16x2x9xf32>
    %335 = arith.select %323, %321, %334 : vector<16x2x9xi1>, vector<16x2x9xf32>
    %336 = arith.divf %330, %335 : vector<16x2x9xf32>
    %cst_182 = arith.constant 0.785398185 : f32
    %cst_183 = arith.constant 0.000000e+00 : f32
    %337 = vector.broadcast %cst_182 : f32 to vector<16x2x9xf32>
    %338 = vector.broadcast %cst_183 : f32 to vector<16x2x9xf32>
    %339 = arith.select %325, %337, %338 : vector<16x2x9xi1>, vector<16x2x9xf32>
    %cst_184 = arith.constant 1.57079637 : f32
    %340 = vector.broadcast %cst_184 : f32 to vector<16x2x9xf32>
    %341 = arith.select %323, %340, %339 : vector<16x2x9xi1>, vector<16x2x9xf32>
    %342 = arith.mulf %336, %336 : vector<16x2x9xf32>
    %cst_185 = arith.constant 0.0805374458 : f32
    %343 = vector.broadcast %cst_185 : f32 to vector<16x2x9xf32>
    %344 = arith.mulf %343, %342 : vector<16x2x9xf32>
    %cst_186 = arith.constant 0.138776854 : f32
    %345 = vector.broadcast %cst_186 : f32 to vector<16x2x9xf32>
    %346 = arith.subf %344, %345 : vector<16x2x9xf32>
    %347 = arith.mulf %346, %342 : vector<16x2x9xf32>
    %cst_187 = arith.constant 0.199777111 : f32
    %348 = vector.broadcast %cst_187 : f32 to vector<16x2x9xf32>
    %349 = arith.addf %347, %348 : vector<16x2x9xf32>
    %350 = arith.mulf %349, %342 : vector<16x2x9xf32>
    %cst_188 = arith.constant 0.333329499 : f32
    %351 = vector.broadcast %cst_188 : f32 to vector<16x2x9xf32>
    %352 = arith.subf %350, %351 : vector<16x2x9xf32>
    %353 = arith.mulf %352, %342 : vector<16x2x9xf32>
    %354 = arith.mulf %353, %336 : vector<16x2x9xf32>
    %355 = arith.addf %354, %336 : vector<16x2x9xf32>
    %356 = arith.addf %341, %355 : vector<16x2x9xf32>
    %cst_189 = arith.constant 0.000000e+00 : f32
    %357 = vector.broadcast %cst_189 : f32 to vector<16x2x9xf32>
    %358 = arith.cmpf olt, %318, %357 : vector<16x2x9xf32>
    %cst_190 = arith.constant 0.000000e+00 : f32
    %359 = vector.broadcast %cst_190 : f32 to vector<16x2x9xf32>
    %360 = arith.subf %359, %356 : vector<16x2x9xf32>
    %361 = arith.select %358, %360, %356 : vector<16x2x9xi1>, vector<16x2x9xf32>
    %cst_191 = arith.constant 3.4557519 : f32
    %362 = vector.broadcast %cst_191 : f32 to vector<16x2x9xf32>
    %363 = arith.addf %361, %362 : vector<16x2x9xf32>
    %364 = math.log %363 : vector<16x2x9xf32>
    %365 = arith.addf %320, %364 : vector<16x2x9xf32>
    %c5_192 = arith.constant 5 : index
    %c0_193 = arith.constant 0 : index
    %c0_194 = arith.constant 0 : index
    %c0_195 = arith.constant 0 : index
    %366 = vector.load %arg10[%c5_192, %c0_193, %c0_194, %c0_195] : memref<6x16x2x9xf32, #tpu.memory_space<vmem>>, vector<1x16x2x9xf32>
    %367 = vector.shape_cast %366 : vector<1x16x2x9xf32> to vector<16x2x9xf32>
    %368 = vector.shape_cast %365 : vector<16x2x9xf32> to vector<1x16x2x9xf32>
    tpu.vector_store %arg10[%c5_192, %c0_193, %c0_194, %c0_195], %368 {strides = array<i32>} : memref<6x16x2x9xf32, #tpu.memory_space<vmem>>, vector<1x16x2x9xf32>,
    %c24_i32 = arith.constant 24 : i32
    %369 = arith.cmpi eq, %arg1, %c24_i32 : i32
    %370 = arith.extui %369 : i1 to i32
    %c0_i32_196 = arith.constant 0 : i32
    %371 = arith.cmpi ne, %370, %c0_i32_196 : i32
    scf.if %371 {
      %c0_197 = arith.constant 0 : index
      %c0_198 = arith.constant 0 : index
      %372 = vector.load %arg6[%c0_197, %c0_198] : memref<1x128xf32, #tpu.memory_space<vmem>>, vector<1x128xf32>
      %c0_199 = arith.constant 0 : index
      %c0_200 = arith.constant 0 : index
      %c0_201 = arith.constant 0 : index
      %c0_202 = arith.constant 0 : index
      %373 = vector.load %arg10[%c0_199, %c0_200, %c0_201, %c0_202] : memref<6x16x2x9xf32, #tpu.memory_space<vmem>>, vector<1x16x2x9xf32>
      %374 = vector.shape_cast %373 : vector<1x16x2x9xf32> to vector<16x2x9xf32>
      %cst_203 = arith.constant dense<0xFF800000> : vector<2x9xf32>
      %375 = vector.multi_reduction <maximumf>, %374, %cst_203 [0] : vector<16x2x9xf32> to vector<2x9xf32>
      %c0_204 = arith.constant 0 : index
      %c0_205 = arith.constant 0 : index
      %c0_206 = arith.constant 0 : index
      %376 = vector.load %arg5[%c0_204, %c0_205, %c0_206] : memref<6x9x128xf32, #tpu.memory_space<vmem>>, vector<1x9x128xf32>
      %377 = vector.shape_cast %376 : vector<1x9x128xf32> to vector<9x128xf32>
      %cst_207 = arith.constant dense<0.000000e+00> : vector<2x128xf32>
      %378 = tpu.matmul %375, %377, %cst_207 {dimension_numbers = #tpu.dot_dimension_numbers<[1], [0], [0], [1], [0, 0, 1, 1], [], []>} : vector<2x9xf32>, vector<9x128xf32>, vector<2x128xf32> -> vector<2x128xf32>
      %379 = vector.broadcast %372 : vector<1x128xf32> to vector<2x128xf32>
      %380 = arith.addf %379, %378 : vector<2x128xf32>
      %c1_208 = arith.constant 1 : index
      %c0_209 = arith.constant 0 : index
      %c0_210 = arith.constant 0 : index
      %c0_211 = arith.constant 0 : index
      %381 = vector.load %arg10[%c1_208, %c0_209, %c0_210, %c0_211] : memref<6x16x2x9xf32, #tpu.memory_space<vmem>>, vector<1x16x2x9xf32>
      %382 = vector.shape_cast %381 : vector<1x16x2x9xf32> to vector<16x2x9xf32>
      %cst_212 = arith.constant dense<0xFF800000> : vector<2x9xf32>
      %383 = vector.multi_reduction <maximumf>, %382, %cst_212 [0] : vector<16x2x9xf32> to vector<2x9xf32>
      %c1_213 = arith.constant 1 : index
      %c0_214 = arith.constant 0 : index
      %c0_215 = arith.constant 0 : index
      %384 = vector.load %arg5[%c1_213, %c0_214, %c0_215] : memref<6x9x128xf32, #tpu.memory_space<vmem>>, vector<1x9x128xf32>
      %385 = vector.shape_cast %384 : vector<1x9x128xf32> to vector<9x128xf32>
      %cst_216 = arith.constant dense<0.000000e+00> : vector<2x128xf32>
      %386 = tpu.matmul %383, %385, %cst_216 {dimension_numbers = #tpu.dot_dimension_numbers<[1], [0], [0], [1], [0, 0, 1, 1], [], []>} : vector<2x9xf32>, vector<9x128xf32>, vector<2x128xf32> -> vector<2x128xf32>
      %387 = arith.addf %380, %386 : vector<2x128xf32>
      %c2_217 = arith.constant 2 : index
      %c0_218 = arith.constant 0 : index
      %c0_219 = arith.constant 0 : index
      %c0_220 = arith.constant 0 : index
      %388 = vector.load %arg10[%c2_217, %c0_218, %c0_219, %c0_220] : memref<6x16x2x9xf32, #tpu.memory_space<vmem>>, vector<1x16x2x9xf32>
      %389 = vector.shape_cast %388 : vector<1x16x2x9xf32> to vector<16x2x9xf32>
      %cst_221 = arith.constant dense<0xFF800000> : vector<2x9xf32>
      %390 = vector.multi_reduction <maximumf>, %389, %cst_221 [0] : vector<16x2x9xf32> to vector<2x9xf32>
      %c2_222 = arith.constant 2 : index
      %c0_223 = arith.constant 0 : index
      %c0_224 = arith.constant 0 : index
      %391 = vector.load %arg5[%c2_222, %c0_223, %c0_224] : memref<6x9x128xf32, #tpu.memory_space<vmem>>, vector<1x9x128xf32>
      %392 = vector.shape_cast %391 : vector<1x9x128xf32> to vector<9x128xf32>
      %cst_225 = arith.constant dense<0.000000e+00> : vector<2x128xf32>
      %393 = tpu.matmul %390, %392, %cst_225 {dimension_numbers = #tpu.dot_dimension_numbers<[1], [0], [0], [1], [0, 0, 1, 1], [], []>} : vector<2x9xf32>, vector<9x128xf32>, vector<2x128xf32> -> vector<2x128xf32>
      %394 = arith.addf %387, %393 : vector<2x128xf32>
      %c3_226 = arith.constant 3 : index
      %c0_227 = arith.constant 0 : index
      %c0_228 = arith.constant 0 : index
      %c0_229 = arith.constant 0 : index
      %395 = vector.load %arg10[%c3_226, %c0_227, %c0_228, %c0_229] : memref<6x16x2x9xf32, #tpu.memory_space<vmem>>, vector<1x16x2x9xf32>
      %396 = vector.shape_cast %395 : vector<1x16x2x9xf32> to vector<16x2x9xf32>
      %cst_230 = arith.constant dense<0xFF800000> : vector<2x9xf32>
      %397 = vector.multi_reduction <maximumf>, %396, %cst_230 [0] : vector<16x2x9xf32> to vector<2x9xf32>
      %c3_231 = arith.constant 3 : index
      %c0_232 = arith.constant 0 : index
      %c0_233 = arith.constant 0 : index
      %398 = vector.load %arg5[%c3_231, %c0_232, %c0_233] : memref<6x9x128xf32, #tpu.memory_space<vmem>>, vector<1x9x128xf32>
      %399 = vector.shape_cast %398 : vector<1x9x128xf32> to vector<9x128xf32>
      %cst_234 = arith.constant dense<0.000000e+00> : vector<2x128xf32>
      %400 = tpu.matmul %397, %399, %cst_234 {dimension_numbers = #tpu.dot_dimension_numbers<[1], [0], [0], [1], [0, 0, 1, 1], [], []>} : vector<2x9xf32>, vector<9x128xf32>, vector<2x128xf32> -> vector<2x128xf32>
      %401 = arith.addf %394, %400 : vector<2x128xf32>
      %c4_235 = arith.constant 4 : index
      %c0_236 = arith.constant 0 : index
      %c0_237 = arith.constant 0 : index
      %c0_238 = arith.constant 0 : index
      %402 = vector.load %arg10[%c4_235, %c0_236, %c0_237, %c0_238] : memref<6x16x2x9xf32, #tpu.memory_space<vmem>>, vector<1x16x2x9xf32>
      %403 = vector.shape_cast %402 : vector<1x16x2x9xf32> to vector<16x2x9xf32>
      %cst_239 = arith.constant dense<0xFF800000> : vector<2x9xf32>
      %404 = vector.multi_reduction <maximumf>, %403, %cst_239 [0] : vector<16x2x9xf32> to vector<2x9xf32>
      %c4_240 = arith.constant 4 : index
      %c0_241 = arith.constant 0 : index
      %c0_242 = arith.constant 0 : index
      %405 = vector.load %arg5[%c4_240, %c0_241, %c0_242] : memref<6x9x128xf32, #tpu.memory_space<vmem>>, vector<1x9x128xf32>
      %406 = vector.shape_cast %405 : vector<1x9x128xf32> to vector<9x128xf32>
      %cst_243 = arith.constant dense<0.000000e+00> : vector<2x128xf32>
      %407 = tpu.matmul %404, %406, %cst_243 {dimension_numbers = #tpu.dot_dimension_numbers<[1], [0], [0], [1], [0, 0, 1, 1], [], []>} : vector<2x9xf32>, vector<9x128xf32>, vector<2x128xf32> -> vector<2x128xf32>
      %408 = arith.addf %401, %407 : vector<2x128xf32>
      %c5_244 = arith.constant 5 : index
      %c0_245 = arith.constant 0 : index
      %c0_246 = arith.constant 0 : index
      %c0_247 = arith.constant 0 : index
      %409 = vector.load %arg10[%c5_244, %c0_245, %c0_246, %c0_247] : memref<6x16x2x9xf32, #tpu.memory_space<vmem>>, vector<1x16x2x9xf32>
      %410 = vector.shape_cast %409 : vector<1x16x2x9xf32> to vector<16x2x9xf32>
      %cst_248 = arith.constant dense<0xFF800000> : vector<2x9xf32>
      %411 = vector.multi_reduction <maximumf>, %410, %cst_248 [0] : vector<16x2x9xf32> to vector<2x9xf32>
      %c5_249 = arith.constant 5 : index
      %c0_250 = arith.constant 0 : index
      %c0_251 = arith.constant 0 : index
      %412 = vector.load %arg5[%c5_249, %c0_250, %c0_251] : memref<6x9x128xf32, #tpu.memory_space<vmem>>, vector<1x9x128xf32>
      %413 = vector.shape_cast %412 : vector<1x9x128xf32> to vector<9x128xf32>
      %cst_252 = arith.constant dense<0.000000e+00> : vector<2x128xf32>
      %414 = tpu.matmul %411, %413, %cst_252 {dimension_numbers = #tpu.dot_dimension_numbers<[1], [0], [0], [1], [0, 0, 1, 1], [], []>} : vector<2x9xf32>, vector<9x128xf32>, vector<2x128xf32> -> vector<2x128xf32>
      %415 = arith.addf %408, %414 : vector<2x128xf32>
      %cst_253 = arith.constant 0.000000e+00 : f32
      %416 = vector.broadcast %cst_253 : f32 to vector<2x128xf32>
      %417 = arith.maximumf %415, %416 : vector<2x128xf32>
      %c0_254 = arith.constant 0 : index
      %c0_255 = arith.constant 0 : index
      %418 = vector.load %arg7[%c0_254, %c0_255] : memref<128x8xf32, #tpu.memory_space<vmem>>, vector<128x8xf32>
      %cst_256 = arith.constant dense<0.000000e+00> : vector<2x8xf32>
      %419 = tpu.matmul %417, %418, %cst_256 {dimension_numbers = #tpu.dot_dimension_numbers<[1], [0], [0], [1], [0, 0, 1, 1], [], []>} : vector<2x128xf32>, vector<128x8xf32>, vector<2x8xf32> -> vector<2x8xf32>
      %c0_257 = arith.constant 0 : index
      %c0_258 = arith.constant 0 : index
      %420 = vector.load %arg8[%c0_257, %c0_258] : memref<1x8xf32, #tpu.memory_space<vmem>>, vector<1x8xf32>
      %421 = vector.broadcast %420 : vector<1x8xf32> to vector<2x8xf32>
      %422 = arith.addf %419, %421 : vector<2x8xf32>
      %c0_259 = arith.constant 0 : index
      %c0_260 = arith.constant 0 : index
      %423 = vector.load %arg9[%c0_259, %c0_260] : memref<2x8xf32, #tpu.memory_space<vmem>>, vector<2x8xf32>
      tpu.vector_store %arg9[%c0_259, %c0_260], %422 {strides = array<i32>} : memref<2x8xf32, #tpu.memory_space<vmem>>, vector<2x8xf32>,
    } else {
    }
    return
  }
  func.func @transform_0(%arg0: i32, %arg1: i32) -> (i32, i32, i32, i32) {
    %c0_i32 = arith.constant 0 : i32
    %c0_i32_0 = arith.constant 0 : i32
    %c0_i32_1 = arith.constant 0 : i32
    return %arg1, %c0_i32, %arg0, %c0_i32_0 : i32, i32, i32, i32
  }
  func.func @transform_1(%arg0: i32, %arg1: i32) -> (i32, i32, i32, i32) {
    %c0_i32 = arith.constant 0 : i32
    %c0_i32_0 = arith.constant 0 : i32
    %c0_i32_1 = arith.constant 0 : i32
    %c0_i32_2 = arith.constant 0 : i32
    return %arg1, %c0_i32, %c0_i32_0, %c0_i32_1 : i32, i32, i32, i32
  }
  func.func @transform_2(%arg0: i32, %arg1: i32) -> (i32, i32, i32, i32) {
    %c0_i32 = arith.constant 0 : i32
    %c0_i32_0 = arith.constant 0 : i32
    %c0_i32_1 = arith.constant 0 : i32
    %c0_i32_2 = arith.constant 0 : i32
    return %arg1, %c0_i32, %c0_i32_0, %c0_i32_1 : i32, i32, i32, i32
  }
  func.func @transform_3(%arg0: i32, %arg1: i32) -> (i32, i32, i32) {
    %c0_i32 = arith.constant 0 : i32
    %c0_i32_0 = arith.constant 0 : i32
    %c0_i32_1 = arith.constant 0 : i32
    %c0_i32_2 = arith.constant 0 : i32
    return %c0_i32, %c0_i32_0, %c0_i32_1 : i32, i32, i32
  }
  func.func @transform_4(%arg0: i32, %arg1: i32) -> (i32, i32) {
    %c0_i32 = arith.constant 0 : i32
    %c0_i32_0 = arith.constant 0 : i32
    %c0_i32_1 = arith.constant 0 : i32
    return %c0_i32, %c0_i32_0 : i32, i32
  }
  func.func @transform_5(%arg0: i32, %arg1: i32) -> (i32, i32) {
    %c0_i32 = arith.constant 0 : i32
    %c0_i32_0 = arith.constant 0 : i32
    %c0_i32_1 = arith.constant 0 : i32
    return %c0_i32, %c0_i32_0 : i32, i32
  }
  func.func @transform_6(%arg0: i32, %arg1: i32) -> (i32, i32) {
    %c0_i32 = arith.constant 0 : i32
    %c0_i32_0 = arith.constant 0 : i32
    %c0_i32_1 = arith.constant 0 : i32
    return %c0_i32, %c0_i32_0 : i32, i32
  }
  func.func @transform_7(%arg0: i32, %arg1: i32) -> (i32, i32) {
    %c0_i32 = arith.constant 0 : i32
    %c0_i32_0 = arith.constant 0 : i32
    return %arg0, %c0_i32 : i32, i32
  }
}

</mosaic_0001>

<llo_original>
// kernel: mdpn3_forward.1
$region0: #{mdpn3_forward.1}
  #allocation0 [shape = 'u32[]', space=smem, size = 0x4, offset = 0x4, fixed_abs, tag = 'smem constant byte address 0x4 - core index']
  #allocation1 [shape = 'u32[144,128]{1,0:T(1,128)}', space=vmem, size = 0x12000, scoped, tag = 'internal scratch']
  #allocation2 [shape = 'f32[6,16,2,9]{3,2,1,0:T(2,128)}', space=vmem, size = 0x18000, scoped, tag = 'scratch operand']
  %s0 = inlined_call_operand.vmem [shape: f32[25,48,2,9], index: 0, kind: input, shape index: {}]
  %s1 = inlined_call_operand.vmem [shape: f32[25,6,1,1], index: 1, kind: input, shape index: {}]
  %s2 = inlined_call_operand.vmem [shape: f32[25,6,1,1], index: 2, kind: input, shape index: {}]
  %s3 = inlined_call_operand.vmem [shape: f32[6,9,128], index: 3, kind: input, shape index: {}]
  %s4 = inlined_call_operand.vmem [shape: f32[1,128], index: 4, kind: input, shape index: {}]
  %s5 = inlined_call_operand.vmem [shape: f32[128,8], index: 5, kind: input, shape index: {}]
  %s6 = inlined_call_operand.vmem [shape: f32[1,8], index: 6, kind: input, shape index: {}]
  %s7 = inlined_call_operand.hbm [shape: f32[2,8], index: 7, kind: output, shape index: {}]
  %s8 = sld [smem:[#allocation0]]
  $region69: #{mdpn3_forward.1} parent=0
    _
  %s10 = ssub.s32 1, %s8
  %s11 = scalar_select 0, %s10, %s8
  $region1: #{mdpn3_forward.1} parent=0
    #allocation3 [shape = 'u8[1024]{0}', space=vmem, size = 0x400, scoped, tag = 'output window, operand 0, single buffered']
    #allocation4 [shape = 's32[2]{0}', space=sflag, size = 0x8, scoped, tag = 'scoped memory for mdpn3_forward.1']
    %12 = vsyncpa [#allocation4], 0
    loop: start=0, step=1, limit=27
    $region2: #{mdpn3_forward.1} parent=1 // loop_pre_header
      _
    $region3: #{mdpn3_forward.1} parent=1 // loop_header
      %s14 = sphi 0, %s18
      %p15 = scmp.ge.s32.totalorder %s14, 27
      %s21 = sphi 0, %s33
      %s22 = sphi 0, %s29
      %s23 = sphi 0, %s21
      %s24 = sphi 0, %s22
      %s25 = sphi 0, %s23
      %s26 = sphi 0, %s24
      %s38 = sphi 0, %s40
      %s41 = sphi 0, %s38
      %s42 = sphi 0, %s41
      %s58 = sphi 0, %s42
      %s64 = sphi 0, %s66
      %s67 = sphi 0, %s64
      %s68 = sphi 0, %s67
      %s84 = sphi 0, %s68
      %s90 = sphi 0, %s92
      %s93 = sphi 0, %s90
      %s94 = sphi 0, %s93
      %s110 = sphi 0, %s94
      %s114 = sphi 0, %s114
      %s116 = sphi 0, %s114
      %s117 = sphi 0, %s116
      %s131 = sphi 0, %s117
      %s135 = sphi 0, %s135
      %s137 = sphi 0, %s135
      %s138 = sphi 0, %s137
      %s152 = sphi 0, %s138
      %s156 = sphi 0, %s156
      %s158 = sphi 0, %s156
      %s159 = sphi 0, %s158
      %s173 = sphi 0, %s159
      %s177 = sphi 0, %s177
      %s179 = sphi 0, %s177
      %s180 = sphi 0, %s179
      %s194 = sphi 0, %s180
      %s200 = sphi 0, %s202
      %s203 = sphi 0, %s200
      %s204 = sphi 0, %s203
      %s220 = sphi 0, %s204
    $region4: #{mdpn3_forward.1} parent=1 // loop_header_branch
      %17 = sbr.rel (%p15) target = $region8
    $region5: #{mdpn3_forward.1} parent=1 // loop_body
      %s19 = ssub.s32 %s14, 1
      %s20 = ssub.s32 %s14, 2
      %s27 = sadd.s32 1, %s22
      %p28 = scmp.ge.s32.totalorder %s27, 25
      %s29 = scalar_select %p28, 0, %s27
      %s30 = sadd.s32 1, %s21
      %s31 = scalar_select %p28, %s30, %s21
      %p32 = scmp.ge.s32.totalorder %s31, 1
      %s33 = scalar_select %p32, 0, %s31
      %s34 = ssub.s32 %s22, %s29
      %s35 = ssub.s32 %s21, %s33
      %s36 = sor.u32 %s34, %s35
      %p37 = scmp.eq.s32.totalorder %s36, 0
      %s39 = sadd.s32 %s38, 1
      %s40 = scalar_select %p37, %s38, %s39
      %p43 = pneg %p37
      %p44 = scmp.eq.s32.totalorder %s14, 24
      %p45 = por %p43, %p44
      %p46 = scmp.ne.s32.totalorder %s38, %s41
      %p47 = scmp.eq.s32.totalorder %s14, 0
      %p48 = por %p46, %p47
      %p49 = scmp.ne.s32.totalorder %s38, %s41
      %p50 = scmp.eq.s32.totalorder %s19, 24
      %p51 = por %p49, %p50
      %p52 = scmp.ne.s32.totalorder %s41, %s42
      %p53 = scmp.eq.s32.totalorder %s19, 0
      %p54 = por %p52, %p53
      %p55 = scmp.ne.s32.totalorder %s41, %s42
      %p56 = scmp.eq.s32.totalorder %s20, 24
      %p57 = por %p55, %p56
      %p59 = scmp.ne.s32.totalorder %s42, %s58
      %p60 = scmp.eq.s32.totalorder %s20, 0
      %p61 = por %p59, %p60
      %s62 = ssub.s32 %s22, %s29
      %p63 = scmp.eq.s32.totalorder %s62, 0
      %s65 = sadd.s32 %s64, 1
      %s66 = scalar_select %p63, %s64, %s65
      %p69 = pneg %p63
      %p70 = scmp.eq.s32.totalorder %s14, 24
      %p71 = por %p69, %p70
      %p72 = scmp.ne.s32.totalorder %s64, %s67
      %p73 = scmp.eq.s32.totalorder %s14, 0
      %p74 = por %p72, %p73
      %p75 = scmp.ne.s32.totalorder %s64, %s67
      %p76 = scmp.eq.s32.totalorder %s19, 24
      %p77 = por %p75, %p76
      %p78 = scmp.ne.s32.totalorder %s67, %s68
      %p79 = scmp.eq.s32.totalorder %s19, 0
      %p80 = por %p78, %p79
      %p81 = scmp.ne.s32.totalorder %s67, %s68
      %p82 = scmp.eq.s32.totalorder %s20, 24
      %p83 = por %p81, %p82
      %p85 = scmp.ne.s32.totalorder %s68, %s84
      %p86 = scmp.eq.s32.totalorder %s20, 0
      %p87 = por %p85, %p86
      %s88 = ssub.s32 %s22, %s29
      %p89 = scmp.eq.s32.totalorder %s88, 0
      %s91 = sadd.s32 %s90, 1
      %s92 = scalar_select %p89, %s90, %s91
      %p95 = pneg %p89
      %p96 = scmp.eq.s32.totalorder %s14, 24
      %p97 = por %p95, %p96
      %p98 = scmp.ne.s32.totalorder %s90, %s93
      %p99 = scmp.eq.s32.totalorder %s14, 0
      %p100 = por %p98, %p99
      %p101 = scmp.ne.s32.totalorder %s90, %s93
      %p102 = scmp.eq.s32.totalorder %s19, 24
      %p103 = por %p101, %p102
      %p104 = scmp.ne.s32.totalorder %s93, %s94
      %p105 = scmp.eq.s32.totalorder %s19, 0
      %p106 = por %p104, %p105
      %p107 = scmp.ne.s32.totalorder %s93, %s94
      %p108 = scmp.eq.s32.totalorder %s20, 24
      %p109 = por %p107, %p108
      %p111 = scmp.ne.s32.totalorder %s94, %s110
      %p112 = scmp.eq.s32.totalorder %s20, 0
      %p113 = por %p111, %p112
      %s115 = sadd.s32 %s114, 1
      %p118 = scmp.eq.s32.totalorder %s14, 24
      %p119 = scmp.ne.s32.totalorder %s114, %s116
      %p120 = scmp.eq.s32.totalorder %s14, 0
      %p121 = por %p119, %p120
      %p122 = scmp.ne.s32.totalorder %s114, %s116
      %p123 = scmp.eq.s32.totalorder %s19, 24
      %p124 = por %p122, %p123
      %p125 = scmp.ne.s32.totalorder %s116, %s117
      %p126 = scmp.eq.s32.totalorder %s19, 0
      %p127 = por %p125, %p126
      %p128 = scmp.ne.s32.totalorder %s116, %s117
      %p129 = scmp.eq.s32.totalorder %s20, 24
      %p130 = por %p128, %p129
      %p132 = scmp.ne.s32.totalorder %s117, %s131
      %p133 = scmp.eq.s32.totalorder %s20, 0
      %p134 = por %p132, %p133
      %s136 = sadd.s32 %s135, 1
      %p139 = scmp.eq.s32.totalorder %s14, 24
      %p140 = scmp.ne.s32.totalorder %s135, %s137
      %p141 = scmp.eq.s32.totalorder %s14, 0
      %p142 = por %p140, %p141
      %p143 = scmp.ne.s32.totalorder %s135, %s137
      %p144 = scmp.eq.s32.totalorder %s19, 24
      %p145 = por %p143, %p144
      %p146 = scmp.ne.s32.totalorder %s137, %s138
      %p147 = scmp.eq.s32.totalorder %s19, 0
      %p148 = por %p146, %p147
      %p149 = scmp.ne.s32.totalorder %s137, %s138
      %p150 = scmp.eq.s32.totalorder %s20, 24
      %p151 = por %p149, %p150
      %p153 = scmp.ne.s32.totalorder %s138, %s152
      %p154 = scmp.eq.s32.totalorder %s20, 0
      %p155 = por %p153, %p154
      %s157 = sadd.s32 %s156, 1
      %p160 = scmp.eq.s32.totalorder %s14, 24
      %p161 = scmp.ne.s32.totalorder %s156, %s158
      %p162 = scmp.eq.s32.totalorder %s14, 0
      %p163 = por %p161, %p162
      %p164 = scmp.ne.s32.totalorder %s156, %s158
      %p165 = scmp.eq.s32.totalorder %s19, 24
      %p166 = por %p164, %p165
      %p167 = scmp.ne.s32.totalorder %s158, %s159
      %p168 = scmp.eq.s32.totalorder %s19, 0
      %p169 = por %p167, %p168
      %p170 = scmp.ne.s32.totalorder %s158, %s159
      %p171 = scmp.eq.s32.totalorder %s20, 24
      %p172 = por %p170, %p171
      %p174 = scmp.ne.s32.totalorder %s159, %s173
      %p175 = scmp.eq.s32.totalorder %s20, 0
      %p176 = por %p174, %p175
      %s178 = sadd.s32 %s177, 1
      %p181 = scmp.eq.s32.totalorder %s14, 24
      %p182 = scmp.ne.s32.totalorder %s177, %s179
      %p183 = scmp.eq.s32.totalorder %s14, 0
      %p184 = por %p182, %p183
      %p185 = scmp.ne.s32.totalorder %s177, %s179
      %p186 = scmp.eq.s32.totalorder %s19, 24
      %p187 = por %p185, %p186
      %p188 = scmp.ne.s32.totalorder %s179, %s180
      %p189 = scmp.eq.s32.totalorder %s19, 0
      %p190 = por %p188, %p189
      %p191 = scmp.ne.s32.totalorder %s179, %s180
      %p192 = scmp.eq.s32.totalorder %s20, 24
      %p193 = por %p191, %p192
      %p195 = scmp.ne.s32.totalorder %s180, %s194
      %p196 = scmp.eq.s32.totalorder %s20, 0
      %p197 = por %p195, %p196
      %s198 = ssub.s32 %s21, %s33
      %p199 = scmp.eq.s32.totalorder %s198, 0
      %s201 = sadd.s32 %s200, 1
      %s202 = scalar_select %p199, %s200, %s201
      %p205 = pneg %p199
      %p206 = scmp.eq.s32.totalorder %s14, 24
      %p207 = por %p205, %p206
      %p208 = scmp.ne.s32.totalorder %s200, %s203
      %p209 = scmp.eq.s32.totalorder %s14, 0
      %p210 = por %p208, %p209
      %p211 = scmp.ne.s32.totalorder %s200, %s203
      %p212 = scmp.eq.s32.totalorder %s19, 24
      %p213 = por %p211, %p212
      %p214 = scmp.ne.s32.totalorder %s203, %s204
      %p215 = scmp.eq.s32.totalorder %s19, 0
      %p216 = por %p214, %p215
      %p217 = scmp.ne.s32.totalorder %s203, %s204
      %p218 = scmp.eq.s32.totalorder %s20, 24
      %p219 = por %p217, %p218
      %p221 = scmp.ne.s32.totalorder %s204, %s220
      %p222 = scmp.eq.s32.totalorder %s20, 0
      %p223 = por %p221, %p222
      %p224 = scmp.le.s32.totalorder 1, %s14
      %p225 = scmp.lt.s32.totalorder %s14, 26
      %p226 = pnand %p224, %p225
      %p227 = pneg %p226
      // Predicated region
      $region9: #{mdpn3_forward.1} parent=5 // pred_check
        _
      $region10: #{mdpn3_forward.1} parent=5 // pred_check_branch
        %229 = sbr.rel (%p226) target = $region12
      $region11: #{mdpn3_forward.1} parent=5 // pred_region
        %s230 = ssub.s32 %s14, 1
        // Predicated region
        $region13: #{mdpn3_forward.1} parent=11 // pred_check
          %p231 = pneg %p127
        $region14: #{mdpn3_forward.1} parent=11 // pred_check_branch
          %233 = sbr.rel (%p231) target = $region16
        $region15: #{mdpn3_forward.1} parent=11 // pred_region
          _
        $region16: #{mdpn3_forward.1} parent=11 // pred_fallthru
          _
        // Predicated region
        $region17: #{mdpn3_forward.1} parent=11 // pred_check
          %p234 = pneg %p148
        $region18: #{mdpn3_forward.1} parent=11 // pred_check_branch
          %236 = sbr.rel (%p234) target = $region20
        $region19: #{mdpn3_forward.1} parent=11 // pred_region
          _
        $region20: #{mdpn3_forward.1} parent=11 // pred_fallthru
          _
        // Predicated region
        $region21: #{mdpn3_forward.1} parent=11 // pred_check
          %p237 = pneg %p169
        $region22: #{mdpn3_forward.1} parent=11 // pred_check_branch
          %239 = sbr.rel (%p237) target = $region24
        $region23: #{mdpn3_forward.1} parent=11 // pred_region
          _
        $region24: #{mdpn3_forward.1} parent=11 // pred_fallthru
          _
        // Predicated region
        $region25: #{mdpn3_forward.1} parent=11 // pred_check
          %p240 = pneg %p190
        $region26: #{mdpn3_forward.1} parent=11 // pred_check_branch
          %242 = sbr.rel (%p240) target = $region28
        $region27: #{mdpn3_forward.1} parent=11 // pred_region
          _
        $region28: #{mdpn3_forward.1} parent=11 // pred_fallthru
          _
      $region12: #{mdpn3_forward.1} parent=5 // pred_fallthru
        _
      %p243 = scmp.lt.s32.totalorder %s14, 25
      // Predicated region
      $region29: #{mdpn3_forward.1} parent=5 // pred_check
        %p244 = pneg %p243
      $region30: #{mdpn3_forward.1} parent=5 // pred_check_branch
        %246 = sbr.rel (%p244) target = $region32
      $region31: #{mdpn3_forward.1} parent=5 // pred_region
        // Predicated region
        $region33: #{mdpn3_forward.1} parent=31 // pred_check
          %p247 = pneg %p48
        $region34: #{mdpn3_forward.1} parent=31 // pred_check_branch
          %249 = sbr.rel (%p247) target = $region36
        $region35: #{mdpn3_forward.1} parent=31 // pred_region
          %p250 = scmp.lt.s32.totalorder %s22, 24
          %s251 = scalar_select %p250, %s22, 24
          %p252 = scmp.lt.s32.totalorder %s21, 0
          %s253 = scalar_select %p252, %s21, 0
          %s254 = smul.addr %s251, 48
          %s255 = sadd.s32 %s253, %s254
          %s256 = smul.addr %s255, 2
          %s257 = scalar_lea.vmem %s0, %s256
        $region36: #{mdpn3_forward.1} parent=31 // pred_fallthru
          _
        // Predicated region
        $region37: #{mdpn3_forward.1} parent=31 // pred_check
          %p258 = pneg %p74
        $region38: #{mdpn3_forward.1} parent=31 // pred_check_branch
          %260 = sbr.rel (%p258) target = $region40
        $region39: #{mdpn3_forward.1} parent=31 // pred_region
          %p261 = scmp.lt.s32.totalorder %s22, 24
          %s262 = scalar_select %p261, %s22, 24
          %s263 = smul.addr %s262, 6
          %s264 = scalar_lea.vmem %s1, %s263
        $region40: #{mdpn3_forward.1} parent=31 // pred_fallthru
          _
        // Predicated region
        $region41: #{mdpn3_forward.1} parent=31 // pred_check
          %p265 = pneg %p100
        $region42: #{mdpn3_forward.1} parent=31 // pred_check_branch
          %267 = sbr.rel (%p265) target = $region44
        $region43: #{mdpn3_forward.1} parent=31 // pred_region
          %p268 = scmp.lt.s32.totalorder %s22, 24
          %s269 = scalar_select %p268, %s22, 24
          %s270 = smul.addr %s269, 6
          %s271 = scalar_lea.vmem %s2, %s270
        $region44: #{mdpn3_forward.1} parent=31 // pred_fallthru
          _
      $region32: #{mdpn3_forward.1} parent=5 // pred_fallthru
        _
      %p272 = scmp.le.s32.totalorder 1, %s14
      %p273 = scmp.lt.s32.totalorder %s14, 26
      %p274 = pnand %p272, %p273
      %p275 = pneg %p274
      // Predicated region
      $region45: #{mdpn3_forward.1} parent=5 // pred_check
        _
      $region46: #{mdpn3_forward.1} parent=5 // pred_check_branch
        %277 = sbr.rel (%p274) target = $region48
      $region47: #{mdpn3_forward.1} parent=5 // pred_region
        %s278 = ssub.s32 %s14, 1
        %p279 = scmp.lt.s32.totalorder %s24, 24
        %s280 = scalar_select %p279, %s24, 24
        %p281 = scmp.lt.s32.totalorder %s23, 0
        %s282 = scalar_select %p281, %s23, 0
        %s283 = smul.addr %s280, 48
        %s284 = sadd.s32 %s282, %s283
        %s285 = smul.addr %s284, 2
        %s286 = scalar_lea.vmem %s0, %s285
        %p287 = pneg %p54
        %p288 = pneg %p51
        %p289 = scmp.lt.s32.totalorder %s24, 24
        %s290 = scalar_select %p289, %s24, 24
        %s291 = smul.addr %s290, 6
        %s292 = scalar_lea.vmem %s1, %s291
        %p293 = pneg %p80
        %p294 = pneg %p77
        %p295 = scmp.lt.s32.totalorder %s24, 24
        %s296 = scalar_select %p295, %s24, 24
        %s297 = smul.addr %s296, 6
        %s298 = scalar_lea.vmem %s2, %s297
        %p299 = pneg %p106
        %p300 = pneg %p103
        %p301 = pneg %p127
        %p302 = pneg %p124
        %p303 = pneg %p148
        %p304 = pneg %p145
        %p305 = pneg %p169
        %p306 = pneg %p166
        %p307 = pneg %p190
        %p308 = pneg %p187
        %p309 = pneg %p216
        %p310 = pneg %p213
        %p311 = scmp.lt.s32.totalorder %s24, 24
        %s312 = scalar_select %p311, %s24, 24
        %p313 = scmp.lt.s32.totalorder %s23, 0
        %s314 = scalar_select %p313, %s23, 0
        %s315 = smul.addr %s312, 48
        %s316 = sadd.s32 %s314, %s315
        %s317 = smul.addr %s316, 2
        %s318 = scalar_lea.vmem %s0, %s317
        %p319 = scmp.lt.s32.totalorder %s24, 24
        %s320 = scalar_select %p319, %s24, 24
        %s321 = smul.addr %s320, 6
        %s322 = scalar_lea.vmem %s1, %s321
        %p323 = scmp.lt.s32.totalorder %s24, 24
        %s324 = scalar_select %p323, %s24, 24
        %s325 = smul.addr %s324, 6
        %s326 = scalar_lea.vmem %s2, %s325
        %p327 = scmp.eq.s32.totalorder %s24, 0
        // Predicated region
        $region49: #{mdpn3_forward.1} parent=47 // pred_check
          %p328 = pneg %p327
        $region50: #{mdpn3_forward.1} parent=47 // pred_check_branch
          %330 = sbr.rel (%p328) target = $region52
        $region51: #{mdpn3_forward.1} parent=47 // pred_region
          %vm331 = vcmask 66560
          %332 = vst.msk [vmem:[#allocation2] sm:$0x3] %vm331, -28.618248
          %333 = vst.msk [vmem:[#allocation2 + $0x2] sm:$0x3] %vm331, -28.618248
          %334 = vst.msk [vmem:[#allocation2 + $0x4] sm:$0x3] %vm331, -28.618248
          %335 = vst.msk [vmem:[#allocation2 + $0x6] sm:$0x3] %vm331, -28.618248
          %336 = vst.msk [vmem:[#allocation2 + $0x8] sm:$0x3] %vm331, -28.618248
          %337 = vst.msk [vmem:[#allocation2 + $0xa] sm:$0x3] %vm331, -28.618248
          %338 = vst.msk [vmem:[#allocation2 + $0xc] sm:$0x3] %vm331, -28.618248
          %339 = vst.msk [vmem:[#allocation2 + $0xe] sm:$0x3] %vm331, -28.618248
          %340 = vst.msk [vmem:[#allocation2 + $0x10] sm:$0x3] %vm331, -28.618248
          %341 = vst.msk [vmem:[#allocation2 + $0x12] sm:$0x3] %vm331, -28.618248
          %342 = vst.msk [vmem:[#allocation2 + $0x14] sm:$0x3] %vm331, -28.618248
          %343 = vst.msk [vmem:[#allocation2 + $0x16] sm:$0x3] %vm331, -28.618248
          %344 = vst.msk [vmem:[#allocation2 + $0x18] sm:$0x3] %vm331, -28.618248
          %345 = vst.msk [vmem:[#allocation2 + $0x1a] sm:$0x3] %vm331, -28.618248
          %346 = vst.msk [vmem:[#allocation2 + $0x1c] sm:$0x3] %vm331, -28.618248
          %347 = vst.msk [vmem:[#allocation2 + $0x1e] sm:$0x3] %vm331, -28.618248
          %348 = vst.msk [vmem:[#allocation2 + $0x20] sm:$0x3] %vm331, -28.618248
          %349 = vst.msk [vmem:[#allocation2 + $0x22] sm:$0x3] %vm331, -28.618248
          %350 = vst.msk [vmem:[#allocation2 + $0x24] sm:$0x3] %vm331, -28.618248
          %351 = vst.msk [vmem:[#allocation2 + $0x26] sm:$0x3] %vm331, -28.618248
          %352 = vst.msk [vmem:[#allocation2 + $0x28] sm:$0x3] %vm331, -28.618248
          %353 = vst.msk [vmem:[#allocation2 + $0x2a] sm:$0x3] %vm331, -28.618248
          %354 = vst.msk [vmem:[#allocation2 + $0x2c] sm:$0x3] %vm331, -28.618248
          %355 = vst.msk [vmem:[#allocation2 + $0x2e] sm:$0x3] %vm331, -28.618248
          %356 = vst.msk [vmem:[#allocation2 + $0x30] sm:$0x3] %vm331, -28.618248
          %357 = vst.msk [vmem:[#allocation2 + $0x32] sm:$0x3] %vm331, -28.618248
          %358 = vst.msk [vmem:[#allocation2 + $0x34] sm:$0x3] %vm331, -28.618248
          %359 = vst.msk [vmem:[#allocation2 + $0x36] sm:$0x3] %vm331, -28.618248
          %360 = vst.msk [vmem:[#allocation2 + $0x38] sm:$0x3] %vm331, -28.618248
          %361 = vst.msk [vmem:[#allocation2 + $0x3a] sm:$0x3] %vm331, -28.618248
          %362 = vst.msk [vmem:[#allocation2 + $0x3c] sm:$0x3] %vm331, -28.618248
          %363 = vst.msk [vmem:[#allocation2 + $0x3e] sm:$0x3] %vm331, -28.618248
          %364 = vst.msk [vmem:[#allocation2 + $0x40] sm:$0x3] %vm331, -28.618248
          %365 = vst.msk [vmem:[#allocation2 + $0x42] sm:$0x3] %vm331, -28.618248
          %366 = vst.msk [vmem:[#allocation2 + $0x44] sm:$0x3] %vm331, -28.618248
          %367 = vst.msk [vmem:[#allocation2 + $0x46] sm:$0x3] %vm331, -28.618248
          %368 = vst.msk [vmem:[#allocation2 + $0x48] sm:$0x3] %vm331, -28.618248
          %369 = vst.msk [vmem:[#allocation2 + $0x4a] sm:$0x3] %vm331, -28.618248
          %370 = vst.msk [vmem:[#allocation2 + $0x4c] sm:$0x3] %vm331, -28.618248
          %371 = vst.msk [vmem:[#allocation2 + $0x4e] sm:$0x3] %vm331, -28.618248
          %372 = vst.msk [vmem:[#allocation2 + $0x50] sm:$0x3] %vm331, -28.618248
          %373 = vst.msk [vmem:[#allocation2 + $0x52] sm:$0x3] %vm331, -28.618248
          %374 = vst.msk [vmem:[#allocation2 + $0x54] sm:$0x3] %vm331, -28.618248
          %375 = vst.msk [vmem:[#allocation2 + $0x56] sm:$0x3] %vm331, -28.618248
          %376 = vst.msk [vmem:[#allocation2 + $0x58] sm:$0x3] %vm331, -28.618248
          %377 = vst.msk [vmem:[#allocation2 + $0x5a] sm:$0x3] %vm331, -28.618248
          %378 = vst.msk [vmem:[#allocation2 + $0x5c] sm:$0x3] %vm331, -28.618248
          %379 = vst.msk [vmem:[#allocation2 + $0x5e] sm:$0x3] %vm331, -28.618248
          %380 = vst.msk [vmem:[#allocation2 + $0x60] sm:$0x3] %vm331, -28.618248
          %381 = vst.msk [vmem:[#allocation2 + $0x62] sm:$0x3] %vm331, -28.618248
          %382 = vst.msk [vmem:[#allocation2 + $0x64] sm:$0x3] %vm331, -28.618248
          %383 = vst.msk [vmem:[#allocation2 + $0x66] sm:$0x3] %vm331, -28.618248
          %384 = vst.msk [vmem:[#allocation2 + $0x68] sm:$0x3] %vm331, -28.618248
          %385 = vst.msk [vmem:[#allocation2 + $0x6a] sm:$0x3] %vm331, -28.618248
          %386 = vst.msk [vmem:[#allocation2 + $0x6c] sm:$0x3] %vm331, -28.618248
          %387 = vst.msk [vmem:[#allocation2 + $0x6e] sm:$0x3] %vm331, -28.618248
          %388 = vst.msk [vmem:[#allocation2 + $0x70] sm:$0x3] %vm331, -28.618248
          %389 = vst.msk [vmem:[#allocation2 + $0x72] sm:$0x3] %vm331, -28.618248
          %390 = vst.msk [vmem:[#allocation2 + $0x74] sm:$0x3] %vm331, -28.618248
          %391 = vst.msk [vmem:[#allocation2 + $0x76] sm:$0x3] %vm331, -28.618248
          %392 = vst.msk [vmem:[#allocation2 + $0x78] sm:$0x3] %vm331, -28.618248
          %393 = vst.msk [vmem:[#allocation2 + $0x7a] sm:$0x3] %vm331, -28.618248
          %394 = vst.msk [vmem:[#allocation2 + $0x7c] sm:$0x3] %vm331, -28.618248
          %395 = vst.msk [vmem:[#allocation2 + $0x7e] sm:$0x3] %vm331, -28.618248
          %396 = vst.msk [vmem:[#allocation2 + $0x80] sm:$0x3] %vm331, -28.618248
          %397 = vst.msk [vmem:[#allocation2 + $0x82] sm:$0x3] %vm331, -28.618248
          %398 = vst.msk [vmem:[#allocation2 + $0x84] sm:$0x3] %vm331, -28.618248
          %399 = vst.msk [vmem:[#allocation2 + $0x86] sm:$0x3] %vm331, -28.618248
          %400 = vst.msk [vmem:[#allocation2 + $0x88] sm:$0x3] %vm331, -28.618248
          %401 = vst.msk [vmem:[#allocation2 + $0x8a] sm:$0x3] %vm331, -28.618248
          %402 = vst.msk [vmem:[#allocation2 + $0x8c] sm:$0x3] %vm331, -28.618248
          %403 = vst.msk [vmem:[#allocation2 + $0x8e] sm:$0x3] %vm331, -28.618248
          %404 = vst.msk [vmem:[#allocation2 + $0x90] sm:$0x3] %vm331, -28.618248
          %405 = vst.msk [vmem:[#allocation2 + $0x92] sm:$0x3] %vm331, -28.618248
          %406 = vst.msk [vmem:[#allocation2 + $0x94] sm:$0x3] %vm331, -28.618248
          %407 = vst.msk [vmem:[#allocation2 + $0x96] sm:$0x3] %vm331, -28.618248
          %408 = vst.msk [vmem:[#allocation2 + $0x98] sm:$0x3] %vm331, -28.618248
          %409 = vst.msk [vmem:[#allocation2 + $0x9a] sm:$0x3] %vm331, -28.618248
          %410 = vst.msk [vmem:[#allocation2 + $0x9c] sm:$0x3] %vm331, -28.618248
          %411 = vst.msk [vmem:[#allocation2 + $0x9e] sm:$0x3] %vm331, -28.618248
          %412 = vst.msk [vmem:[#allocation2 + $0xa0] sm:$0x3] %vm331, -28.618248
          %413 = vst.msk [vmem:[#allocation2 + $0xa2] sm:$0x3] %vm331, -28.618248
          %414 = vst.msk [vmem:[#allocation2 + $0xa4] sm:$0x3] %vm331, -28.618248
          %415 = vst.msk [vmem:[#allocation2 + $0xa6] sm:$0x3] %vm331, -28.618248
          %416 = vst.msk [vmem:[#allocation2 + $0xa8] sm:$0x3] %vm331, -28.618248
          %417 = vst.msk [vmem:[#allocation2 + $0xaa] sm:$0x3] %vm331, -28.618248
          %418 = vst.msk [vmem:[#allocation2 + $0xac] sm:$0x3] %vm331, -28.618248
          %419 = vst.msk [vmem:[#allocation2 + $0xae] sm:$0x3] %vm331, -28.618248
          %420 = vst.msk [vmem:[#allocation2 + $0xb0] sm:$0x3] %vm331, -28.618248
          %421 = vst.msk [vmem:[#allocation2 + $0xb2] sm:$0x3] %vm331, -28.618248
          %422 = vst.msk [vmem:[#allocation2 + $0xb4] sm:$0x3] %vm331, -28.618248
          %423 = vst.msk [vmem:[#allocation2 + $0xb6] sm:$0x3] %vm331, -28.618248
          %424 = vst.msk [vmem:[#allocation2 + $0xb8] sm:$0x3] %vm331, -28.618248
          %425 = vst.msk [vmem:[#allocation2 + $0xba] sm:$0x3] %vm331, -28.618248
          %426 = vst.msk [vmem:[#allocation2 + $0xbc] sm:$0x3] %vm331, -28.618248
          %427 = vst.msk [vmem:[#allocation2 + $0xbe] sm:$0x3] %vm331, -28.618248
        $region52: #{mdpn3_forward.1} parent=47 // pred_fallthru
          _
        %v428 = vld [vmem:[%s318] sm:$0x3]
        %v429 = vld [vmem:[%s318 + $0x2] sm:$0x3]
        %v430 = vld [vmem:[%s318 + $0x4] sm:$0x3]
        %v431 = vld [vmem:[%s318 + $0x6] sm:$0x3]
        %v432 = vld [vmem:[%s318 + $0x8] sm:$0x3]
        %v433 = vld [vmem:[%s318 + $0xa] sm:$0x3]
        %v434 = vld [vmem:[%s318 + $0xc] sm:$0x3]
        %v435 = vld [vmem:[%s318 + $0xe] sm:$0x3]
        %v436 = vld [vmem:[%s318 + $0x10] sm:$0x3]
        %v437 = vld [vmem:[%s318 + $0x12] sm:$0x3]
        %v438 = vld [vmem:[%s318 + $0x14] sm:$0x3]
        %v439 = vld [vmem:[%s318 + $0x16] sm:$0x3]
        %v440 = vld [vmem:[%s318 + $0x18] sm:$0x3]
        %v441 = vld [vmem:[%s318 + $0x1a] sm:$0x3]
        %v442 = vld [vmem:[%s318 + $0x1c] sm:$0x3]
        %v443 = vld [vmem:[%s318 + $0x1e] sm:$0x3]
        %v444 = vld [vmem:[%s322] sm:$0x1]
        %v445 = vld [vmem:[%s326] sm:$0x1]
        %v447 = vlaneseq
        %v448 = vshrl.u32 %v447, 7
        %v449 = vsub.s32 0, %v448
        %v450 = vrot.slane %v444, %v449
        %451 = vset.pattern.permute.xlu0 0
        %452 = vperm.xlu0 %451, %v450
        %v453 = vpop.permute.xlu0 %452
        %v455 = vmul.f32 %v428, %v453
        %v456 = vmul.f32 %v429, %v453
        %v457 = vmul.f32 %v430, %v453
        %v458 = vmul.f32 %v431, %v453
        %v459 = vmul.f32 %v432, %v453
        %v460 = vmul.f32 %v433, %v453
        %v461 = vmul.f32 %v434, %v453
        %v462 = vmul.f32 %v435, %v453
        %v463 = vmul.f32 %v436, %v453
        %v464 = vmul.f32 %v437, %v453
        %v465 = vmul.f32 %v438, %v453
        %v466 = vmul.f32 %v439, %v453
        %v467 = vmul.f32 %v440, %v453
        %v468 = vmul.f32 %v441, %v453
        %v469 = vmul.f32 %v442, %v453
        %v470 = vmul.f32 %v443, %v453
        %v472 = vlaneseq
        %v473 = vshrl.u32 %v472, 7
        %v474 = vsub.s32 0, %v473
        %v475 = vrot.slane %v445, %v474
        %476 = vset.pattern.permute.xlu0 0
        %477 = vperm.xlu0 %476, %v475
        %v478 = vpop.permute.xlu0 %477
        %v480 = vsub.f32 %v455, %v478
        %v481 = vsub.f32 %v456, %v478
        %v482 = vsub.f32 %v457, %v478
        %v483 = vsub.f32 %v458, %v478
        %v484 = vsub.f32 %v459, %v478
        %v485 = vsub.f32 %v460, %v478
        %v486 = vsub.f32 %v461, %v478
        %v487 = vsub.f32 %v462, %v478
        %v488 = vsub.f32 %v463, %v478
        %v489 = vsub.f32 %v464, %v478
        %v490 = vsub.f32 %v465, %v478
        %v491 = vsub.f32 %v466, %v478
        %v492 = vsub.f32 %v467, %v478
        %v493 = vsub.f32 %v468, %v478
        %v494 = vsub.f32 %v469, %v478
        %v495 = vsub.f32 %v470, %v478
        %v496 = vld [vmem:[#allocation2] sm:$0x3]
        %v497 = vld [vmem:[#allocation2 + $0x2] sm:$0x3]
        %v498 = vld [vmem:[#allocation2 + $0x4] sm:$0x3]
        %v499 = vld [vmem:[#allocation2 + $0x6] sm:$0x3]
        %v500 = vld [vmem:[#allocation2 + $0x8] sm:$0x3]
        %v501 = vld [vmem:[#allocation2 + $0xa] sm:$0x3]
        %v502 = vld [vmem:[#allocation2 + $0xc] sm:$0x3]
        %v503 = vld [vmem:[#allocation2 + $0xe] sm:$0x3]
        %v504 = vld [vmem:[#allocation2 + $0x10] sm:$0x3]
        %v505 = vld [vmem:[#allocation2 + $0x12] sm:$0x3]
        %v506 = vld [vmem:[#allocation2 + $0x14] sm:$0x3]
        %v507 = vld [vmem:[#allocation2 + $0x16] sm:$0x3]
        %v508 = vld [vmem:[#allocation2 + $0x18] sm:$0x3]
        %v509 = vld [vmem:[#allocation2 + $0x1a] sm:$0x3]
        %v510 = vld [vmem:[#allocation2 + $0x1c] sm:$0x3]
        %v511 = vld [vmem:[#allocation2 + $0x1e] sm:$0x3]
        %v512 = vand.u32 2147483647, %v480
        %v513 = vand.u32 2147483647, %v481
        %v514 = vand.u32 2147483647, %v482
        %v515 = vand.u32 2147483647, %v483
        %v516 = vand.u32 2147483647, %v484
        %v517 = vand.u32 2147483647, %v485
        %v518 = vand.u32 2147483647, %v486
        %v519 = vand.u32 2147483647, %v487
        %v520 = vand.u32 2147483647, %v488
        %v521 = vand.u32 2147483647, %v489
        %v522 = vand.u32 2147483647, %v490
        %v523 = vand.u32 2147483647, %v491
        %v524 = vand.u32 2147483647, %v492
        %v525 = vand.u32 2147483647, %v493
        %v526 = vand.u32 2147483647, %v494
        %v527 = vand.u32 2147483647, %v495
        %vm528 = vcmp.gt.f32.partialorder %v512, 2.4142137
        %vm529 = vcmp.gt.f32.partialorder %v513, 2.4142137
        %vm530 = vcmp.gt.f32.partialorder %v514, 2.4142137
        %vm531 = vcmp.gt.f32.partialorder %v515, 2.4142137
        %vm532 = vcmp.gt.f32.partialorder %v516, 2.4142137
        %vm533 = vcmp.gt.f32.partialorder %v517, 2.4142137
        %vm534 = vcmp.gt.f32.partialorder %v518, 2.4142137
        %vm535 = vcmp.gt.f32.partialorder %v519, 2.4142137
        %vm536 = vcmp.gt.f32.partialorder %v520, 2.4142137
        %vm537 = vcmp.gt.f32.partialorder %v521, 2.4142137
        %vm538 = vcmp.gt.f32.partialorder %v522, 2.4142137
        %vm539 = vcmp.gt.f32.partialorder %v523, 2.4142137
        %vm540 = vcmp.gt.f32.partialorder %v524, 2.4142137
        %vm541 = vcmp.gt.f32.partialorder %v525, 2.4142137
        %vm542 = vcmp.gt.f32.partialorder %v526, 2.4142137
        %vm543 = vcmp.gt.f32.partialorder %v527, 2.4142137
        %vm544 = vcmp.gt.f32.partialorder %v512, 0.41421357
        %vm545 = vcmp.gt.f32.partialorder %v513, 0.41421357
        %vm546 = vcmp.gt.f32.partialorder %v514, 0.41421357
        %vm547 = vcmp.gt.f32.partialorder %v515, 0.41421357
        %vm548 = vcmp.gt.f32.partialorder %v516, 0.41421357
        %vm549 = vcmp.gt.f32.partialorder %v517, 0.41421357
        %vm550 = vcmp.gt.f32.partialorder %v518, 0.41421357
        %vm551 = vcmp.gt.f32.partialorder %v519, 0.41421357
        %vm552 = vcmp.gt.f32.partialorder %v520, 0.41421357
        %vm553 = vcmp.gt.f32.partialorder %v521, 0.41421357
        %vm554 = vcmp.gt.f32.partialorder %v522, 0.41421357
        %vm555 = vcmp.gt.f32.partialorder %v523, 0.41421357
        %vm556 = vcmp.gt.f32.partialorder %v524, 0.41421357
        %vm557 = vcmp.gt.f32.partialorder %v525, 0.41421357
        %vm558 = vcmp.gt.f32.partialorder %v526, 0.41421357
        %vm559 = vcmp.gt.f32.partialorder %v527, 0.41421357
        %v560 = vsub.f32 %v512, 1.0
        %v561 = vsub.f32 %v513, 1.0
        %v562 = vsub.f32 %v514, 1.0
        %v563 = vsub.f32 %v515, 1.0
        %v564 = vsub.f32 %v516, 1.0
        %v565 = vsub.f32 %v517, 1.0
        %v566 = vsub.f32 %v518, 1.0
        %v567 = vsub.f32 %v519, 1.0
        %v568 = vsub.f32 %v520, 1.0
        %v569 = vsub.f32 %v521, 1.0
        %v570 = vsub.f32 %v522, 1.0
        %v571 = vsub.f32 %v523, 1.0
        %v572 = vsub.f32 %v524, 1.0
        %v573 = vsub.f32 %v525, 1.0
        %v574 = vsub.f32 %v526, 1.0
        %v575 = vsub.f32 %v527, 1.0
        %v576 = vsel %vm544, %v560, %v512
        %v577 = vsel %vm545, %v561, %v513
        %v578 = vsel %vm546, %v562, %v514
        %v579 = vsel %vm547, %v563, %v515
        %v580 = vsel %vm548, %v564, %v516
        %v581 = vsel %vm549, %v565, %v517
        %v582 = vsel %vm550, %v566, %v518
        %v583 = vsel %vm551, %v567, %v519
        %v584 = vsel %vm552, %v568, %v520
        %v585 = vsel %vm553, %v569, %v521
        %v586 = vsel %vm554, %v570, %v522
        %v587 = vsel %vm555, %v571, %v523
        %v588 = vsel %vm556, %v572, %v524
        %v589 = vsel %vm557, %v573, %v525
        %v590 = vsel %vm558, %v574, %v526
        %v591 = vsel %vm559, %v575, %v527
        %v592 = vsel %vm528, -1.0, %v576
        %v593 = vsel %vm529, -1.0, %v577
        %v594 = vsel %vm530, -1.0, %v578
        %v595 = vsel %vm531, -1.0, %v579
        %v596 = vsel %vm532, -1.0, %v580
        %v597 = vsel %vm533, -1.0, %v581
        %v598 = vsel %vm534, -1.0, %v582
        %v599 = vsel %vm535, -1.0, %v583
        %v600 = vsel %vm536, -1.0, %v584
        %v601 = vsel %vm537, -1.0, %v585
        %v602 = vsel %vm538, -1.0, %v586
        %v603 = vsel %vm539, -1.0, %v587
        %v604 = vsel %vm540, -1.0, %v588
        %v605 = vsel %vm541, -1.0, %v589
        %v606 = vsel %vm542, -1.0, %v590
        %v607 = vsel %vm543, -1.0, %v591
        %v608 = vadd.f32 %v512, 1.0
        %v609 = vadd.f32 %v513, 1.0
        %v610 = vadd.f32 %v514, 1.0
        %v611 = vadd.f32 %v515, 1.0
        %v612 = vadd.f32 %v516, 1.0
        %v613 = vadd.f32 %v517, 1.0
        %v614 = vadd.f32 %v518, 1.0
        %v615 = vadd.f32 %v519, 1.0
        %v616 = vadd.f32 %v520, 1.0
        %v617 = vadd.f32 %v521, 1.0
        %v618 = vadd.f32 %v522, 1.0
        %v619 = vadd.f32 %v523, 1.0
        %v620 = vadd.f32 %v524, 1.0
        %v621 = vadd.f32 %v525, 1.0
        %v622 = vadd.f32 %v526, 1.0
        %v623 = vadd.f32 %v527, 1.0
        %v624 = vsel %vm544, %v608, 1.0
        %v625 = vsel %vm545, %v609, 1.0
        %v626 = vsel %vm546, %v610, 1.0
        %v627 = vsel %vm547, %v611, 1.0
        %v628 = vsel %vm548, %v612, 1.0
        %v629 = vsel %vm549, %v613, 1.0
        %v630 = vsel %vm550, %v614, 1.0
        %v631 = vsel %vm551, %v615, 1.0
        %v632 = vsel %vm552, %v616, 1.0
        %v633 = vsel %vm553, %v617, 1.0
        %v634 = vsel %vm554, %v618, 1.0
        %v635 = vsel %vm555, %v619, 1.0
        %v636 = vsel %vm556, %v620, 1.0
        %v637 = vsel %vm557, %v621, 1.0
        %v638 = vsel %vm558, %v622, 1.0
        %v639 = vsel %vm559, %v623, 1.0
        %v640 = vsel %vm528, %v512, %v624
        %v641 = vsel %vm529, %v513, %v625
        %v642 = vsel %vm530, %v514, %v626
        %v643 = vsel %vm531, %v515, %v627
        %v644 = vsel %vm532, %v516, %v628
        %v645 = vsel %vm533, %v517, %v629
        %v646 = vsel %vm534, %v518, %v630
        %v647 = vsel %vm535, %v519, %v631
        %v648 = vsel %vm536, %v520, %v632
        %v649 = vsel %vm537, %v521, %v633
        %v650 = vsel %vm538, %v522, %v634
        %v651 = vsel %vm539, %v523, %v635
        %v652 = vsel %vm540, %v524, %v636
        %v653 = vsel %vm541, %v525, %v637
        %v654 = vsel %vm542, %v526, %v638
        %v655 = vsel %vm543, %v527, %v639
        %v656 = vrcp.pop %v640
        %v657 = vmul.f32 %v592, %v656
        %v658 = vrcp.pop %v641
        %v659 = vmul.f32 %v593, %v658
        %v660 = vrcp.pop %v642
        %v661 = vmul.f32 %v594, %v660
        %v662 = vrcp.pop %v643
        %v663 = vmul.f32 %v595, %v662
        %v664 = vrcp.pop %v644
        %v665 = vmul.f32 %v596, %v664
        %v666 = vrcp.pop %v645
        %v667 = vmul.f32 %v597, %v666
        %v668 = vrcp.pop %v646
        %v669 = vmul.f32 %v598, %v668
        %v670 = vrcp.pop %v647
        %v671 = vmul.f32 %v599, %v670
        %v672 = vrcp.pop %v648
        %v673 = vmul.f32 %v600, %v672
        %v674 = vrcp.pop %v649
        %v675 = vmul.f32 %v601, %v674
        %v676 = vrcp.pop %v650
        %v677 = vmul.f32 %v602, %v676
        %v678 = vrcp.pop %v651
        %v679 = vmul.f32 %v603, %v678
        %v680 = vrcp.pop %v652
        %v681 = vmul.f32 %v604, %v680
        %v682 = vrcp.pop %v653
        %v683 = vmul.f32 %v605, %v682
        %v684 = vrcp.pop %v654
        %v685 = vmul.f32 %v606, %v684
        %v686 = vrcp.pop %v655
        %v687 = vmul.f32 %v607, %v686
        %v688 = vsel %vm544, 0.7853982, 0.0
        %v689 = vsel %vm545, 0.7853982, 0.0
        %v690 = vsel %vm546, 0.7853982, 0.0
        %v691 = vsel %vm547, 0.7853982, 0.0
        %v692 = vsel %vm548, 0.7853982, 0.0
        %v693 = vsel %vm549, 0.7853982, 0.0
        %v694 = vsel %vm550, 0.7853982, 0.0
        %v695 = vsel %vm551, 0.7853982, 0.0
        %v696 = vsel %vm552, 0.7853982, 0.0
        %v697 = vsel %vm553, 0.7853982, 0.0
        %v698 = vsel %vm554, 0.7853982, 0.0
        %v699 = vsel %vm555, 0.7853982, 0.0
        %v700 = vsel %vm556, 0.7853982, 0.0
        %v701 = vsel %vm557, 0.7853982, 0.0
        %v702 = vsel %vm558, 0.7853982, 0.0
        %v703 = vsel %vm559, 0.7853982, 0.0
        %v704 = vsel %vm528, 1.5707964, %v688
        %v705 = vsel %vm529, 1.5707964, %v689
        %v706 = vsel %vm530, 1.5707964, %v690
        %v707 = vsel %vm531, 1.5707964, %v691
        %v708 = vsel %vm532, 1.5707964, %v692
        %v709 = vsel %vm533, 1.5707964, %v693
        %v710 = vsel %vm534, 1.5707964, %v694
        %v711 = vsel %vm535, 1.5707964, %v695
        %v712 = vsel %vm536, 1.5707964, %v696
        %v713 = vsel %vm537, 1.5707964, %v697
        %v714 = vsel %vm538, 1.5707964, %v698
        %v715 = vsel %vm539, 1.5707964, %v699
        %v716 = vsel %vm540, 1.5707964, %v700
        %v717 = vsel %vm541, 1.5707964, %v701
        %v718 = vsel %vm542, 1.5707964, %v702
        %v719 = vsel %vm543, 1.5707964, %v703
        %v720 = vmul.f32 %v657, %v657
        %v721 = vmul.f32 %v659, %v659
        %v722 = vmul.f32 %v661, %v661
        %v723 = vmul.f32 %v663, %v663
        %v724 = vmul.f32 %v665, %v665
        %v725 = vmul.f32 %v667, %v667
        %v726 = vmul.f32 %v669, %v669
        %v727 = vmul.f32 %v671, %v671
        %v728 = vmul.f32 %v673, %v673
        %v729 = vmul.f32 %v675, %v675
        %v730 = vmul.f32 %v677, %v677
        %v731 = vmul.f32 %v679, %v679
        %v732 = vmul.f32 %v681, %v681
        %v733 = vmul.f32 %v683, %v683
        %v734 = vmul.f32 %v685, %v685
        %v735 = vmul.f32 %v687, %v687
        %v736 = vmul.f32 %v720, 0.080537446
        %v737 = vmul.f32 %v721, 0.080537446
        %v738 = vmul.f32 %v722, 0.080537446
        %v739 = vmul.f32 %v723, 0.080537446
        %v740 = vmul.f32 %v724, 0.080537446
        %v741 = vmul.f32 %v725, 0.080537446
        %v742 = vmul.f32 %v726, 0.080537446
        %v743 = vmul.f32 %v727, 0.080537446
        %v744 = vmul.f32 %v728, 0.080537446
        %v745 = vmul.f32 %v729, 0.080537446
        %v746 = vmul.f32 %v730, 0.080537446
        %v747 = vmul.f32 %v731, 0.080537446
        %v748 = vmul.f32 %v732, 0.080537446
        %v749 = vmul.f32 %v733, 0.080537446
        %v750 = vmul.f32 %v734, 0.080537446
        %v751 = vmul.f32 %v735, 0.080537446
        %v752 = vsub.f32 %v736, 0.13877685
        %v753 = vsub.f32 %v737, 0.13877685
        %v754 = vsub.f32 %v738, 0.13877685
        %v755 = vsub.f32 %v739, 0.13877685
        %v756 = vsub.f32 %v740, 0.13877685
        %v757 = vsub.f32 %v741, 0.13877685
        %v758 = vsub.f32 %v742, 0.13877685
        %v759 = vsub.f32 %v743, 0.13877685
        %v760 = vsub.f32 %v744, 0.13877685
        %v761 = vsub.f32 %v745, 0.13877685
        %v762 = vsub.f32 %v746, 0.13877685
        %v763 = vsub.f32 %v747, 0.13877685
        %v764 = vsub.f32 %v748, 0.13877685
        %v765 = vsub.f32 %v749, 0.13877685
        %v766 = vsub.f32 %v750, 0.13877685
        %v767 = vsub.f32 %v751, 0.13877685
        %v768 = vmul.f32 %v752, %v720
        %v769 = vmul.f32 %v753, %v721
        %v770 = vmul.f32 %v754, %v722
        %v771 = vmul.f32 %v755, %v723
        %v772 = vmul.f32 %v756, %v724
        %v773 = vmul.f32 %v757, %v725
        %v774 = vmul.f32 %v758, %v726
        %v775 = vmul.f32 %v759, %v727
        %v776 = vmul.f32 %v760, %v728
        %v777 = vmul.f32 %v761, %v729
        %v778 = vmul.f32 %v762, %v730
        %v779 = vmul.f32 %v763, %v731
        %v780 = vmul.f32 %v764, %v732
        %v781 = vmul.f32 %v765, %v733
        %v782 = vmul.f32 %v766, %v734
        %v783 = vmul.f32 %v767, %v735
        %v784 = vadd.f32 %v768, 0.19977711
        %v785 = vadd.f32 %v769, 0.19977711
        %v786 = vadd.f32 %v770, 0.19977711
        %v787 = vadd.f32 %v771, 0.19977711
        %v788 = vadd.f32 %v772, 0.19977711
        %v789 = vadd.f32 %v773, 0.19977711
        %v790 = vadd.f32 %v774, 0.19977711
        %v791 = vadd.f32 %v775, 0.19977711
        %v792 = vadd.f32 %v776, 0.19977711
        %v793 = vadd.f32 %v777, 0.19977711
        %v794 = vadd.f32 %v778, 0.19977711
        %v795 = vadd.f32 %v779, 0.19977711
        %v796 = vadd.f32 %v780, 0.19977711
        %v797 = vadd.f32 %v781, 0.19977711
        %v798 = vadd.f32 %v782, 0.19977711
        %v799 = vadd.f32 %v783, 0.19977711
        %v800 = vmul.f32 %v784, %v720
        %v801 = vmul.f32 %v785, %v721
        %v802 = vmul.f32 %v786, %v722
        %v803 = vmul.f32 %v787, %v723
        %v804 = vmul.f32 %v788, %v724
        %v805 = vmul.f32 %v789, %v725
        %v806 = vmul.f32 %v790, %v726
        %v807 = vmul.f32 %v791, %v727
        %v808 = vmul.f32 %v792, %v728
        %v809 = vmul.f32 %v793, %v729
        %v810 = vmul.f32 %v794, %v730
        %v811 = vmul.f32 %v795, %v731
        %v812 = vmul.f32 %v796, %v732
        %v813 = vmul.f32 %v797, %v733
        %v814 = vmul.f32 %v798, %v734
        %v815 = vmul.f32 %v799, %v735
        %v816 = vsub.f32 %v800, 0.3333295
        %v817 = vsub.f32 %v801, 0.3333295
        %v818 = vsub.f32 %v802, 0.3333295
        %v819 = vsub.f32 %v803, 0.3333295
        %v820 = vsub.f32 %v804, 0.3333295
        %v821 = vsub.f32 %v805, 0.3333295
        %v822 = vsub.f32 %v806, 0.3333295
        %v823 = vsub.f32 %v807, 0.3333295
        %v824 = vsub.f32 %v808, 0.3333295
        %v825 = vsub.f32 %v809, 0.3333295
        %v826 = vsub.f32 %v810, 0.3333295
        %v827 = vsub.f32 %v811, 0.3333295
        %v828 = vsub.f32 %v812, 0.3333295
        %v829 = vsub.f32 %v813, 0.3333295
        %v830 = vsub.f32 %v814, 0.3333295
        %v831 = vsub.f32 %v815, 0.3333295
        %v832 = vmul.f32 %v816, %v720
        %v833 = vmul.f32 %v817, %v721
        %v834 = vmul.f32 %v818, %v722
        %v835 = vmul.f32 %v819, %v723
        %v836 = vmul.f32 %v820, %v724
        %v837 = vmul.f32 %v821, %v725
        %v838 = vmul.f32 %v822, %v726
        %v839 = vmul.f32 %v823, %v727
        %v840 = vmul.f32 %v824, %v728
        %v841 = vmul.f32 %v825, %v729
        %v842 = vmul.f32 %v826, %v730
        %v843 = vmul.f32 %v827, %v731
        %v844 = vmul.f32 %v828, %v732
        %v845 = vmul.f32 %v829, %v733
        %v846 = vmul.f32 %v830, %v734
        %v847 = vmul.f32 %v831, %v735
        %v848 = vmul.f32 %v832, %v657
        %v849 = vmul.f32 %v833, %v659
        %v850 = vmul.f32 %v834, %v661
        %v851 = vmul.f32 %v835, %v663
        %v852 = vmul.f32 %v836, %v665
        %v853 = vmul.f32 %v837, %v667
        %v854 = vmul.f32 %v838, %v669
        %v855 = vmul.f32 %v839, %v671
        %v856 = vmul.f32 %v840, %v673
        %v857 = vmul.f32 %v841, %v675
        %v858 = vmul.f32 %v842, %v677
        %v859 = vmul.f32 %v843, %v679
        %v860 = vmul.f32 %v844, %v681
        %v861 = vmul.f32 %v845, %v683
        %v862 = vmul.f32 %v846, %v685
        %v863 = vmul.f32 %v847, %v687
        %v864 = vadd.f32 %v848, %v657
        %v865 = vadd.f32 %v849, %v659
        %v866 = vadd.f32 %v850, %v661
        %v867 = vadd.f32 %v851, %v663
        %v868 = vadd.f32 %v852, %v665
        %v869 = vadd.f32 %v853, %v667
        %v870 = vadd.f32 %v854, %v669
        %v871 = vadd.f32 %v855, %v671
        %v872 = vadd.f32 %v856, %v673
        %v873 = vadd.f32 %v857, %v675
        %v874 = vadd.f32 %v858, %v677
        %v875 = vadd.f32 %v859, %v679
        %v876 = vadd.f32 %v860, %v681
        %v877 = vadd.f32 %v861, %v683
        %v878 = vadd.f32 %v862, %v685
        %v879 = vadd.f32 %v863, %v687
        %v880 = vadd.f32 %v704, %v864
        %v881 = vadd.f32 %v705, %v865
        %v882 = vadd.f32 %v706, %v866
        %v883 = vadd.f32 %v707, %v867
        %v884 = vadd.f32 %v708, %v868
        %v885 = vadd.f32 %v709, %v869
        %v886 = vadd.f32 %v710, %v870
        %v887 = vadd.f32 %v711, %v871
        %v888 = vadd.f32 %v712, %v872
        %v889 = vadd.f32 %v713, %v873
        %v890 = vadd.f32 %v714, %v874
        %v891 = vadd.f32 %v715, %v875
        %v892 = vadd.f32 %v716, %v876
        %v893 = vadd.f32 %v717, %v877
        %v894 = vadd.f32 %v718, %v878
        %v895 = vadd.f32 %v719, %v879
        %vm896 = vcmp.lt.f32.partialorder %v480, 0.0
        %vm897 = vcmp.lt.f32.partialorder %v481, 0.0
        %vm898 = vcmp.lt.f32.partialorder %v482, 0.0
        %vm899 = vcmp.lt.f32.partialorder %v483, 0.0
        %vm900 = vcmp.lt.f32.partialorder %v484, 0.0
        %vm901 = vcmp.lt.f32.partialorder %v485, 0.0
        %vm902 = vcmp.lt.f32.partialorder %v486, 0.0
        %vm903 = vcmp.lt.f32.partialorder %v487, 0.0
        %vm904 = vcmp.lt.f32.partialorder %v488, 0.0
        %vm905 = vcmp.lt.f32.partialorder %v489, 0.0
        %vm906 = vcmp.lt.f32.partialorder %v490, 0.0
        %vm907 = vcmp.lt.f32.partialorder %v491, 0.0
        %vm908 = vcmp.lt.f32.partialorder %v492, 0.0
        %vm909 = vcmp.lt.f32.partialorder %v493, 0.0
        %vm910 = vcmp.lt.f32.partialorder %v494, 0.0
        %vm911 = vcmp.lt.f32.partialorder %v495, 0.0
        %v912 = vsub.f32 0.0, %v880
        %v913 = vsub.f32 0.0, %v881
        %v914 = vsub.f32 0.0, %v882
        %v915 = vsub.f32 0.0, %v883
        %v916 = vsub.f32 0.0, %v884
        %v917 = vsub.f32 0.0, %v885
        %v918 = vsub.f32 0.0, %v886
        %v919 = vsub.f32 0.0, %v887
        %v920 = vsub.f32 0.0, %v888
        %v921 = vsub.f32 0.0, %v889
        %v922 = vsub.f32 0.0, %v890
        %v923 = vsub.f32 0.0, %v891
        %v924 = vsub.f32 0.0, %v892
        %v925 = vsub.f32 0.0, %v893
        %v926 = vsub.f32 0.0, %v894
        %v927 = vsub.f32 0.0, %v895
        %v928 = vsel %vm896, %v912, %v880
        %v929 = vsel %vm897, %v913, %v881
        %v930 = vsel %vm898, %v914, %v882
        %v931 = vsel %vm899, %v915, %v883
        %v932 = vsel %vm900, %v916, %v884
        %v933 = vsel %vm901, %v917, %v885
        %v934 = vsel %vm902, %v918, %v886
        %v935 = vsel %vm903, %v919, %v887
        %v936 = vsel %vm904, %v920, %v888
        %v937 = vsel %vm905, %v921, %v889
        %v938 = vsel %vm906, %v922, %v890
        %v939 = vsel %vm907, %v923, %v891
        %v940 = vsel %vm908, %v924, %v892
        %v941 = vsel %vm909, %v925, %v893
        %v942 = vsel %vm910, %v926, %v894
        %v943 = vsel %vm911, %v927, %v895
        %v944 = vadd.f32 %v928, 3.455752
        %v945 = vadd.f32 %v929, 3.455752
        %v946 = vadd.f32 %v930, 3.455752
        %v947 = vadd.f32 %v931, 3.455752
        %v948 = vadd.f32 %v932, 3.455752
        %v949 = vadd.f32 %v933, 3.455752
        %v950 = vadd.f32 %v934, 3.455752
        %v951 = vadd.f32 %v935, 3.455752
        %v952 = vadd.f32 %v936, 3.455752
        %v953 = vadd.f32 %v937, 3.455752
        %v954 = vadd.f32 %v938, 3.455752
        %v955 = vadd.f32 %v939, 3.455752
        %v956 = vadd.f32 %v940, 3.455752
        %v957 = vadd.f32 %v941, 3.455752
        %v958 = vadd.f32 %v942, 3.455752
        %v959 = vadd.f32 %v943, 3.455752
        %v960 = vlog2.pop %v944
        %v961 = vmul.f32 %v960, 0.6931472
        %v962 = vlog2.pop %v945
        %v963 = vmul.f32 %v962, 0.6931472
        %v964 = vlog2.pop %v946
        %v965 = vmul.f32 %v964, 0.6931472
        %v966 = vlog2.pop %v947
        %v967 = vmul.f32 %v966, 0.6931472
        %v968 = vlog2.pop %v948
        %v969 = vmul.f32 %v968, 0.6931472
        %v970 = vlog2.pop %v949
        %v971 = vmul.f32 %v970, 0.6931472
        %v972 = vlog2.pop %v950
        %v973 = vmul.f32 %v972, 0.6931472
        %v974 = vlog2.pop %v951
        %v975 = vmul.f32 %v974, 0.6931472
        %v976 = vlog2.pop %v952
        %v977 = vmul.f32 %v976, 0.6931472
        %v978 = vlog2.pop %v953
        %v979 = vmul.f32 %v978, 0.6931472
        %v980 = vlog2.pop %v954
        %v981 = vmul.f32 %v980, 0.6931472
        %v982 = vlog2.pop %v955
        %v983 = vmul.f32 %v982, 0.6931472
        %v984 = vlog2.pop %v956
        %v985 = vmul.f32 %v984, 0.6931472
        %v986 = vlog2.pop %v957
        %v987 = vmul.f32 %v986, 0.6931472
        %v988 = vlog2.pop %v958
        %v989 = vmul.f32 %v988, 0.6931472
        %v990 = vlog2.pop %v959
        %v991 = vmul.f32 %v990, 0.6931472
        %v992 = vadd.f32 %v496, %v961
        %v993 = vadd.f32 %v497, %v963
        %v994 = vadd.f32 %v498, %v965
        %v995 = vadd.f32 %v499, %v967
        %v996 = vadd.f32 %v500, %v969
        %v997 = vadd.f32 %v501, %v971
        %v998 = vadd.f32 %v502, %v973
        %v999 = vadd.f32 %v503, %v975
        %v1000 = vadd.f32 %v504, %v977
        %v1001 = vadd.f32 %v505, %v979
        %v1002 = vadd.f32 %v506, %v981
        %v1003 = vadd.f32 %v507, %v983
        %v1004 = vadd.f32 %v508, %v985
        %v1005 = vadd.f32 %v509, %v987
        %v1006 = vadd.f32 %v510, %v989
        %v1007 = vadd.f32 %v511, %v991
        %vm1008 = vcmask 66560
        %1009 = vst.msk [vmem:[#allocation2] sm:$0x3] %vm1008, %v992
        %1010 = vst.msk [vmem:[#allocation2 + $0x2] sm:$0x3] %vm1008, %v993
        %1011 = vst.msk [vmem:[#allocation2 + $0x4] sm:$0x3] %vm1008, %v994
        %1012 = vst.msk [vmem:[#allocation2 + $0x6] sm:$0x3] %vm1008, %v995
        %1013 = vst.msk [vmem:[#allocation2 + $0x8] sm:$0x3] %vm1008, %v996
        %1014 = vst.msk [vmem:[#allocation2 + $0xa] sm:$0x3] %vm1008, %v997
        %1015 = vst.msk [vmem:[#allocation2 + $0xc] sm:$0x3] %vm1008, %v998
        %1016 = vst.msk [vmem:[#allocation2 + $0xe] sm:$0x3] %vm1008, %v999
        %1017 = vst.msk [vmem:[#allocation2 + $0x10] sm:$0x3] %vm1008, %v1000
        %1018 = vst.msk [vmem:[#allocation2 + $0x12] sm:$0x3] %vm1008, %v1001
        %1019 = vst.msk [vmem:[#allocation2 + $0x14] sm:$0x3] %vm1008, %v1002
        %1020 = vst.msk [vmem:[#allocation2 + $0x16] sm:$0x3] %vm1008, %v1003
        %1021 = vst.msk [vmem:[#allocation2 + $0x18] sm:$0x3] %vm1008, %v1004
        %1022 = vst.msk [vmem:[#allocation2 + $0x1a] sm:$0x3] %vm1008, %v1005
        %1023 = vst.msk [vmem:[#allocation2 + $0x1c] sm:$0x3] %vm1008, %v1006
        %1024 = vst.msk [vmem:[#allocation2 + $0x1e] sm:$0x3] %vm1008, %v1007
        %s1025 = scalar_lea.vmem %s322, 1
        %v1026 = vld [vmem:[%s1025] sm:$0x1]
        %s1027 = scalar_lea.vmem %s326, 1
        %v1028 = vld [vmem:[%s1027] sm:$0x1]
        %v1030 = vlaneseq
        %v1031 = vshrl.u32 %v1030, 7
        %v1032 = vsub.s32 0, %v1031
        %v1033 = vrot.slane %v1026, %v1032
        %1034 = vset.pattern.permute.xlu0 0
        %1035 = vperm.xlu0 %1034, %v1033
        %v1036 = vpop.permute.xlu0 %1035
        %v1038 = vmul.f32 %v428, %v1036
        %v1039 = vmul.f32 %v429, %v1036
        %v1040 = vmul.f32 %v430, %v1036
        %v1041 = vmul.f32 %v431, %v1036
        %v1042 = vmul.f32 %v432, %v1036
        %v1043 = vmul.f32 %v433, %v1036
        %v1044 = vmul.f32 %v434, %v1036
        %v1045 = vmul.f32 %v435, %v1036
        %v1046 = vmul.f32 %v436, %v1036
        %v1047 = vmul.f32 %v437, %v1036
        %v1048 = vmul.f32 %v438, %v1036
        %v1049 = vmul.f32 %v439, %v1036
        %v1050 = vmul.f32 %v440, %v1036
        %v1051 = vmul.f32 %v441, %v1036
        %v1052 = vmul.f32 %v442, %v1036
        %v1053 = vmul.f32 %v443, %v1036
        %v1055 = vlaneseq
        %v1056 = vshrl.u32 %v1055, 7
        %v1057 = vsub.s32 0, %v1056
        %v1058 = vrot.slane %v1028, %v1057
        %1059 = vset.pattern.permute.xlu0 0
        %1060 = vperm.xlu0 %1059, %v1058
        %v1061 = vpop.permute.xlu0 %1060
        %v1063 = vsub.f32 %v1038, %v1061
        %v1064 = vsub.f32 %v1039, %v1061
        %v1065 = vsub.f32 %v1040, %v1061
        %v1066 = vsub.f32 %v1041, %v1061
        %v1067 = vsub.f32 %v1042, %v1061
        %v1068 = vsub.f32 %v1043, %v1061
        %v1069 = vsub.f32 %v1044, %v1061
        %v1070 = vsub.f32 %v1045, %v1061
        %v1071 = vsub.f32 %v1046, %v1061
        %v1072 = vsub.f32 %v1047, %v1061
        %v1073 = vsub.f32 %v1048, %v1061
        %v1074 = vsub.f32 %v1049, %v1061
        %v1075 = vsub.f32 %v1050, %v1061
        %v1076 = vsub.f32 %v1051, %v1061
        %v1077 = vsub.f32 %v1052, %v1061
        %v1078 = vsub.f32 %v1053, %v1061
        %s1079 = scalar_lea.vmem [#allocation2], 32
        %v1080 = vld [vmem:[%s1079] sm:$0x3]
        %v1081 = vld [vmem:[%s1079 + $0x2] sm:$0x3]
        %v1082 = vld [vmem:[%s1079 + $0x4] sm:$0x3]
        %v1083 = vld [vmem:[%s1079 + $0x6] sm:$0x3]
        %v1084 = vld [vmem:[%s1079 + $0x8] sm:$0x3]
        %v1085 = vld [vmem:[%s1079 + $0xa] sm:$0x3]
        %v1086 = vld [vmem:[%s1079 + $0xc] sm:$0x3]
        %v1087 = vld [vmem:[%s1079 + $0xe] sm:$0x3]
        %v1088 = vld [vmem:[%s1079 + $0x10] sm:$0x3]
        %v1089 = vld [vmem:[%s1079 + $0x12] sm:$0x3]
        %v1090 = vld [vmem:[%s1079 + $0x14] sm:$0x3]
        %v1091 = vld [vmem:[%s1079 + $0x16] sm:$0x3]
        %v1092 = vld [vmem:[%s1079 + $0x18] sm:$0x3]
        %v1093 = vld [vmem:[%s1079 + $0x1a] sm:$0x3]
        %v1094 = vld [vmem:[%s1079 + $0x1c] sm:$0x3]
        %v1095 = vld [vmem:[%s1079 + $0x1e] sm:$0x3]
        %v1096 = vand.u32 2147483647, %v1063
        %v1097 = vand.u32 2147483647, %v1064
        %v1098 = vand.u32 2147483647, %v1065
        %v1099 = vand.u32 2147483647, %v1066
        %v1100 = vand.u32 2147483647, %v1067
        %v1101 = vand.u32 2147483647, %v1068
        %v1102 = vand.u32 2147483647, %v1069
        %v1103 = vand.u32 2147483647, %v1070
        %v1104 = vand.u32 2147483647, %v1071
        %v1105 = vand.u32 2147483647, %v1072
        %v1106 = vand.u32 2147483647, %v1073
        %v1107 = vand.u32 2147483647, %v1074
        %v1108 = vand.u32 2147483647, %v1075
        %v1109 = vand.u32 2147483647, %v1076
        %v1110 = vand.u32 2147483647, %v1077
        %v1111 = vand.u32 2147483647, %v1078
        %vm1112 = vcmp.gt.f32.partialorder %v1096, 2.4142137
        %vm1113 = vcmp.gt.f32.partialorder %v1097, 2.4142137
        %vm1114 = vcmp.gt.f32.partialorder %v1098, 2.4142137
        %vm1115 = vcmp.gt.f32.partialorder %v1099, 2.4142137
        %vm1116 = vcmp.gt.f32.partialorder %v1100, 2.4142137
        %vm1117 = vcmp.gt.f32.partialorder %v1101, 2.4142137
        %vm1118 = vcmp.gt.f32.partialorder %v1102, 2.4142137
        %vm1119 = vcmp.gt.f32.partialorder %v1103, 2.4142137
        %vm1120 = vcmp.gt.f32.partialorder %v1104, 2.4142137
        %vm1121 = vcmp.gt.f32.partialorder %v1105, 2.4142137
        %vm1122 = vcmp.gt.f32.partialorder %v1106, 2.4142137
        %vm1123 = vcmp.gt.f32.partialorder %v1107, 2.4142137
        %vm1124 = vcmp.gt.f32.partialorder %v1108, 2.4142137
        %vm1125 = vcmp.gt.f32.partialorder %v1109, 2.4142137
        %vm1126 = vcmp.gt.f32.partialorder %v1110, 2.4142137
        %vm1127 = vcmp.gt.f32.partialorder %v1111, 2.4142137
        %vm1128 = vcmp.gt.f32.partialorder %v1096, 0.41421357
        %vm1129 = vcmp.gt.f32.partialorder %v1097, 0.41421357
        %vm1130 = vcmp.gt.f32.partialorder %v1098, 0.41421357
        %vm1131 = vcmp.gt.f32.partialorder %v1099, 0.41421357
        %vm1132 = vcmp.gt.f32.partialorder %v1100, 0.41421357
        %vm1133 = vcmp.gt.f32.partialorder %v1101, 0.41421357
        %vm1134 = vcmp.gt.f32.partialorder %v1102, 0.41421357
        %vm1135 = vcmp.gt.f32.partialorder %v1103, 0.41421357
        %vm1136 = vcmp.gt.f32.partialorder %v1104, 0.41421357
        %vm1137 = vcmp.gt.f32.partialorder %v1105, 0.41421357
        %vm1138 = vcmp.gt.f32.partialorder %v1106, 0.41421357
        %vm1139 = vcmp.gt.f32.partialorder %v1107, 0.41421357
        %vm1140 = vcmp.gt.f32.partialorder %v1108, 0.41421357
        %vm1141 = vcmp.gt.f32.partialorder %v1109, 0.41421357
        %vm1142 = vcmp.gt.f32.partialorder %v1110, 0.41421357
        %vm1143 = vcmp.gt.f32.partialorder %v1111, 0.41421357
        %v1144 = vsub.f32 %v1096, 1.0
        %v1145 = vsub.f32 %v1097, 1.0
        %v1146 = vsub.f32 %v1098, 1.0
        %v1147 = vsub.f32 %v1099, 1.0
        %v1148 = vsub.f32 %v1100, 1.0
        %v1149 = vsub.f32 %v1101, 1.0
        %v1150 = vsub.f32 %v1102, 1.0
        %v1151 = vsub.f32 %v1103, 1.0
        %v1152 = vsub.f32 %v1104, 1.0
        %v1153 = vsub.f32 %v1105, 1.0
        %v1154 = vsub.f32 %v1106, 1.0
        %v1155 = vsub.f32 %v1107, 1.0
        %v1156 = vsub.f32 %v1108, 1.0
        %v1157 = vsub.f32 %v1109, 1.0
        %v1158 = vsub.f32 %v1110, 1.0
        %v1159 = vsub.f32 %v1111, 1.0
        %v1160 = vsel %vm1128, %v1144, %v1096
        %v1161 = vsel %vm1129, %v1145, %v1097
        %v1162 = vsel %vm1130, %v1146, %v1098
        %v1163 = vsel %vm1131, %v1147, %v1099
        %v1164 = vsel %vm1132, %v1148, %v1100
        %v1165 = vsel %vm1133, %v1149, %v1101
        %v1166 = vsel %vm1134, %v1150, %v1102
        %v1167 = vsel %vm1135, %v1151, %v1103
        %v1168 = vsel %vm1136, %v1152, %v1104
        %v1169 = vsel %vm1137, %v1153, %v1105
        %v1170 = vsel %vm1138, %v1154, %v1106
        %v1171 = vsel %vm1139, %v1155, %v1107
        %v1172 = vsel %vm1140, %v1156, %v1108
        %v1173 = vsel %vm1141, %v1157, %v1109
        %v1174 = vsel %vm1142, %v1158, %v1110
        %v1175 = vsel %vm1143, %v1159, %v1111
        %v1176 = vsel %vm1112, -1.0, %v1160
        %v1177 = vsel %vm1113, -1.0, %v1161
        %v1178 = vsel %vm1114, -1.0, %v1162
        %v1179 = vsel %vm1115, -1.0, %v1163
        %v1180 = vsel %vm1116, -1.0, %v1164
        %v1181 = vsel %vm1117, -1.0, %v1165
        %v1182 = vsel %vm1118, -1.0, %v1166
        %v1183 = vsel %vm1119, -1.0, %v1167
        %v1184 = vsel %vm1120, -1.0, %v1168
        %v1185 = vsel %vm1121, -1.0, %v1169
        %v1186 = vsel %vm1122, -1.0, %v1170
        %v1187 = vsel %vm1123, -1.0, %v1171
        %v1188 = vsel %vm1124, -1.0, %v1172
        %v1189 = vsel %vm1125, -1.0, %v1173
        %v1190 = vsel %vm1126, -1.0, %v1174
        %v1191 = vsel %vm1127, -1.0, %v1175
        %v1192 = vadd.f32 %v1096, 1.0
        %v1193 = vadd.f32 %v1097, 1.0
        %v1194 = vadd.f32 %v1098, 1.0
        %v1195 = vadd.f32 %v1099, 1.0
        %v1196 = vadd.f32 %v1100, 1.0
        %v1197 = vadd.f32 %v1101, 1.0
        %v1198 = vadd.f32 %v1102, 1.0
        %v1199 = vadd.f32 %v1103, 1.0
        %v1200 = vadd.f32 %v1104, 1.0
        %v1201 = vadd.f32 %v1105, 1.0
        %v1202 = vadd.f32 %v1106, 1.0
        %v1203 = vadd.f32 %v1107, 1.0
        %v1204 = vadd.f32 %v1108, 1.0
        %v1205 = vadd.f32 %v1109, 1.0
        %v1206 = vadd.f32 %v1110, 1.0
        %v1207 = vadd.f32 %v1111, 1.0
        %v1208 = vsel %vm1128, %v1192, 1.0
        %v1209 = vsel %vm1129, %v1193, 1.0
        %v1210 = vsel %vm1130, %v1194, 1.0
        %v1211 = vsel %vm1131, %v1195, 1.0
        %v1212 = vsel %vm1132, %v1196, 1.0
        %v1213 = vsel %vm1133, %v1197, 1.0
        %v1214 = vsel %vm1134, %v1198, 1.0
        %v1215 = vsel %vm1135, %v1199, 1.0
        %v1216 = vsel %vm1136, %v1200, 1.0
        %v1217 = vsel %vm1137, %v1201, 1.0
        %v1218 = vsel %vm1138, %v1202, 1.0
        %v1219 = vsel %vm1139, %v1203, 1.0
        %v1220 = vsel %vm1140, %v1204, 1.0
        %v1221 = vsel %vm1141, %v1205, 1.0
        %v1222 = vsel %vm1142, %v1206, 1.0
        %v1223 = vsel %vm1143, %v1207, 1.0
        %v1224 = vsel %vm1112, %v1096, %v1208
        %v1225 = vsel %vm1113, %v1097, %v1209
        %v1226 = vsel %vm1114, %v1098, %v1210
        %v1227 = vsel %vm1115, %v1099, %v1211
        %v1228 = vsel %vm1116, %v1100, %v1212
        %v1229 = vsel %vm1117, %v1101, %v1213
        %v1230 = vsel %vm1118, %v1102, %v1214
        %v1231 = vsel %vm1119, %v1103, %v1215
        %v1232 = vsel %vm1120, %v1104, %v1216
        %v1233 = vsel %vm1121, %v1105, %v1217
        %v1234 = vsel %vm1122, %v1106, %v1218
        %v1235 = vsel %vm1123, %v1107, %v1219
        %v1236 = vsel %vm1124, %v1108, %v1220
        %v1237 = vsel %vm1125, %v1109, %v1221
        %v1238 = vsel %vm1126, %v1110, %v1222
        %v1239 = vsel %vm1127, %v1111, %v1223
        %v1240 = vrcp.pop %v1224
        %v1241 = vmul.f32 %v1176, %v1240
        %v1242 = vrcp.pop %v1225
        %v1243 = vmul.f32 %v1177, %v1242
        %v1244 = vrcp.pop %v1226
        %v1245 = vmul.f32 %v1178, %v1244
        %v1246 = vrcp.pop %v1227
        %v1247 = vmul.f32 %v1179, %v1246
        %v1248 = vrcp.pop %v1228
        %v1249 = vmul.f32 %v1180, %v1248
        %v1250 = vrcp.pop %v1229
        %v1251 = vmul.f32 %v1181, %v1250
        %v1252 = vrcp.pop %v1230
        %v1253 = vmul.f32 %v1182, %v1252
        %v1254 = vrcp.pop %v1231
        %v1255 = vmul.f32 %v1183, %v1254
        %v1256 = vrcp.pop %v1232
        %v1257 = vmul.f32 %v1184, %v1256
        %v1258 = vrcp.pop %v1233
        %v1259 = vmul.f32 %v1185, %v1258
        %v1260 = vrcp.pop %v1234
        %v1261 = vmul.f32 %v1186, %v1260
        %v1262 = vrcp.pop %v1235
        %v1263 = vmul.f32 %v1187, %v1262
        %v1264 = vrcp.pop %v1236
        %v1265 = vmul.f32 %v1188, %v1264
        %v1266 = vrcp.pop %v1237
        %v1267 = vmul.f32 %v1189, %v1266
        %v1268 = vrcp.pop %v1238
        %v1269 = vmul.f32 %v1190, %v1268
        %v1270 = vrcp.pop %v1239
        %v1271 = vmul.f32 %v1191, %v1270
        %v1272 = vsel %vm1128, 0.7853982, 0.0
        %v1273 = vsel %vm1129, 0.7853982, 0.0
        %v1274 = vsel %vm1130, 0.7853982, 0.0
        %v1275 = vsel %vm1131, 0.7853982, 0.0
        %v1276 = vsel %vm1132, 0.7853982, 0.0
        %v1277 = vsel %vm1133, 0.7853982, 0.0
        %v1278 = vsel %vm1134, 0.7853982, 0.0
        %v1279 = vsel %vm1135, 0.7853982, 0.0
        %v1280 = vsel %vm1136, 0.7853982, 0.0
        %v1281 = vsel %vm1137, 0.7853982, 0.0
        %v1282 = vsel %vm1138, 0.7853982, 0.0
        %v1283 = vsel %vm1139, 0.7853982, 0.0
        %v1284 = vsel %vm1140, 0.7853982, 0.0
        %v1285 = vsel %vm1141, 0.7853982, 0.0
        %v1286 = vsel %vm1142, 0.7853982, 0.0
        %v1287 = vsel %vm1143, 0.7853982, 0.0
        %v1288 = vsel %vm1112, 1.5707964, %v1272
        %v1289 = vsel %vm1113, 1.5707964, %v1273
        %v1290 = vsel %vm1114, 1.5707964, %v1274
        %v1291 = vsel %vm1115, 1.5707964, %v1275
        %v1292 = vsel %vm1116, 1.5707964, %v1276
        %v1293 = vsel %vm1117, 1.5707964, %v1277
        %v1294 = vsel %vm1118, 1.5707964, %v1278
        %v1295 = vsel %vm1119, 1.5707964, %v1279
        %v1296 = vsel %vm1120, 1.5707964, %v1280
        %v1297 = vsel %vm1121, 1.5707964, %v1281
        %v1298 = vsel %vm1122, 1.5707964, %v1282
        %v1299 = vsel %vm1123, 1.5707964, %v1283
        %v1300 = vsel %vm1124, 1.5707964, %v1284
        %v1301 = vsel %vm1125, 1.5707964, %v1285
        %v1302 = vsel %vm1126, 1.5707964, %v1286
        %v1303 = vsel %vm1127, 1.5707964, %v1287
        %v1304 = vmul.f32 %v1241, %v1241
        %v1305 = vmul.f32 %v1243, %v1243
        %v1306 = vmul.f32 %v1245, %v1245
        %v1307 = vmul.f32 %v1247, %v1247
        %v1308 = vmul.f32 %v1249, %v1249
        %v1309 = vmul.f32 %v1251, %v1251
        %v1310 = vmul.f32 %v1253, %v1253
        %v1311 = vmul.f32 %v1255, %v1255
        %v1312 = vmul.f32 %v1257, %v1257
        %v1313 = vmul.f32 %v1259, %v1259
        %v1314 = vmul.f32 %v1261, %v1261
        %v1315 = vmul.f32 %v1263, %v1263
        %v1316 = vmul.f32 %v1265, %v1265
        %v1317 = vmul.f32 %v1267, %v1267
        %v1318 = vmul.f32 %v1269, %v1269
        %v1319 = vmul.f32 %v1271, %v1271
        %v1320 = vmul.f32 %v1304, 0.080537446
        %v1321 = vmul.f32 %v1305, 0.080537446
        %v1322 = vmul.f32 %v1306, 0.080537446
        %v1323 = vmul.f32 %v1307, 0.080537446
        %v1324 = vmul.f32 %v1308, 0.080537446
        %v1325 = vmul.f32 %v1309, 0.080537446
        %v1326 = vmul.f32 %v1310, 0.080537446
        %v1327 = vmul.f32 %v1311, 0.080537446
        %v1328 = vmul.f32 %v1312, 0.080537446
        %v1329 = vmul.f32 %v1313, 0.080537446
        %v1330 = vmul.f32 %v1314, 0.080537446
        %v1331 = vmul.f32 %v1315, 0.080537446
        %v1332 = vmul.f32 %v1316, 0.080537446
        %v1333 = vmul.f32 %v1317, 0.080537446
        %v1334 = vmul.f32 %v1318, 0.080537446
        %v1335 = vmul.f32 %v1319, 0.080537446
        %v1336 = vsub.f32 %v1320, 0.13877685
        %v1337 = vsub.f32 %v1321, 0.13877685
        %v1338 = vsub.f32 %v1322, 0.13877685
        %v1339 = vsub.f32 %v1323, 0.13877685
        %v1340 = vsub.f32 %v1324, 0.13877685
        %v1341 = vsub.f32 %v1325, 0.13877685
        %v1342 = vsub.f32 %v1326, 0.13877685
        %v1343 = vsub.f32 %v1327, 0.13877685
        %v1344 = vsub.f32 %v1328, 0.13877685
        %v1345 = vsub.f32 %v1329, 0.13877685
        %v1346 = vsub.f32 %v1330, 0.13877685
        %v1347 = vsub.f32 %v1331, 0.13877685
        %v1348 = vsub.f32 %v1332, 0.13877685
        %v1349 = vsub.f32 %v1333, 0.13877685
        %v1350 = vsub.f32 %v1334, 0.13877685
        %v1351 = vsub.f32 %v1335, 0.13877685
        %v1352 = vmul.f32 %v1336, %v1304
        %v1353 = vmul.f32 %v1337, %v1305
        %v1354 = vmul.f32 %v1338, %v1306
        %v1355 = vmul.f32 %v1339, %v1307
        %v1356 = vmul.f32 %v1340, %v1308
        %v1357 = vmul.f32 %v1341, %v1309
        %v1358 = vmul.f32 %v1342, %v1310
        %v1359 = vmul.f32 %v1343, %v1311
        %v1360 = vmul.f32 %v1344, %v1312
        %v1361 = vmul.f32 %v1345, %v1313
        %v1362 = vmul.f32 %v1346, %v1314
        %v1363 = vmul.f32 %v1347, %v1315
        %v1364 = vmul.f32 %v1348, %v1316
        %v1365 = vmul.f32 %v1349, %v1317
        %v1366 = vmul.f32 %v1350, %v1318
        %v1367 = vmul.f32 %v1351, %v1319
        %v1368 = vadd.f32 %v1352, 0.19977711
        %v1369 = vadd.f32 %v1353, 0.19977711
        %v1370 = vadd.f32 %v1354, 0.19977711
        %v1371 = vadd.f32 %v1355, 0.19977711
        %v1372 = vadd.f32 %v1356, 0.19977711
        %v1373 = vadd.f32 %v1357, 0.19977711
        %v1374 = vadd.f32 %v1358, 0.19977711
        %v1375 = vadd.f32 %v1359, 0.19977711
        %v1376 = vadd.f32 %v1360, 0.19977711
        %v1377 = vadd.f32 %v1361, 0.19977711
        %v1378 = vadd.f32 %v1362, 0.19977711
        %v1379 = vadd.f32 %v1363, 0.19977711
        %v1380 = vadd.f32 %v1364, 0.19977711
        %v1381 = vadd.f32 %v1365, 0.19977711
        %v1382 = vadd.f32 %v1366, 0.19977711
        %v1383 = vadd.f32 %v1367, 0.19977711
        %v1384 = vmul.f32 %v1368, %v1304
        %v1385 = vmul.f32 %v1369, %v1305
        %v1386 = vmul.f32 %v1370, %v1306
        %v1387 = vmul.f32 %v1371, %v1307
        %v1388 = vmul.f32 %v1372, %v1308
        %v1389 = vmul.f32 %v1373, %v1309
        %v1390 = vmul.f32 %v1374, %v1310
        %v1391 = vmul.f32 %v1375, %v1311
        %v1392 = vmul.f32 %v1376, %v1312
        %v1393 = vmul.f32 %v1377, %v1313
        %v1394 = vmul.f32 %v1378, %v1314
        %v1395 = vmul.f32 %v1379, %v1315
        %v1396 = vmul.f32 %v1380, %v1316
        %v1397 = vmul.f32 %v1381, %v1317
        %v1398 = vmul.f32 %v1382, %v1318
        %v1399 = vmul.f32 %v1383, %v1319
        %v1400 = vsub.f32 %v1384, 0.3333295
        %v1401 = vsub.f32 %v1385, 0.3333295
        %v1402 = vsub.f32 %v1386, 0.3333295
        %v1403 = vsub.f32 %v1387, 0.3333295
        %v1404 = vsub.f32 %v1388, 0.3333295
        %v1405 = vsub.f32 %v1389, 0.3333295
        %v1406 = vsub.f32 %v1390, 0.3333295
        %v1407 = vsub.f32 %v1391, 0.3333295
        %v1408 = vsub.f32 %v1392, 0.3333295
        %v1409 = vsub.f32 %v1393, 0.3333295
        %v1410 = vsub.f32 %v1394, 0.3333295
        %v1411 = vsub.f32 %v1395, 0.3333295
        %v1412 = vsub.f32 %v1396, 0.3333295
        %v1413 = vsub.f32 %v1397, 0.3333295
        %v1414 = vsub.f32 %v1398, 0.3333295
        %v1415 = vsub.f32 %v1399, 0.3333295
        %v1416 = vmul.f32 %v1400, %v1304
        %v1417 = vmul.f32 %v1401, %v1305
        %v1418 = vmul.f32 %v1402, %v1306
        %v1419 = vmul.f32 %v1403, %v1307
        %v1420 = vmul.f32 %v1404, %v1308
        %v1421 = vmul.f32 %v1405, %v1309
        %v1422 = vmul.f32 %v1406, %v1310
        %v1423 = vmul.f32 %v1407, %v1311
        %v1424 = vmul.f32 %v1408, %v1312
        %v1425 = vmul.f32 %v1409, %v1313
        %v1426 = vmul.f32 %v1410, %v1314
        %v1427 = vmul.f32 %v1411, %v1315
        %v1428 = vmul.f32 %v1412, %v1316
        %v1429 = vmul.f32 %v1413, %v1317
        %v1430 = vmul.f32 %v1414, %v1318
        %v1431 = vmul.f32 %v1415, %v1319
        %v1432 = vmul.f32 %v1416, %v1241
        %v1433 = vmul.f32 %v1417, %v1243
        %v1434 = vmul.f32 %v1418, %v1245
        %v1435 = vmul.f32 %v1419, %v1247
        %v1436 = vmul.f32 %v1420, %v1249
        %v1437 = vmul.f32 %v1421, %v1251
        %v1438 = vmul.f32 %v1422, %v1253
        %v1439 = vmul.f32 %v1423, %v1255
        %v1440 = vmul.f32 %v1424, %v1257
        %v1441 = vmul.f32 %v1425, %v1259
        %v1442 = vmul.f32 %v1426, %v1261
        %v1443 = vmul.f32 %v1427, %v1263
        %v1444 = vmul.f32 %v1428, %v1265
        %v1445 = vmul.f32 %v1429, %v1267
        %v1446 = vmul.f32 %v1430, %v1269
        %v1447 = vmul.f32 %v1431, %v1271
        %v1448 = vadd.f32 %v1432, %v1241
        %v1449 = vadd.f32 %v1433, %v1243
        %v1450 = vadd.f32 %v1434, %v1245
        %v1451 = vadd.f32 %v1435, %v1247
        %v1452 = vadd.f32 %v1436, %v1249
        %v1453 = vadd.f32 %v1437, %v1251
        %v1454 = vadd.f32 %v1438, %v1253
        %v1455 = vadd.f32 %v1439, %v1255
        %v1456 = vadd.f32 %v1440, %v1257
        %v1457 = vadd.f32 %v1441, %v1259
        %v1458 = vadd.f32 %v1442, %v1261
        %v1459 = vadd.f32 %v1443, %v1263
        %v1460 = vadd.f32 %v1444, %v1265
        %v1461 = vadd.f32 %v1445, %v1267
        %v1462 = vadd.f32 %v1446, %v1269
        %v1463 = vadd.f32 %v1447, %v1271
        %v1464 = vadd.f32 %v1288, %v1448
        %v1465 = vadd.f32 %v1289, %v1449
        %v1466 = vadd.f32 %v1290, %v1450
        %v1467 = vadd.f32 %v1291, %v1451
        %v1468 = vadd.f32 %v1292, %v1452
        %v1469 = vadd.f32 %v1293, %v1453
        %v1470 = vadd.f32 %v1294, %v1454
        %v1471 = vadd.f32 %v1295, %v1455
        %v1472 = vadd.f32 %v1296, %v1456
        %v1473 = vadd.f32 %v1297, %v1457
        %v1474 = vadd.f32 %v1298, %v1458
        %v1475 = vadd.f32 %v1299, %v1459
        %v1476 = vadd.f32 %v1300, %v1460
        %v1477 = vadd.f32 %v1301, %v1461
        %v1478 = vadd.f32 %v1302, %v1462
        %v1479 = vadd.f32 %v1303, %v1463
        %vm1480 = vcmp.lt.f32.partialorder %v1063, 0.0
        %vm1481 = vcmp.lt.f32.partialorder %v1064, 0.0
        %vm1482 = vcmp.lt.f32.partialorder %v1065, 0.0
        %vm1483 = vcmp.lt.f32.partialorder %v1066, 0.0
        %vm1484 = vcmp.lt.f32.partialorder %v1067, 0.0
        %vm1485 = vcmp.lt.f32.partialorder %v1068, 0.0
        %vm1486 = vcmp.lt.f32.partialorder %v1069, 0.0
        %vm1487 = vcmp.lt.f32.partialorder %v1070, 0.0
        %vm1488 = vcmp.lt.f32.partialorder %v1071, 0.0
        %vm1489 = vcmp.lt.f32.partialorder %v1072, 0.0
        %vm1490 = vcmp.lt.f32.partialorder %v1073, 0.0
        %vm1491 = vcmp.lt.f32.partialorder %v1074, 0.0
        %vm1492 = vcmp.lt.f32.partialorder %v1075, 0.0
        %vm1493 = vcmp.lt.f32.partialorder %v1076, 0.0
        %vm1494 = vcmp.lt.f32.partialorder %v1077, 0.0
        %vm1495 = vcmp.lt.f32.partialorder %v1078, 0.0
        %v1496 = vsub.f32 0.0, %v1464
        %v1497 = vsub.f32 0.0, %v1465
        %v1498 = vsub.f32 0.0, %v1466
        %v1499 = vsub.f32 0.0, %v1467
        %v1500 = vsub.f32 0.0, %v1468
        %v1501 = vsub.f32 0.0, %v1469
        %v1502 = vsub.f32 0.0, %v1470
        %v1503 = vsub.f32 0.0, %v1471
        %v1504 = vsub.f32 0.0, %v1472
        %v1505 = vsub.f32 0.0, %v1473
        %v1506 = vsub.f32 0.0, %v1474
        %v1507 = vsub.f32 0.0, %v1475
        %v1508 = vsub.f32 0.0, %v1476
        %v1509 = vsub.f32 0.0, %v1477
        %v1510 = vsub.f32 0.0, %v1478
        %v1511 = vsub.f32 0.0, %v1479
        %v1512 = vsel %vm1480, %v1496, %v1464
        %v1513 = vsel %vm1481, %v1497, %v1465
        %v1514 = vsel %vm1482, %v1498, %v1466
        %v1515 = vsel %vm1483, %v1499, %v1467
        %v1516 = vsel %vm1484, %v1500, %v1468
        %v1517 = vsel %vm1485, %v1501, %v1469
        %v1518 = vsel %vm1486, %v1502, %v1470
        %v1519 = vsel %vm1487, %v1503, %v1471
        %v1520 = vsel %vm1488, %v1504, %v1472
        %v1521 = vsel %vm1489, %v1505, %v1473
        %v1522 = vsel %vm1490, %v1506, %v1474
        %v1523 = vsel %vm1491, %v1507, %v1475
        %v1524 = vsel %vm1492, %v1508, %v1476
        %v1525 = vsel %vm1493, %v1509, %v1477
        %v1526 = vsel %vm1494, %v1510, %v1478
        %v1527 = vsel %vm1495, %v1511, %v1479
        %v1528 = vadd.f32 %v1512, 3.455752
        %v1529 = vadd.f32 %v1513, 3.455752
        %v1530 = vadd.f32 %v1514, 3.455752
        %v1531 = vadd.f32 %v1515, 3.455752
        %v1532 = vadd.f32 %v1516, 3.455752
        %v1533 = vadd.f32 %v1517, 3.455752
        %v1534 = vadd.f32 %v1518, 3.455752
        %v1535 = vadd.f32 %v1519, 3.455752
        %v1536 = vadd.f32 %v1520, 3.455752
        %v1537 = vadd.f32 %v1521, 3.455752
        %v1538 = vadd.f32 %v1522, 3.455752
        %v1539 = vadd.f32 %v1523, 3.455752
        %v1540 = vadd.f32 %v1524, 3.455752
        %v1541 = vadd.f32 %v1525, 3.455752
        %v1542 = vadd.f32 %v1526, 3.455752
        %v1543 = vadd.f32 %v1527, 3.455752
        %v1544 = vlog2.pop %v1528
        %v1545 = vmul.f32 %v1544, 0.6931472
        %v1546 = vlog2.pop %v1529
        %v1547 = vmul.f32 %v1546, 0.6931472
        %v1548 = vlog2.pop %v1530
        %v1549 = vmul.f32 %v1548, 0.6931472
        %v1550 = vlog2.pop %v1531
        %v1551 = vmul.f32 %v1550, 0.6931472
        %v1552 = vlog2.pop %v1532
        %v1553 = vmul.f32 %v1552, 0.6931472
        %v1554 = vlog2.pop %v1533
        %v1555 = vmul.f32 %v1554, 0.6931472
        %v1556 = vlog2.pop %v1534
        %v1557 = vmul.f32 %v1556, 0.6931472
        %v1558 = vlog2.pop %v1535
        %v1559 = vmul.f32 %v1558, 0.6931472
        %v1560 = vlog2.pop %v1536
        %v1561 = vmul.f32 %v1560, 0.6931472
        %v1562 = vlog2.pop %v1537
        %v1563 = vmul.f32 %v1562, 0.6931472
        %v1564 = vlog2.pop %v1538
        %v1565 = vmul.f32 %v1564, 0.6931472
        %v1566 = vlog2.pop %v1539
        %v1567 = vmul.f32 %v1566, 0.6931472
        %v1568 = vlog2.pop %v1540
        %v1569 = vmul.f32 %v1568, 0.6931472
        %v1570 = vlog2.pop %v1541
        %v1571 = vmul.f32 %v1570, 0.6931472
        %v1572 = vlog2.pop %v1542
        %v1573 = vmul.f32 %v1572, 0.6931472
        %v1574 = vlog2.pop %v1543
        %v1575 = vmul.f32 %v1574, 0.6931472
        %v1576 = vadd.f32 %v1080, %v1545
        %v1577 = vadd.f32 %v1081, %v1547
        %v1578 = vadd.f32 %v1082, %v1549
        %v1579 = vadd.f32 %v1083, %v1551
        %v1580 = vadd.f32 %v1084, %v1553
        %v1581 = vadd.f32 %v1085, %v1555
        %v1582 = vadd.f32 %v1086, %v1557
        %v1583 = vadd.f32 %v1087, %v1559
        %v1584 = vadd.f32 %v1088, %v1561
        %v1585 = vadd.f32 %v1089, %v1563
        %v1586 = vadd.f32 %v1090, %v1565
        %v1587 = vadd.f32 %v1091, %v1567
        %v1588 = vadd.f32 %v1092, %v1569
        %v1589 = vadd.f32 %v1093, %v1571
        %v1590 = vadd.f32 %v1094, %v1573
        %v1591 = vadd.f32 %v1095, %v1575
        %1592 = vst.msk [vmem:[%s1079] sm:$0x3] %vm1008, %v1576
        %1593 = vst.msk [vmem:[%s1079 + $0x2] sm:$0x3] %vm1008, %v1577
        %1594 = vst.msk [vmem:[%s1079 + $0x4] sm:$0x3] %vm1008, %v1578
        %1595 = vst.msk [vmem:[%s1079 + $0x6] sm:$0x3] %vm1008, %v1579
        %1596 = vst.msk [vmem:[%s1079 + $0x8] sm:$0x3] %vm1008, %v1580
        %1597 = vst.msk [vmem:[%s1079 + $0xa] sm:$0x3] %vm1008, %v1581
        %1598 = vst.msk [vmem:[%s1079 + $0xc] sm:$0x3] %vm1008, %v1582
        %1599 = vst.msk [vmem:[%s1079 + $0xe] sm:$0x3] %vm1008, %v1583
        %1600 = vst.msk [vmem:[%s1079 + $0x10] sm:$0x3] %vm1008, %v1584
        %1601 = vst.msk [vmem:[%s1079 + $0x12] sm:$0x3] %vm1008, %v1585
        %1602 = vst.msk [vmem:[%s1079 + $0x14] sm:$0x3] %vm1008, %v1586
        %1603 = vst.msk [vmem:[%s1079 + $0x16] sm:$0x3] %vm1008, %v1587
        %1604 = vst.msk [vmem:[%s1079 + $0x18] sm:$0x3] %vm1008, %v1588
        %1605 = vst.msk [vmem:[%s1079 + $0x1a] sm:$0x3] %vm1008, %v1589
        %1606 = vst.msk [vmem:[%s1079 + $0x1c] sm:$0x3] %vm1008, %v1590
        %1607 = vst.msk [vmem:[%s1079 + $0x1e] sm:$0x3] %vm1008, %v1591
        %s1608 = scalar_lea.vmem %s318, 32
        %v1609 = vld [vmem:[%s1608] sm:$0x3]
        %v1610 = vld [vmem:[%s1608 + $0x2] sm:$0x3]
        %v1611 = vld [vmem:[%s1608 + $0x4] sm:$0x3]
        %v1612 = vld [vmem:[%s1608 + $0x6] sm:$0x3]
        %v1613 = vld [vmem:[%s1608 + $0x8] sm:$0x3]
        %v1614 = vld [vmem:[%s1608 + $0xa] sm:$0x3]
        %v1615 = vld [vmem:[%s1608 + $0xc] sm:$0x3]
        %v1616 = vld [vmem:[%s1608 + $0xe] sm:$0x3]
        %v1617 = vld [vmem:[%s1608 + $0x10] sm:$0x3]
        %v1618 = vld [vmem:[%s1608 + $0x12] sm:$0x3]
        %v1619 = vld [vmem:[%s1608 + $0x14] sm:$0x3]
        %v1620 = vld [vmem:[%s1608 + $0x16] sm:$0x3]
        %v1621 = vld [vmem:[%s1608 + $0x18] sm:$0x3]
        %v1622 = vld [vmem:[%s1608 + $0x1a] sm:$0x3]
        %v1623 = vld [vmem:[%s1608 + $0x1c] sm:$0x3]
        %v1624 = vld [vmem:[%s1608 + $0x1e] sm:$0x3]
        %s1625 = scalar_lea.vmem %s322, 2
        %v1626 = vld [vmem:[%s1625] sm:$0x1]
        %s1627 = scalar_lea.vmem %s326, 2
        %v1628 = vld [vmem:[%s1627] sm:$0x1]
        %v1630 = vlaneseq
        %v1631 = vshrl.u32 %v1630, 7
        %v1632 = vsub.s32 0, %v1631
        %v1633 = vrot.slane %v1626, %v1632
        %1634 = vset.pattern.permute.xlu0 0
        %1635 = vperm.xlu0 %1634, %v1633
        %v1636 = vpop.permute.xlu0 %1635
        %v1638 = vmul.f32 %v1609, %v1636
        %v1639 = vmul.f32 %v1610, %v1636
        %v1640 = vmul.f32 %v1611, %v1636
        %v1641 = vmul.f32 %v1612, %v1636
        %v1642 = vmul.f32 %v1613, %v1636
        %v1643 = vmul.f32 %v1614, %v1636
        %v1644 = vmul.f32 %v1615, %v1636
        %v1645 = vmul.f32 %v1616, %v1636
        %v1646 = vmul.f32 %v1617, %v1636
        %v1647 = vmul.f32 %v1618, %v1636
        %v1648 = vmul.f32 %v1619, %v1636
        %v1649 = vmul.f32 %v1620, %v1636
        %v1650 = vmul.f32 %v1621, %v1636
        %v1651 = vmul.f32 %v1622, %v1636
        %v1652 = vmul.f32 %v1623, %v1636
        %v1653 = vmul.f32 %v1624, %v1636
        %v1655 = vlaneseq
        %v1656 = vshrl.u32 %v1655, 7
        %v1657 = vsub.s32 0, %v1656
        %v1658 = vrot.slane %v1628, %v1657
        %1659 = vset.pattern.permute.xlu0 0
        %1660 = vperm.xlu0 %1659, %v1658
        %v1661 = vpop.permute.xlu0 %1660
        %v1663 = vsub.f32 %v1638, %v1661
        %v1664 = vsub.f32 %v1639, %v1661
        %v1665 = vsub.f32 %v1640, %v1661
        %v1666 = vsub.f32 %v1641, %v1661
        %v1667 = vsub.f32 %v1642, %v1661
        %v1668 = vsub.f32 %v1643, %v1661
        %v1669 = vsub.f32 %v1644, %v1661
        %v1670 = vsub.f32 %v1645, %v1661
        %v1671 = vsub.f32 %v1646, %v1661
        %v1672 = vsub.f32 %v1647, %v1661
        %v1673 = vsub.f32 %v1648, %v1661
        %v1674 = vsub.f32 %v1649, %v1661
        %v1675 = vsub.f32 %v1650, %v1661
        %v1676 = vsub.f32 %v1651, %v1661
        %v1677 = vsub.f32 %v1652, %v1661
        %v1678 = vsub.f32 %v1653, %v1661
        %s1679 = scalar_lea.vmem [#allocation2], 64
        %v1680 = vld [vmem:[%s1679] sm:$0x3]
        %v1681 = vld [vmem:[%s1679 + $0x2] sm:$0x3]
        %v1682 = vld [vmem:[%s1679 + $0x4] sm:$0x3]
        %v1683 = vld [vmem:[%s1679 + $0x6] sm:$0x3]
        %v1684 = vld [vmem:[%s1679 + $0x8] sm:$0x3]
        %v1685 = vld [vmem:[%s1679 + $0xa] sm:$0x3]
        %v1686 = vld [vmem:[%s1679 + $0xc] sm:$0x3]
        %v1687 = vld [vmem:[%s1679 + $0xe] sm:$0x3]
        %v1688 = vld [vmem:[%s1679 + $0x10] sm:$0x3]
        %v1689 = vld [vmem:[%s1679 + $0x12] sm:$0x3]
        %v1690 = vld [vmem:[%s1679 + $0x14] sm:$0x3]
        %v1691 = vld [vmem:[%s1679 + $0x16] sm:$0x3]
        %v1692 = vld [vmem:[%s1679 + $0x18] sm:$0x3]
        %v1693 = vld [vmem:[%s1679 + $0x1a] sm:$0x3]
        %v1694 = vld [vmem:[%s1679 + $0x1c] sm:$0x3]
        %v1695 = vld [vmem:[%s1679 + $0x1e] sm:$0x3]
        %v1696 = vand.u32 2147483647, %v1663
        %v1697 = vand.u32 2147483647, %v1664
        %v1698 = vand.u32 2147483647, %v1665
        %v1699 = vand.u32 2147483647, %v1666
        %v1700 = vand.u32 2147483647, %v1667
        %v1701 = vand.u32 2147483647, %v1668
        %v1702 = vand.u32 2147483647, %v1669
        %v1703 = vand.u32 2147483647, %v1670
        %v1704 = vand.u32 2147483647, %v1671
        %v1705 = vand.u32 2147483647, %v1672
        %v1706 = vand.u32 2147483647, %v1673
        %v1707 = vand.u32 2147483647, %v1674
        %v1708 = vand.u32 2147483647, %v1675
        %v1709 = vand.u32 2147483647, %v1676
        %v1710 = vand.u32 2147483647, %v1677
        %v1711 = vand.u32 2147483647, %v1678
        %vm1712 = vcmp.gt.f32.partialorder %v1696, 2.4142137
        %vm1713 = vcmp.gt.f32.partialorder %v1697, 2.4142137
        %vm1714 = vcmp.gt.f32.partialorder %v1698, 2.4142137
        %vm1715 = vcmp.gt.f32.partialorder %v1699, 2.4142137
        %vm1716 = vcmp.gt.f32.partialorder %v1700, 2.4142137
        %vm1717 = vcmp.gt.f32.partialorder %v1701, 2.4142137
        %vm1718 = vcmp.gt.f32.partialorder %v1702, 2.4142137
        %vm1719 = vcmp.gt.f32.partialorder %v1703, 2.4142137
        %vm1720 = vcmp.gt.f32.partialorder %v1704, 2.4142137
        %vm1721 = vcmp.gt.f32.partialorder %v1705, 2.4142137
        %vm1722 = vcmp.gt.f32.partialorder %v1706, 2.4142137
        %vm1723 = vcmp.gt.f32.partialorder %v1707, 2.4142137
        %vm1724 = vcmp.gt.f32.partialorder %v1708, 2.4142137
        %vm1725 = vcmp.gt.f32.partialorder %v1709, 2.4142137
        %vm1726 = vcmp.gt.f32.partialorder %v1710, 2.4142137
        %vm1727 = vcmp.gt.f32.partialorder %v1711, 2.4142137
        %vm1728 = vcmp.gt.f32.partialorder %v1696, 0.41421357
        %vm1729 = vcmp.gt.f32.partialorder %v1697, 0.41421357
        %vm1730 = vcmp.gt.f32.partialorder %v1698, 0.41421357
        %vm1731 = vcmp.gt.f32.partialorder %v1699, 0.41421357
        %vm1732 = vcmp.gt.f32.partialorder %v1700, 0.41421357
        %vm1733 = vcmp.gt.f32.partialorder %v1701, 0.41421357
        %vm1734 = vcmp.gt.f32.partialorder %v1702, 0.41421357
        %vm1735 = vcmp.gt.f32.partialorder %v1703, 0.41421357
        %vm1736 = vcmp.gt.f32.partialorder %v1704, 0.41421357
        %vm1737 = vcmp.gt.f32.partialorder %v1705, 0.41421357
        %vm1738 = vcmp.gt.f32.partialorder %v1706, 0.41421357
        %vm1739 = vcmp.gt.f32.partialorder %v1707, 0.41421357
        %vm1740 = vcmp.gt.f32.partialorder %v1708, 0.41421357
        %vm1741 = vcmp.gt.f32.partialorder %v1709, 0.41421357
        %vm1742 = vcmp.gt.f32.partialorder %v1710, 0.41421357
        %vm1743 = vcmp.gt.f32.partialorder %v1711, 0.41421357
        %v1744 = vsub.f32 %v1696, 1.0
        %v1745 = vsub.f32 %v1697, 1.0
        %v1746 = vsub.f32 %v1698, 1.0
        %v1747 = vsub.f32 %v1699, 1.0
        %v1748 = vsub.f32 %v1700, 1.0
        %v1749 = vsub.f32 %v1701, 1.0
        %v1750 = vsub.f32 %v1702, 1.0
        %v1751 = vsub.f32 %v1703, 1.0
        %v1752 = vsub.f32 %v1704, 1.0
        %v1753 = vsub.f32 %v1705, 1.0
        %v1754 = vsub.f32 %v1706, 1.0
        %v1755 = vsub.f32 %v1707, 1.0
        %v1756 = vsub.f32 %v1708, 1.0
        %v1757 = vsub.f32 %v1709, 1.0
        %v1758 = vsub.f32 %v1710, 1.0
        %v1759 = vsub.f32 %v1711, 1.0
        %v1760 = vsel %vm1728, %v1744, %v1696
        %v1761 = vsel %vm1729, %v1745, %v1697
        %v1762 = vsel %vm1730, %v1746, %v1698
        %v1763 = vsel %vm1731, %v1747, %v1699
        %v1764 = vsel %vm1732, %v1748, %v1700
        %v1765 = vsel %vm1733, %v1749, %v1701
        %v1766 = vsel %vm1734, %v1750, %v1702
        %v1767 = vsel %vm1735, %v1751, %v1703
        %v1768 = vsel %vm1736, %v1752, %v1704
        %v1769 = vsel %vm1737, %v1753, %v1705
        %v1770 = vsel %vm1738, %v1754, %v1706
        %v1771 = vsel %vm1739, %v1755, %v1707
        %v1772 = vsel %vm1740, %v1756, %v1708
        %v1773 = vsel %vm1741, %v1757, %v1709
        %v1774 = vsel %vm1742, %v1758, %v1710
        %v1775 = vsel %vm1743, %v1759, %v1711
        %v1776 = vsel %vm1712, -1.0, %v1760
        %v1777 = vsel %vm1713, -1.0, %v1761
        %v1778 = vsel %vm1714, -1.0, %v1762
        %v1779 = vsel %vm1715, -1.0, %v1763
        %v1780 = vsel %vm1716, -1.0, %v1764
        %v1781 = vsel %vm1717, -1.0, %v1765
        %v1782 = vsel %vm1718, -1.0, %v1766
        %v1783 = vsel %vm1719, -1.0, %v1767
        %v1784 = vsel %vm1720, -1.0, %v1768
        %v1785 = vsel %vm1721, -1.0, %v1769
        %v1786 = vsel %vm1722, -1.0, %v1770
        %v1787 = vsel %vm1723, -1.0, %v1771
        %v1788 = vsel %vm1724, -1.0, %v1772
        %v1789 = vsel %vm1725, -1.0, %v1773
        %v1790 = vsel %vm1726, -1.0, %v1774
        %v1791 = vsel %vm1727, -1.0, %v1775
        %v1792 = vadd.f32 %v1696, 1.0
        %v1793 = vadd.f32 %v1697, 1.0
        %v1794 = vadd.f32 %v1698, 1.0
        %v1795 = vadd.f32 %v1699, 1.0
        %v1796 = vadd.f32 %v1700, 1.0
        %v1797 = vadd.f32 %v1701, 1.0
        %v1798 = vadd.f32 %v1702, 1.0
        %v1799 = vadd.f32 %v1703, 1.0
        %v1800 = vadd.f32 %v1704, 1.0
        %v1801 = vadd.f32 %v1705, 1.0
        %v1802 = vadd.f32 %v1706, 1.0
        %v1803 = vadd.f32 %v1707, 1.0
        %v1804 = vadd.f32 %v1708, 1.0
        %v1805 = vadd.f32 %v1709, 1.0
        %v1806 = vadd.f32 %v1710, 1.0
        %v1807 = vadd.f32 %v1711, 1.0
        %v1808 = vsel %vm1728, %v1792, 1.0
        %v1809 = vsel %vm1729, %v1793, 1.0
        %v1810 = vsel %vm1730, %v1794, 1.0
        %v1811 = vsel %vm1731, %v1795, 1.0
        %v1812 = vsel %vm1732, %v1796, 1.0
        %v1813 = vsel %vm1733, %v1797, 1.0
        %v1814 = vsel %vm1734, %v1798, 1.0
        %v1815 = vsel %vm1735, %v1799, 1.0
        %v1816 = vsel %vm1736, %v1800, 1.0
        %v1817 = vsel %vm1737, %v1801, 1.0
        %v1818 = vsel %vm1738, %v1802, 1.0
        %v1819 = vsel %vm1739, %v1803, 1.0
        %v1820 = vsel %vm1740, %v1804, 1.0
        %v1821 = vsel %vm1741, %v1805, 1.0
        %v1822 = vsel %vm1742, %v1806, 1.0
        %v1823 = vsel %vm1743, %v1807, 1.0
        %v1824 = vsel %vm1712, %v1696, %v1808
        %v1825 = vsel %vm1713, %v1697, %v1809
        %v1826 = vsel %vm1714, %v1698, %v1810
        %v1827 = vsel %vm1715, %v1699, %v1811
        %v1828 = vsel %vm1716, %v1700, %v1812
        %v1829 = vsel %vm1717, %v1701, %v1813
        %v1830 = vsel %vm1718, %v1702, %v1814
        %v1831 = vsel %vm1719, %v1703, %v1815
        %v1832 = vsel %vm1720, %v1704, %v1816
        %v1833 = vsel %vm1721, %v1705, %v1817
        %v1834 = vsel %vm1722, %v1706, %v1818
        %v1835 = vsel %vm1723, %v1707, %v1819
        %v1836 = vsel %vm1724, %v1708, %v1820
        %v1837 = vsel %vm1725, %v1709, %v1821
        %v1838 = vsel %vm1726, %v1710, %v1822
        %v1839 = vsel %vm1727, %v1711, %v1823
        %v1840 = vrcp.pop %v1824
        %v1841 = vmul.f32 %v1776, %v1840
        %v1842 = vrcp.pop %v1825
        %v1843 = vmul.f32 %v1777, %v1842
        %v1844 = vrcp.pop %v1826
        %v1845 = vmul.f32 %v1778, %v1844
        %v1846 = vrcp.pop %v1827
        %v1847 = vmul.f32 %v1779, %v1846
        %v1848 = vrcp.pop %v1828
        %v1849 = vmul.f32 %v1780, %v1848
        %v1850 = vrcp.pop %v1829
        %v1851 = vmul.f32 %v1781, %v1850
        %v1852 = vrcp.pop %v1830
        %v1853 = vmul.f32 %v1782, %v1852
        %v1854 = vrcp.pop %v1831
        %v1855 = vmul.f32 %v1783, %v1854
        %v1856 = vrcp.pop %v1832
        %v1857 = vmul.f32 %v1784, %v1856
        %v1858 = vrcp.pop %v1833
        %v1859 = vmul.f32 %v1785, %v1858
        %v1860 = vrcp.pop %v1834
        %v1861 = vmul.f32 %v1786, %v1860
        %v1862 = vrcp.pop %v1835
        %v1863 = vmul.f32 %v1787, %v1862
        %v1864 = vrcp.pop %v1836
        %v1865 = vmul.f32 %v1788, %v1864
        %v1866 = vrcp.pop %v1837
        %v1867 = vmul.f32 %v1789, %v1866
        %v1868 = vrcp.pop %v1838
        %v1869 = vmul.f32 %v1790, %v1868
        %v1870 = vrcp.pop %v1839
        %v1871 = vmul.f32 %v1791, %v1870
        %v1872 = vsel %vm1728, 0.7853982, 0.0
        %v1873 = vsel %vm1729, 0.7853982, 0.0
        %v1874 = vsel %vm1730, 0.7853982, 0.0
        %v1875 = vsel %vm1731, 0.7853982, 0.0
        %v1876 = vsel %vm1732, 0.7853982, 0.0
        %v1877 = vsel %vm1733, 0.7853982, 0.0
        %v1878 = vsel %vm1734, 0.7853982, 0.0
        %v1879 = vsel %vm1735, 0.7853982, 0.0
        %v1880 = vsel %vm1736, 0.7853982, 0.0
        %v1881 = vsel %vm1737, 0.7853982, 0.0
        %v1882 = vsel %vm1738, 0.7853982, 0.0
        %v1883 = vsel %vm1739, 0.7853982, 0.0
        %v1884 = vsel %vm1740, 0.7853982, 0.0
        %v1885 = vsel %vm1741, 0.7853982, 0.0
        %v1886 = vsel %vm1742, 0.7853982, 0.0
        %v1887 = vsel %vm1743, 0.7853982, 0.0
        %v1888 = vsel %vm1712, 1.5707964, %v1872
        %v1889 = vsel %vm1713, 1.5707964, %v1873
        %v1890 = vsel %vm1714, 1.5707964, %v1874
        %v1891 = vsel %vm1715, 1.5707964, %v1875
        %v1892 = vsel %vm1716, 1.5707964, %v1876
        %v1893 = vsel %vm1717, 1.5707964, %v1877
        %v1894 = vsel %vm1718, 1.5707964, %v1878
        %v1895 = vsel %vm1719, 1.5707964, %v1879
        %v1896 = vsel %vm1720, 1.5707964, %v1880
        %v1897 = vsel %vm1721, 1.5707964, %v1881
        %v1898 = vsel %vm1722, 1.5707964, %v1882
        %v1899 = vsel %vm1723, 1.5707964, %v1883
        %v1900 = vsel %vm1724, 1.5707964, %v1884
        %v1901 = vsel %vm1725, 1.5707964, %v1885
        %v1902 = vsel %vm1726, 1.5707964, %v1886
        %v1903 = vsel %vm1727, 1.5707964, %v1887
        %v1904 = vmul.f32 %v1841, %v1841
        %v1905 = vmul.f32 %v1843, %v1843
        %v1906 = vmul.f32 %v1845, %v1845
        %v1907 = vmul.f32 %v1847, %v1847
        %v1908 = vmul.f32 %v1849, %v1849
        %v1909 = vmul.f32 %v1851, %v1851
        %v1910 = vmul.f32 %v1853, %v1853
        %v1911 = vmul.f32 %v1855, %v1855
        %v1912 = vmul.f32 %v1857, %v1857
        %v1913 = vmul.f32 %v1859, %v1859
        %v1914 = vmul.f32 %v1861, %v1861
        %v1915 = vmul.f32 %v1863, %v1863
        %v1916 = vmul.f32 %v1865, %v1865
        %v1917 = vmul.f32 %v1867, %v1867
        %v1918 = vmul.f32 %v1869, %v1869
        %v1919 = vmul.f32 %v1871, %v1871
        %v1920 = vmul.f32 %v1904, 0.080537446
        %v1921 = vmul.f32 %v1905, 0.080537446
        %v1922 = vmul.f32 %v1906, 0.080537446
        %v1923 = vmul.f32 %v1907, 0.080537446
        %v1924 = vmul.f32 %v1908, 0.080537446
        %v1925 = vmul.f32 %v1909, 0.080537446
        %v1926 = vmul.f32 %v1910, 0.080537446
        %v1927 = vmul.f32 %v1911, 0.080537446
        %v1928 = vmul.f32 %v1912, 0.080537446
        %v1929 = vmul.f32 %v1913, 0.080537446
        %v1930 = vmul.f32 %v1914, 0.080537446
        %v1931 = vmul.f32 %v1915, 0.080537446
        %v1932 = vmul.f32 %v1916, 0.080537446
        %v1933 = vmul.f32 %v1917, 0.080537446
        %v1934 = vmul.f32 %v1918, 0.080537446
        %v1935 = vmul.f32 %v1919, 0.080537446
        %v1936 = vsub.f32 %v1920, 0.13877685
        %v1937 = vsub.f32 %v1921, 0.13877685
        %v1938 = vsub.f32 %v1922, 0.13877685
        %v1939 = vsub.f32 %v1923, 0.13877685
        %v1940 = vsub.f32 %v1924, 0.13877685
        %v1941 = vsub.f32 %v1925, 0.13877685
        %v1942 = vsub.f32 %v1926, 0.13877685
        %v1943 = vsub.f32 %v1927, 0.13877685
        %v1944 = vsub.f32 %v1928, 0.13877685
        %v1945 = vsub.f32 %v1929, 0.13877685
        %v1946 = vsub.f32 %v1930, 0.13877685
        %v1947 = vsub.f32 %v1931, 0.13877685
        %v1948 = vsub.f32 %v1932, 0.13877685
        %v1949 = vsub.f32 %v1933, 0.13877685
        %v1950 = vsub.f32 %v1934, 0.13877685
        %v1951 = vsub.f32 %v1935, 0.13877685
        %v1952 = vmul.f32 %v1936, %v1904
        %v1953 = vmul.f32 %v1937, %v1905
        %v1954 = vmul.f32 %v1938, %v1906
        %v1955 = vmul.f32 %v1939, %v1907
        %v1956 = vmul.f32 %v1940, %v1908
        %v1957 = vmul.f32 %v1941, %v1909
        %v1958 = vmul.f32 %v1942, %v1910
        %v1959 = vmul.f32 %v1943, %v1911
        %v1960 = vmul.f32 %v1944, %v1912
        %v1961 = vmul.f32 %v1945, %v1913
        %v1962 = vmul.f32 %v1946, %v1914
        %v1963 = vmul.f32 %v1947, %v1915
        %v1964 = vmul.f32 %v1948, %v1916
        %v1965 = vmul.f32 %v1949, %v1917
        %v1966 = vmul.f32 %v1950, %v1918
        %v1967 = vmul.f32 %v1951, %v1919
        %v1968 = vadd.f32 %v1952, 0.19977711
        %v1969 = vadd.f32 %v1953, 0.19977711
        %v1970 = vadd.f32 %v1954, 0.19977711
        %v1971 = vadd.f32 %v1955, 0.19977711
        %v1972 = vadd.f32 %v1956, 0.19977711
        %v1973 = vadd.f32 %v1957, 0.19977711
        %v1974 = vadd.f32 %v1958, 0.19977711
        %v1975 = vadd.f32 %v1959, 0.19977711
        %v1976 = vadd.f32 %v1960, 0.19977711
        %v1977 = vadd.f32 %v1961, 0.19977711
        %v1978 = vadd.f32 %v1962, 0.19977711
        %v1979 = vadd.f32 %v1963, 0.19977711
        %v1980 = vadd.f32 %v1964, 0.19977711
        %v1981 = vadd.f32 %v1965, 0.19977711
        %v1982 = vadd.f32 %v1966, 0.19977711
        %v1983 = vadd.f32 %v1967, 0.19977711
        %v1984 = vmul.f32 %v1968, %v1904
        %v1985 = vmul.f32 %v1969, %v1905
        %v1986 = vmul.f32 %v1970, %v1906
        %v1987 = vmul.f32 %v1971, %v1907
        %v1988 = vmul.f32 %v1972, %v1908
        %v1989 = vmul.f32 %v1973, %v1909
        %v1990 = vmul.f32 %v1974, %v1910
        %v1991 = vmul.f32 %v1975, %v1911
        %v1992 = vmul.f32 %v1976, %v1912
        %v1993 = vmul.f32 %v1977, %v1913
        %v1994 = vmul.f32 %v1978, %v1914
        %v1995 = vmul.f32 %v1979, %v1915
        %v1996 = vmul.f32 %v1980, %v1916
        %v1997 = vmul.f32 %v1981, %v1917
        %v1998 = vmul.f32 %v1982, %v1918
        %v1999 = vmul.f32 %v1983, %v1919
        %v2000 = vsub.f32 %v1984, 0.3333295
        %v2001 = vsub.f32 %v1985, 0.3333295
        %v2002 = vsub.f32 %v1986, 0.3333295
        %v2003 = vsub.f32 %v1987, 0.3333295
        %v2004 = vsub.f32 %v1988, 0.3333295
        %v2005 = vsub.f32 %v1989, 0.3333295
        %v2006 = vsub.f32 %v1990, 0.3333295
        %v2007 = vsub.f32 %v1991, 0.3333295
        %v2008 = vsub.f32 %v1992, 0.3333295
        %v2009 = vsub.f32 %v1993, 0.3333295
        %v2010 = vsub.f32 %v1994, 0.3333295
        %v2011 = vsub.f32 %v1995, 0.3333295
        %v2012 = vsub.f32 %v1996, 0.3333295
        %v2013 = vsub.f32 %v1997, 0.3333295
        %v2014 = vsub.f32 %v1998, 0.3333295
        %v2015 = vsub.f32 %v1999, 0.3333295
        %v2016 = vmul.f32 %v2000, %v1904
        %v2017 = vmul.f32 %v2001, %v1905
        %v2018 = vmul.f32 %v2002, %v1906
        %v2019 = vmul.f32 %v2003, %v1907
        %v2020 = vmul.f32 %v2004, %v1908
        %v2021 = vmul.f32 %v2005, %v1909
        %v2022 = vmul.f32 %v2006, %v1910
        %v2023 = vmul.f32 %v2007, %v1911
        %v2024 = vmul.f32 %v2008, %v1912
        %v2025 = vmul.f32 %v2009, %v1913
        %v2026 = vmul.f32 %v2010, %v1914
        %v2027 = vmul.f32 %v2011, %v1915
        %v2028 = vmul.f32 %v2012, %v1916
        %v2029 = vmul.f32 %v2013, %v1917
        %v2030 = vmul.f32 %v2014, %v1918
        %v2031 = vmul.f32 %v2015, %v1919
        %v2032 = vmul.f32 %v2016, %v1841
        %v2033 = vmul.f32 %v2017, %v1843
        %v2034 = vmul.f32 %v2018, %v1845
        %v2035 = vmul.f32 %v2019, %v1847
        %v2036 = vmul.f32 %v2020, %v1849
        %v2037 = vmul.f32 %v2021, %v1851
        %v2038 = vmul.f32 %v2022, %v1853
        %v2039 = vmul.f32 %v2023, %v1855
        %v2040 = vmul.f32 %v2024, %v1857
        %v2041 = vmul.f32 %v2025, %v1859
        %v2042 = vmul.f32 %v2026, %v1861
        %v2043 = vmul.f32 %v2027, %v1863
        %v2044 = vmul.f32 %v2028, %v1865
        %v2045 = vmul.f32 %v2029, %v1867
        %v2046 = vmul.f32 %v2030, %v1869
        %v2047 = vmul.f32 %v2031, %v1871
        %v2048 = vadd.f32 %v2032, %v1841
        %v2049 = vadd.f32 %v2033, %v1843
        %v2050 = vadd.f32 %v2034, %v1845
        %v2051 = vadd.f32 %v2035, %v1847
        %v2052 = vadd.f32 %v2036, %v1849
        %v2053 = vadd.f32 %v2037, %v1851
        %v2054 = vadd.f32 %v2038, %v1853
        %v2055 = vadd.f32 %v2039, %v1855
        %v2056 = vadd.f32 %v2040, %v1857
        %v2057 = vadd.f32 %v2041, %v1859
        %v2058 = vadd.f32 %v2042, %v1861
        %v2059 = vadd.f32 %v2043, %v1863
        %v2060 = vadd.f32 %v2044, %v1865
        %v2061 = vadd.f32 %v2045, %v1867
        %v2062 = vadd.f32 %v2046, %v1869
        %v2063 = vadd.f32 %v2047, %v1871
        %v2064 = vadd.f32 %v1888, %v2048
        %v2065 = vadd.f32 %v1889, %v2049
        %v2066 = vadd.f32 %v1890, %v2050
        %v2067 = vadd.f32 %v1891, %v2051
        %v2068 = vadd.f32 %v1892, %v2052
        %v2069 = vadd.f32 %v1893, %v2053
        %v2070 = vadd.f32 %v1894, %v2054
        %v2071 = vadd.f32 %v1895, %v2055
        %v2072 = vadd.f32 %v1896, %v2056
        %v2073 = vadd.f32 %v1897, %v2057
        %v2074 = vadd.f32 %v1898, %v2058
        %v2075 = vadd.f32 %v1899, %v2059
        %v2076 = vadd.f32 %v1900, %v2060
        %v2077 = vadd.f32 %v1901, %v2061
        %v2078 = vadd.f32 %v1902, %v2062
        %v2079 = vadd.f32 %v1903, %v2063
        %vm2080 = vcmp.lt.f32.partialorder %v1663, 0.0
        %vm2081 = vcmp.lt.f32.partialorder %v1664, 0.0
        %vm2082 = vcmp.lt.f32.partialorder %v1665, 0.0
        %vm2083 = vcmp.lt.f32.partialorder %v1666, 0.0
        %vm2084 = vcmp.lt.f32.partialorder %v1667, 0.0
        %vm2085 = vcmp.lt.f32.partialorder %v1668, 0.0
        %vm2086 = vcmp.lt.f32.partialorder %v1669, 0.0
        %vm2087 = vcmp.lt.f32.partialorder %v1670, 0.0
        %vm2088 = vcmp.lt.f32.partialorder %v1671, 0.0
        %vm2089 = vcmp.lt.f32.partialorder %v1672, 0.0
        %vm2090 = vcmp.lt.f32.partialorder %v1673, 0.0
        %vm2091 = vcmp.lt.f32.partialorder %v1674, 0.0
        %vm2092 = vcmp.lt.f32.partialorder %v1675, 0.0
        %vm2093 = vcmp.lt.f32.partialorder %v1676, 0.0
        %vm2094 = vcmp.lt.f32.partialorder %v1677, 0.0
        %vm2095 = vcmp.lt.f32.partialorder %v1678, 0.0
        %v2096 = vsub.f32 0.0, %v2064
        %v2097 = vsub.f32 0.0, %v2065
        %v2098 = vsub.f32 0.0, %v2066
        %v2099 = vsub.f32 0.0, %v2067
        %v2100 = vsub.f32 0.0, %v2068
        %v2101 = vsub.f32 0.0, %v2069
        %v2102 = vsub.f32 0.0, %v2070
        %v2103 = vsub.f32 0.0, %v2071
        %v2104 = vsub.f32 0.0, %v2072
        %v2105 = vsub.f32 0.0, %v2073
        %v2106 = vsub.f32 0.0, %v2074
        %v2107 = vsub.f32 0.0, %v2075
        %v2108 = vsub.f32 0.0, %v2076
        %v2109 = vsub.f32 0.0, %v2077
        %v2110 = vsub.f32 0.0, %v2078
        %v2111 = vsub.f32 0.0, %v2079
        %v2112 = vsel %vm2080, %v2096, %v2064
        %v2113 = vsel %vm2081, %v2097, %v2065
        %v2114 = vsel %vm2082, %v2098, %v2066
        %v2115 = vsel %vm2083, %v2099, %v2067
        %v2116 = vsel %vm2084, %v2100, %v2068
        %v2117 = vsel %vm2085, %v2101, %v2069
        %v2118 = vsel %vm2086, %v2102, %v2070
        %v2119 = vsel %vm2087, %v2103, %v2071
        %v2120 = vsel %vm2088, %v2104, %v2072
        %v2121 = vsel %vm2089, %v2105, %v2073
        %v2122 = vsel %vm2090, %v2106, %v2074
        %v2123 = vsel %vm2091, %v2107, %v2075
        %v2124 = vsel %vm2092, %v2108, %v2076
        %v2125 = vsel %vm2093, %v2109, %v2077
        %v2126 = vsel %vm2094, %v2110, %v2078
        %v2127 = vsel %vm2095, %v2111, %v2079
        %v2128 = vadd.f32 %v2112, 3.455752
        %v2129 = vadd.f32 %v2113, 3.455752
        %v2130 = vadd.f32 %v2114, 3.455752
        %v2131 = vadd.f32 %v2115, 3.455752
        %v2132 = vadd.f32 %v2116, 3.455752
        %v2133 = vadd.f32 %v2117, 3.455752
        %v2134 = vadd.f32 %v2118, 3.455752
        %v2135 = vadd.f32 %v2119, 3.455752
        %v2136 = vadd.f32 %v2120, 3.455752
        %v2137 = vadd.f32 %v2121, 3.455752
        %v2138 = vadd.f32 %v2122, 3.455752
        %v2139 = vadd.f32 %v2123, 3.455752
        %v2140 = vadd.f32 %v2124, 3.455752
        %v2141 = vadd.f32 %v2125, 3.455752
        %v2142 = vadd.f32 %v2126, 3.455752
        %v2143 = vadd.f32 %v2127, 3.455752
        %v2144 = vlog2.pop %v2128
        %v2145 = vmul.f32 %v2144, 0.6931472
        %v2146 = vlog2.pop %v2129
        %v2147 = vmul.f32 %v2146, 0.6931472
        %v2148 = vlog2.pop %v2130
        %v2149 = vmul.f32 %v2148, 0.6931472
        %v2150 = vlog2.pop %v2131
        %v2151 = vmul.f32 %v2150, 0.6931472
        %v2152 = vlog2.pop %v2132
        %v2153 = vmul.f32 %v2152, 0.6931472
        %v2154 = vlog2.pop %v2133
        %v2155 = vmul.f32 %v2154, 0.6931472
        %v2156 = vlog2.pop %v2134
        %v2157 = vmul.f32 %v2156, 0.6931472
        %v2158 = vlog2.pop %v2135
        %v2159 = vmul.f32 %v2158, 0.6931472
        %v2160 = vlog2.pop %v2136
        %v2161 = vmul.f32 %v2160, 0.6931472
        %v2162 = vlog2.pop %v2137
        %v2163 = vmul.f32 %v2162, 0.6931472
        %v2164 = vlog2.pop %v2138
        %v2165 = vmul.f32 %v2164, 0.6931472
        %v2166 = vlog2.pop %v2139
        %v2167 = vmul.f32 %v2166, 0.6931472
        %v2168 = vlog2.pop %v2140
        %v2169 = vmul.f32 %v2168, 0.6931472
        %v2170 = vlog2.pop %v2141
        %v2171 = vmul.f32 %v2170, 0.6931472
        %v2172 = vlog2.pop %v2142
        %v2173 = vmul.f32 %v2172, 0.6931472
        %v2174 = vlog2.pop %v2143
        %v2175 = vmul.f32 %v2174, 0.6931472
        %v2176 = vadd.f32 %v1680, %v2145
        %v2177 = vadd.f32 %v1681, %v2147
        %v2178 = vadd.f32 %v1682, %v2149
        %v2179 = vadd.f32 %v1683, %v2151
        %v2180 = vadd.f32 %v1684, %v2153
        %v2181 = vadd.f32 %v1685, %v2155
        %v2182 = vadd.f32 %v1686, %v2157
        %v2183 = vadd.f32 %v1687, %v2159
        %v2184 = vadd.f32 %v1688, %v2161
        %v2185 = vadd.f32 %v1689, %v2163
        %v2186 = vadd.f32 %v1690, %v2165
        %v2187 = vadd.f32 %v1691, %v2167
        %v2188 = vadd.f32 %v1692, %v2169
        %v2189 = vadd.f32 %v1693, %v2171
        %v2190 = vadd.f32 %v1694, %v2173
        %v2191 = vadd.f32 %v1695, %v2175
        %2192 = vst.msk [vmem:[%s1679] sm:$0x3] %vm1008, %v2176
        %2193 = vst.msk [vmem:[%s1679 + $0x2] sm:$0x3] %vm1008, %v2177
        %2194 = vst.msk [vmem:[%s1679 + $0x4] sm:$0x3] %vm1008, %v2178
        %2195 = vst.msk [vmem:[%s1679 + $0x6] sm:$0x3] %vm1008, %v2179
        %2196 = vst.msk [vmem:[%s1679 + $0x8] sm:$0x3] %vm1008, %v2180
        %2197 = vst.msk [vmem:[%s1679 + $0xa] sm:$0x3] %vm1008, %v2181
        %2198 = vst.msk [vmem:[%s1679 + $0xc] sm:$0x3] %vm1008, %v2182
        %2199 = vst.msk [vmem:[%s1679 + $0xe] sm:$0x3] %vm1008, %v2183
        %2200 = vst.msk [vmem:[%s1679 + $0x10] sm:$0x3] %vm1008, %v2184
        %2201 = vst.msk [vmem:[%s1679 + $0x12] sm:$0x3] %vm1008, %v2185
        %2202 = vst.msk [vmem:[%s1679 + $0x14] sm:$0x3] %vm1008, %v2186
        %2203 = vst.msk [vmem:[%s1679 + $0x16] sm:$0x3] %vm1008, %v2187
        %2204 = vst.msk [vmem:[%s1679 + $0x18] sm:$0x3] %vm1008, %v2188
        %2205 = vst.msk [vmem:[%s1679 + $0x1a] sm:$0x3] %vm1008, %v2189
        %2206 = vst.msk [vmem:[%s1679 + $0x1c] sm:$0x3] %vm1008, %v2190
        %2207 = vst.msk [vmem:[%s1679 + $0x1e] sm:$0x3] %vm1008, %v2191
        %s2208 = scalar_lea.vmem %s322, 3
        %v2209 = vld [vmem:[%s2208] sm:$0x1]
        %s2210 = scalar_lea.vmem %s326, 3
        %v2211 = vld [vmem:[%s2210] sm:$0x1]
        %v2213 = vlaneseq
        %v2214 = vshrl.u32 %v2213, 7
        %v2215 = vsub.s32 0, %v2214
        %v2216 = vrot.slane %v2209, %v2215
        %2217 = vset.pattern.permute.xlu0 0
        %2218 = vperm.xlu0 %2217, %v2216
        %v2219 = vpop.permute.xlu0 %2218
        %v2221 = vmul.f32 %v1609, %v2219
        %v2222 = vmul.f32 %v1610, %v2219
        %v2223 = vmul.f32 %v1611, %v2219
        %v2224 = vmul.f32 %v1612, %v2219
        %v2225 = vmul.f32 %v1613, %v2219
        %v2226 = vmul.f32 %v1614, %v2219
        %v2227 = vmul.f32 %v1615, %v2219
        %v2228 = vmul.f32 %v1616, %v2219
        %v2229 = vmul.f32 %v1617, %v2219
        %v2230 = vmul.f32 %v1618, %v2219
        %v2231 = vmul.f32 %v1619, %v2219
        %v2232 = vmul.f32 %v1620, %v2219
        %v2233 = vmul.f32 %v1621, %v2219
        %v2234 = vmul.f32 %v1622, %v2219
        %v2235 = vmul.f32 %v1623, %v2219
        %v2236 = vmul.f32 %v1624, %v2219
        %v2238 = vlaneseq
        %v2239 = vshrl.u32 %v2238, 7
        %v2240 = vsub.s32 0, %v2239
        %v2241 = vrot.slane %v2211, %v2240
        %2242 = vset.pattern.permute.xlu0 0
        %2243 = vperm.xlu0 %2242, %v2241
        %v2244 = vpop.permute.xlu0 %2243
        %v2246 = vsub.f32 %v2221, %v2244
        %v2247 = vsub.f32 %v2222, %v2244
        %v2248 = vsub.f32 %v2223, %v2244
        %v2249 = vsub.f32 %v2224, %v2244
        %v2250 = vsub.f32 %v2225, %v2244
        %v2251 = vsub.f32 %v2226, %v2244
        %v2252 = vsub.f32 %v2227, %v2244
        %v2253 = vsub.f32 %v2228, %v2244
        %v2254 = vsub.f32 %v2229, %v2244
        %v2255 = vsub.f32 %v2230, %v2244
        %v2256 = vsub.f32 %v2231, %v2244
        %v2257 = vsub.f32 %v2232, %v2244
        %v2258 = vsub.f32 %v2233, %v2244
        %v2259 = vsub.f32 %v2234, %v2244
        %v2260 = vsub.f32 %v2235, %v2244
        %v2261 = vsub.f32 %v2236, %v2244
        %s2262 = scalar_lea.vmem [#allocation2], 96
        %v2263 = vld [vmem:[%s2262] sm:$0x3]
        %v2264 = vld [vmem:[%s2262 + $0x2] sm:$0x3]
        %v2265 = vld [vmem:[%s2262 + $0x4] sm:$0x3]
        %v2266 = vld [vmem:[%s2262 + $0x6] sm:$0x3]
        %v2267 = vld [vmem:[%s2262 + $0x8] sm:$0x3]
        %v2268 = vld [vmem:[%s2262 + $0xa] sm:$0x3]
        %v2269 = vld [vmem:[%s2262 + $0xc] sm:$0x3]
        %v2270 = vld [vmem:[%s2262 + $0xe] sm:$0x3]
        %v2271 = vld [vmem:[%s2262 + $0x10] sm:$0x3]
        %v2272 = vld [vmem:[%s2262 + $0x12] sm:$0x3]
        %v2273 = vld [vmem:[%s2262 + $0x14] sm:$0x3]
        %v2274 = vld [vmem:[%s2262 + $0x16] sm:$0x3]
        %v2275 = vld [vmem:[%s2262 + $0x18] sm:$0x3]
        %v2276 = vld [vmem:[%s2262 + $0x1a] sm:$0x3]
        %v2277 = vld [vmem:[%s2262 + $0x1c] sm:$0x3]
        %v2278 = vld [vmem:[%s2262 + $0x1e] sm:$0x3]
        %v2279 = vand.u32 2147483647, %v2246
        %v2280 = vand.u32 2147483647, %v2247
        %v2281 = vand.u32 2147483647, %v2248
        %v2282 = vand.u32 2147483647, %v2249
        %v2283 = vand.u32 2147483647, %v2250
        %v2284 = vand.u32 2147483647, %v2251
        %v2285 = vand.u32 2147483647, %v2252
        %v2286 = vand.u32 2147483647, %v2253
        %v2287 = vand.u32 2147483647, %v2254
        %v2288 = vand.u32 2147483647, %v2255
        %v2289 = vand.u32 2147483647, %v2256
        %v2290 = vand.u32 2147483647, %v2257
        %v2291 = vand.u32 2147483647, %v2258
        %v2292 = vand.u32 2147483647, %v2259
        %v2293 = vand.u32 2147483647, %v2260
        %v2294 = vand.u32 2147483647, %v2261
        %vm2295 = vcmp.gt.f32.partialorder %v2279, 2.4142137
        %vm2296 = vcmp.gt.f32.partialorder %v2280, 2.4142137
        %vm2297 = vcmp.gt.f32.partialorder %v2281, 2.4142137
        %vm2298 = vcmp.gt.f32.partialorder %v2282, 2.4142137
        %vm2299 = vcmp.gt.f32.partialorder %v2283, 2.4142137
        %vm2300 = vcmp.gt.f32.partialorder %v2284, 2.4142137
        %vm2301 = vcmp.gt.f32.partialorder %v2285, 2.4142137
        %vm2302 = vcmp.gt.f32.partialorder %v2286, 2.4142137
        %vm2303 = vcmp.gt.f32.partialorder %v2287, 2.4142137
        %vm2304 = vcmp.gt.f32.partialorder %v2288, 2.4142137
        %vm2305 = vcmp.gt.f32.partialorder %v2289, 2.4142137
        %vm2306 = vcmp.gt.f32.partialorder %v2290, 2.4142137
        %vm2307 = vcmp.gt.f32.partialorder %v2291, 2.4142137
        %vm2308 = vcmp.gt.f32.partialorder %v2292, 2.4142137
        %vm2309 = vcmp.gt.f32.partialorder %v2293, 2.4142137
        %vm2310 = vcmp.gt.f32.partialorder %v2294, 2.4142137
        %vm2311 = vcmp.gt.f32.partialorder %v2279, 0.41421357
        %vm2312 = vcmp.gt.f32.partialorder %v2280, 0.41421357
        %vm2313 = vcmp.gt.f32.partialorder %v2281, 0.41421357
        %vm2314 = vcmp.gt.f32.partialorder %v2282, 0.41421357
        %vm2315 = vcmp.gt.f32.partialorder %v2283, 0.41421357
        %vm2316 = vcmp.gt.f32.partialorder %v2284, 0.41421357
        %vm2317 = vcmp.gt.f32.partialorder %v2285, 0.41421357
        %vm2318 = vcmp.gt.f32.partialorder %v2286, 0.41421357
        %vm2319 = vcmp.gt.f32.partialorder %v2287, 0.41421357
        %vm2320 = vcmp.gt.f32.partialorder %v2288, 0.41421357
        %vm2321 = vcmp.gt.f32.partialorder %v2289, 0.41421357
        %vm2322 = vcmp.gt.f32.partialorder %v2290, 0.41421357
        %vm2323 = vcmp.gt.f32.partialorder %v2291, 0.41421357
        %vm2324 = vcmp.gt.f32.partialorder %v2292, 0.41421357
        %vm2325 = vcmp.gt.f32.partialorder %v2293, 0.41421357
        %vm2326 = vcmp.gt.f32.partialorder %v2294, 0.41421357
        %v2327 = vsub.f32 %v2279, 1.0
        %v2328 = vsub.f32 %v2280, 1.0
        %v2329 = vsub.f32 %v2281, 1.0
        %v2330 = vsub.f32 %v2282, 1.0
        %v2331 = vsub.f32 %v2283, 1.0
        %v2332 = vsub.f32 %v2284, 1.0
        %v2333 = vsub.f32 %v2285, 1.0
        %v2334 = vsub.f32 %v2286, 1.0
        %v2335 = vsub.f32 %v2287, 1.0
        %v2336 = vsub.f32 %v2288, 1.0
        %v2337 = vsub.f32 %v2289, 1.0
        %v2338 = vsub.f32 %v2290, 1.0
        %v2339 = vsub.f32 %v2291, 1.0
        %v2340 = vsub.f32 %v2292, 1.0
        %v2341 = vsub.f32 %v2293, 1.0
        %v2342 = vsub.f32 %v2294, 1.0
        %v2343 = vsel %vm2311, %v2327, %v2279
        %v2344 = vsel %vm2312, %v2328, %v2280
        %v2345 = vsel %vm2313, %v2329, %v2281
        %v2346 = vsel %vm2314, %v2330, %v2282
        %v2347 = vsel %vm2315, %v2331, %v2283
        %v2348 = vsel %vm2316, %v2332, %v2284
        %v2349 = vsel %vm2317, %v2333, %v2285
        %v2350 = vsel %vm2318, %v2334, %v2286
        %v2351 = vsel %vm2319, %v2335, %v2287
        %v2352 = vsel %vm2320, %v2336, %v2288
        %v2353 = vsel %vm2321, %v2337, %v2289
        %v2354 = vsel %vm2322, %v2338, %v2290
        %v2355 = vsel %vm2323, %v2339, %v2291
        %v2356 = vsel %vm2324, %v2340, %v2292
        %v2357 = vsel %vm2325, %v2341, %v2293
        %v2358 = vsel %vm2326, %v2342, %v2294
        %v2359 = vsel %vm2295, -1.0, %v2343
        %v2360 = vsel %vm2296, -1.0, %v2344
        %v2361 = vsel %vm2297, -1.0, %v2345
        %v2362 = vsel %vm2298, -1.0, %v2346
        %v2363 = vsel %vm2299, -1.0, %v2347
        %v2364 = vsel %vm2300, -1.0, %v2348
        %v2365 = vsel %vm2301, -1.0, %v2349
        %v2366 = vsel %vm2302, -1.0, %v2350
        %v2367 = vsel %vm2303, -1.0, %v2351
        %v2368 = vsel %vm2304, -1.0, %v2352
        %v2369 = vsel %vm2305, -1.0, %v2353
        %v2370 = vsel %vm2306, -1.0, %v2354
        %v2371 = vsel %vm2307, -1.0, %v2355
        %v2372 = vsel %vm2308, -1.0, %v2356
        %v2373 = vsel %vm2309, -1.0, %v2357
        %v2374 = vsel %vm2310, -1.0, %v2358
        %v2375 = vadd.f32 %v2279, 1.0
        %v2376 = vadd.f32 %v2280, 1.0
        %v2377 = vadd.f32 %v2281, 1.0
        %v2378 = vadd.f32 %v2282, 1.0
        %v2379 = vadd.f32 %v2283, 1.0
        %v2380 = vadd.f32 %v2284, 1.0
        %v2381 = vadd.f32 %v2285, 1.0
        %v2382 = vadd.f32 %v2286, 1.0
        %v2383 = vadd.f32 %v2287, 1.0
        %v2384 = vadd.f32 %v2288, 1.0
        %v2385 = vadd.f32 %v2289, 1.0
        %v2386 = vadd.f32 %v2290, 1.0
        %v2387 = vadd.f32 %v2291, 1.0
        %v2388 = vadd.f32 %v2292, 1.0
        %v2389 = vadd.f32 %v2293, 1.0
        %v2390 = vadd.f32 %v2294, 1.0
        %v2391 = vsel %vm2311, %v2375, 1.0
        %v2392 = vsel %vm2312, %v2376, 1.0
        %v2393 = vsel %vm2313, %v2377, 1.0
        %v2394 = vsel %vm2314, %v2378, 1.0
        %v2395 = vsel %vm2315, %v2379, 1.0
        %v2396 = vsel %vm2316, %v2380, 1.0
        %v2397 = vsel %vm2317, %v2381, 1.0
        %v2398 = vsel %vm2318, %v2382, 1.0
        %v2399 = vsel %vm2319, %v2383, 1.0
        %v2400 = vsel %vm2320, %v2384, 1.0
        %v2401 = vsel %vm2321, %v2385, 1.0
        %v2402 = vsel %vm2322, %v2386, 1.0
        %v2403 = vsel %vm2323, %v2387, 1.0
        %v2404 = vsel %vm2324, %v2388, 1.0
        %v2405 = vsel %vm2325, %v2389, 1.0
        %v2406 = vsel %vm2326, %v2390, 1.0
        %v2407 = vsel %vm2295, %v2279, %v2391
        %v2408 = vsel %vm2296, %v2280, %v2392
        %v2409 = vsel %vm2297, %v2281, %v2393
        %v2410 = vsel %vm2298, %v2282, %v2394
        %v2411 = vsel %vm2299, %v2283, %v2395
        %v2412 = vsel %vm2300, %v2284, %v2396
        %v2413 = vsel %vm2301, %v2285, %v2397
        %v2414 = vsel %vm2302, %v2286, %v2398
        %v2415 = vsel %vm2303, %v2287, %v2399
        %v2416 = vsel %vm2304, %v2288, %v2400
        %v2417 = vsel %vm2305, %v2289, %v2401
        %v2418 = vsel %vm2306, %v2290, %v2402
        %v2419 = vsel %vm2307, %v2291, %v2403
        %v2420 = vsel %vm2308, %v2292, %v2404
        %v2421 = vsel %vm2309, %v2293, %v2405
        %v2422 = vsel %vm2310, %v2294, %v2406
        %v2423 = vrcp.pop %v2407
        %v2424 = vmul.f32 %v2359, %v2423
        %v2425 = vrcp.pop %v2408
        %v2426 = vmul.f32 %v2360, %v2425
        %v2427 = vrcp.pop %v2409
        %v2428 = vmul.f32 %v2361, %v2427
        %v2429 = vrcp.pop %v2410
        %v2430 = vmul.f32 %v2362, %v2429
        %v2431 = vrcp.pop %v2411
        %v2432 = vmul.f32 %v2363, %v2431
        %v2433 = vrcp.pop %v2412
        %v2434 = vmul.f32 %v2364, %v2433
        %v2435 = vrcp.pop %v2413
        %v2436 = vmul.f32 %v2365, %v2435
        %v2437 = vrcp.pop %v2414
        %v2438 = vmul.f32 %v2366, %v2437
        %v2439 = vrcp.pop %v2415
        %v2440 = vmul.f32 %v2367, %v2439
        %v2441 = vrcp.pop %v2416
        %v2442 = vmul.f32 %v2368, %v2441
        %v2443 = vrcp.pop %v2417
        %v2444 = vmul.f32 %v2369, %v2443
        %v2445 = vrcp.pop %v2418
        %v2446 = vmul.f32 %v2370, %v2445
        %v2447 = vrcp.pop %v2419
        %v2448 = vmul.f32 %v2371, %v2447
        %v2449 = vrcp.pop %v2420
        %v2450 = vmul.f32 %v2372, %v2449
        %v2451 = vrcp.pop %v2421
        %v2452 = vmul.f32 %v2373, %v2451
        %v2453 = vrcp.pop %v2422
        %v2454 = vmul.f32 %v2374, %v2453
        %v2455 = vsel %vm2311, 0.7853982, 0.0
        %v2456 = vsel %vm2312, 0.7853982, 0.0
        %v2457 = vsel %vm2313, 0.7853982, 0.0
        %v2458 = vsel %vm2314, 0.7853982, 0.0
        %v2459 = vsel %vm2315, 0.7853982, 0.0
        %v2460 = vsel %vm2316, 0.7853982, 0.0
        %v2461 = vsel %vm2317, 0.7853982, 0.0
        %v2462 = vsel %vm2318, 0.7853982, 0.0
        %v2463 = vsel %vm2319, 0.7853982, 0.0
        %v2464 = vsel %vm2320, 0.7853982, 0.0
        %v2465 = vsel %vm2321, 0.7853982, 0.0
        %v2466 = vsel %vm2322, 0.7853982, 0.0
        %v2467 = vsel %vm2323, 0.7853982, 0.0
        %v2468 = vsel %vm2324, 0.7853982, 0.0
        %v2469 = vsel %vm2325, 0.7853982, 0.0
        %v2470 = vsel %vm2326, 0.7853982, 0.0
        %v2471 = vsel %vm2295, 1.5707964, %v2455
        %v2472 = vsel %vm2296, 1.5707964, %v2456
        %v2473 = vsel %vm2297, 1.5707964, %v2457
        %v2474 = vsel %vm2298, 1.5707964, %v2458
        %v2475 = vsel %vm2299, 1.5707964, %v2459
        %v2476 = vsel %vm2300, 1.5707964, %v2460
        %v2477 = vsel %vm2301, 1.5707964, %v2461
        %v2478 = vsel %vm2302, 1.5707964, %v2462
        %v2479 = vsel %vm2303, 1.5707964, %v2463
        %v2480 = vsel %vm2304, 1.5707964, %v2464
        %v2481 = vsel %vm2305, 1.5707964, %v2465
        %v2482 = vsel %vm2306, 1.5707964, %v2466
        %v2483 = vsel %vm2307, 1.5707964, %v2467
        %v2484 = vsel %vm2308, 1.5707964, %v2468
        %v2485 = vsel %vm2309, 1.5707964, %v2469
        %v2486 = vsel %vm2310, 1.5707964, %v2470
        %v2487 = vmul.f32 %v2424, %v2424
        %v2488 = vmul.f32 %v2426, %v2426
        %v2489 = vmul.f32 %v2428, %v2428
        %v2490 = vmul.f32 %v2430, %v2430
        %v2491 = vmul.f32 %v2432, %v2432
        %v2492 = vmul.f32 %v2434, %v2434
        %v2493 = vmul.f32 %v2436, %v2436
        %v2494 = vmul.f32 %v2438, %v2438
        %v2495 = vmul.f32 %v2440, %v2440
        %v2496 = vmul.f32 %v2442, %v2442
        %v2497 = vmul.f32 %v2444, %v2444
        %v2498 = vmul.f32 %v2446, %v2446
        %v2499 = vmul.f32 %v2448, %v2448
        %v2500 = vmul.f32 %v2450, %v2450
        %v2501 = vmul.f32 %v2452, %v2452
        %v2502 = vmul.f32 %v2454, %v2454
        %v2503 = vmul.f32 %v2487, 0.080537446
        %v2504 = vmul.f32 %v2488, 0.080537446
        %v2505 = vmul.f32 %v2489, 0.080537446
        %v2506 = vmul.f32 %v2490, 0.080537446
        %v2507 = vmul.f32 %v2491, 0.080537446
        %v2508 = vmul.f32 %v2492, 0.080537446
        %v2509 = vmul.f32 %v2493, 0.080537446
        %v2510 = vmul.f32 %v2494, 0.080537446
        %v2511 = vmul.f32 %v2495, 0.080537446
        %v2512 = vmul.f32 %v2496, 0.080537446
        %v2513 = vmul.f32 %v2497, 0.080537446
        %v2514 = vmul.f32 %v2498, 0.080537446
        %v2515 = vmul.f32 %v2499, 0.080537446
        %v2516 = vmul.f32 %v2500, 0.080537446
        %v2517 = vmul.f32 %v2501, 0.080537446
        %v2518 = vmul.f32 %v2502, 0.080537446
        %v2519 = vsub.f32 %v2503, 0.13877685
        %v2520 = vsub.f32 %v2504, 0.13877685
        %v2521 = vsub.f32 %v2505, 0.13877685
        %v2522 = vsub.f32 %v2506, 0.13877685
        %v2523 = vsub.f32 %v2507, 0.13877685
        %v2524 = vsub.f32 %v2508, 0.13877685
        %v2525 = vsub.f32 %v2509, 0.13877685
        %v2526 = vsub.f32 %v2510, 0.13877685
        %v2527 = vsub.f32 %v2511, 0.13877685
        %v2528 = vsub.f32 %v2512, 0.13877685
        %v2529 = vsub.f32 %v2513, 0.13877685
        %v2530 = vsub.f32 %v2514, 0.13877685
        %v2531 = vsub.f32 %v2515, 0.13877685
        %v2532 = vsub.f32 %v2516, 0.13877685
        %v2533 = vsub.f32 %v2517, 0.13877685
        %v2534 = vsub.f32 %v2518, 0.13877685
        %v2535 = vmul.f32 %v2519, %v2487
        %v2536 = vmul.f32 %v2520, %v2488
        %v2537 = vmul.f32 %v2521, %v2489
        %v2538 = vmul.f32 %v2522, %v2490
        %v2539 = vmul.f32 %v2523, %v2491
        %v2540 = vmul.f32 %v2524, %v2492
        %v2541 = vmul.f32 %v2525, %v2493
        %v2542 = vmul.f32 %v2526, %v2494
        %v2543 = vmul.f32 %v2527, %v2495
        %v2544 = vmul.f32 %v2528, %v2496
        %v2545 = vmul.f32 %v2529, %v2497
        %v2546 = vmul.f32 %v2530, %v2498
        %v2547 = vmul.f32 %v2531, %v2499
        %v2548 = vmul.f32 %v2532, %v2500
        %v2549 = vmul.f32 %v2533, %v2501
        %v2550 = vmul.f32 %v2534, %v2502
        %v2551 = vadd.f32 %v2535, 0.19977711
        %v2552 = vadd.f32 %v2536, 0.19977711
        %v2553 = vadd.f32 %v2537, 0.19977711
        %v2554 = vadd.f32 %v2538, 0.19977711
        %v2555 = vadd.f32 %v2539, 0.19977711
        %v2556 = vadd.f32 %v2540, 0.19977711
        %v2557 = vadd.f32 %v2541, 0.19977711
        %v2558 = vadd.f32 %v2542, 0.19977711
        %v2559 = vadd.f32 %v2543, 0.19977711
        %v2560 = vadd.f32 %v2544, 0.19977711
        %v2561 = vadd.f32 %v2545, 0.19977711
        %v2562 = vadd.f32 %v2546, 0.19977711
        %v2563 = vadd.f32 %v2547, 0.19977711
        %v2564 = vadd.f32 %v2548, 0.19977711
        %v2565 = vadd.f32 %v2549, 0.19977711
        %v2566 = vadd.f32 %v2550, 0.19977711
        %v2567 = vmul.f32 %v2551, %v2487
        %v2568 = vmul.f32 %v2552, %v2488
        %v2569 = vmul.f32 %v2553, %v2489
        %v2570 = vmul.f32 %v2554, %v2490
        %v2571 = vmul.f32 %v2555, %v2491
        %v2572 = vmul.f32 %v2556, %v2492
        %v2573 = vmul.f32 %v2557, %v2493
        %v2574 = vmul.f32 %v2558, %v2494
        %v2575 = vmul.f32 %v2559, %v2495
        %v2576 = vmul.f32 %v2560, %v2496
        %v2577 = vmul.f32 %v2561, %v2497
        %v2578 = vmul.f32 %v2562, %v2498
        %v2579 = vmul.f32 %v2563, %v2499
        %v2580 = vmul.f32 %v2564, %v2500
        %v2581 = vmul.f32 %v2565, %v2501
        %v2582 = vmul.f32 %v2566, %v2502
        %v2583 = vsub.f32 %v2567, 0.3333295
        %v2584 = vsub.f32 %v2568, 0.3333295
        %v2585 = vsub.f32 %v2569, 0.3333295
        %v2586 = vsub.f32 %v2570, 0.3333295
        %v2587 = vsub.f32 %v2571, 0.3333295
        %v2588 = vsub.f32 %v2572, 0.3333295
        %v2589 = vsub.f32 %v2573, 0.3333295
        %v2590 = vsub.f32 %v2574, 0.3333295
        %v2591 = vsub.f32 %v2575, 0.3333295
        %v2592 = vsub.f32 %v2576, 0.3333295
        %v2593 = vsub.f32 %v2577, 0.3333295
        %v2594 = vsub.f32 %v2578, 0.3333295
        %v2595 = vsub.f32 %v2579, 0.3333295
        %v2596 = vsub.f32 %v2580, 0.3333295
        %v2597 = vsub.f32 %v2581, 0.3333295
        %v2598 = vsub.f32 %v2582, 0.3333295
        %v2599 = vmul.f32 %v2583, %v2487
        %v2600 = vmul.f32 %v2584, %v2488
        %v2601 = vmul.f32 %v2585, %v2489
        %v2602 = vmul.f32 %v2586, %v2490
        %v2603 = vmul.f32 %v2587, %v2491
        %v2604 = vmul.f32 %v2588, %v2492
        %v2605 = vmul.f32 %v2589, %v2493
        %v2606 = vmul.f32 %v2590, %v2494
        %v2607 = vmul.f32 %v2591, %v2495
        %v2608 = vmul.f32 %v2592, %v2496
        %v2609 = vmul.f32 %v2593, %v2497
        %v2610 = vmul.f32 %v2594, %v2498
        %v2611 = vmul.f32 %v2595, %v2499
        %v2612 = vmul.f32 %v2596, %v2500
        %v2613 = vmul.f32 %v2597, %v2501
        %v2614 = vmul.f32 %v2598, %v2502
        %v2615 = vmul.f32 %v2599, %v2424
        %v2616 = vmul.f32 %v2600, %v2426
        %v2617 = vmul.f32 %v2601, %v2428
        %v2618 = vmul.f32 %v2602, %v2430
        %v2619 = vmul.f32 %v2603, %v2432
        %v2620 = vmul.f32 %v2604, %v2434
        %v2621 = vmul.f32 %v2605, %v2436
        %v2622 = vmul.f32 %v2606, %v2438
        %v2623 = vmul.f32 %v2607, %v2440
        %v2624 = vmul.f32 %v2608, %v2442
        %v2625 = vmul.f32 %v2609, %v2444
        %v2626 = vmul.f32 %v2610, %v2446
        %v2627 = vmul.f32 %v2611, %v2448
        %v2628 = vmul.f32 %v2612, %v2450
        %v2629 = vmul.f32 %v2613, %v2452
        %v2630 = vmul.f32 %v2614, %v2454
        %v2631 = vadd.f32 %v2615, %v2424
        %v2632 = vadd.f32 %v2616, %v2426
        %v2633 = vadd.f32 %v2617, %v2428
        %v2634 = vadd.f32 %v2618, %v2430
        %v2635 = vadd.f32 %v2619, %v2432
        %v2636 = vadd.f32 %v2620, %v2434
        %v2637 = vadd.f32 %v2621, %v2436
        %v2638 = vadd.f32 %v2622, %v2438
        %v2639 = vadd.f32 %v2623, %v2440
        %v2640 = vadd.f32 %v2624, %v2442
        %v2641 = vadd.f32 %v2625, %v2444
        %v2642 = vadd.f32 %v2626, %v2446
        %v2643 = vadd.f32 %v2627, %v2448
        %v2644 = vadd.f32 %v2628, %v2450
        %v2645 = vadd.f32 %v2629, %v2452
        %v2646 = vadd.f32 %v2630, %v2454
        %v2647 = vadd.f32 %v2471, %v2631
        %v2648 = vadd.f32 %v2472, %v2632
        %v2649 = vadd.f32 %v2473, %v2633
        %v2650 = vadd.f32 %v2474, %v2634
        %v2651 = vadd.f32 %v2475, %v2635
        %v2652 = vadd.f32 %v2476, %v2636
        %v2653 = vadd.f32 %v2477, %v2637
        %v2654 = vadd.f32 %v2478, %v2638
        %v2655 = vadd.f32 %v2479, %v2639
        %v2656 = vadd.f32 %v2480, %v2640
        %v2657 = vadd.f32 %v2481, %v2641
        %v2658 = vadd.f32 %v2482, %v2642
        %v2659 = vadd.f32 %v2483, %v2643
        %v2660 = vadd.f32 %v2484, %v2644
        %v2661 = vadd.f32 %v2485, %v2645
        %v2662 = vadd.f32 %v2486, %v2646
        %vm2663 = vcmp.lt.f32.partialorder %v2246, 0.0
        %vm2664 = vcmp.lt.f32.partialorder %v2247, 0.0
        %vm2665 = vcmp.lt.f32.partialorder %v2248, 0.0
        %vm2666 = vcmp.lt.f32.partialorder %v2249, 0.0
        %vm2667 = vcmp.lt.f32.partialorder %v2250, 0.0
        %vm2668 = vcmp.lt.f32.partialorder %v2251, 0.0
        %vm2669 = vcmp.lt.f32.partialorder %v2252, 0.0
        %vm2670 = vcmp.lt.f32.partialorder %v2253, 0.0
        %vm2671 = vcmp.lt.f32.partialorder %v2254, 0.0
        %vm2672 = vcmp.lt.f32.partialorder %v2255, 0.0
        %vm2673 = vcmp.lt.f32.partialorder %v2256, 0.0
        %vm2674 = vcmp.lt.f32.partialorder %v2257, 0.0
        %vm2675 = vcmp.lt.f32.partialorder %v2258, 0.0
        %vm2676 = vcmp.lt.f32.partialorder %v2259, 0.0
        %vm2677 = vcmp.lt.f32.partialorder %v2260, 0.0
        %vm2678 = vcmp.lt.f32.partialorder %v2261, 0.0
        %v2679 = vsub.f32 0.0, %v2647
        %v2680 = vsub.f32 0.0, %v2648
        %v2681 = vsub.f32 0.0, %v2649
        %v2682 = vsub.f32 0.0, %v2650
        %v2683 = vsub.f32 0.0, %v2651
        %v2684 = vsub.f32 0.0, %v2652
        %v2685 = vsub.f32 0.0, %v2653
        %v2686 = vsub.f32 0.0, %v2654
        %v2687 = vsub.f32 0.0, %v2655
        %v2688 = vsub.f32 0.0, %v2656
        %v2689 = vsub.f32 0.0, %v2657
        %v2690 = vsub.f32 0.0, %v2658
        %v2691 = vsub.f32 0.0, %v2659
        %v2692 = vsub.f32 0.0, %v2660
        %v2693 = vsub.f32 0.0, %v2661
        %v2694 = vsub.f32 0.0, %v2662
        %v2695 = vsel %vm2663, %v2679, %v2647
        %v2696 = vsel %vm2664, %v2680, %v2648
        %v2697 = vsel %vm2665, %v2681, %v2649
        %v2698 = vsel %vm2666, %v2682, %v2650
        %v2699 = vsel %vm2667, %v2683, %v2651
        %v2700 = vsel %vm2668, %v2684, %v2652
        %v2701 = vsel %vm2669, %v2685, %v2653
        %v2702 = vsel %vm2670, %v2686, %v2654
        %v2703 = vsel %vm2671, %v2687, %v2655
        %v2704 = vsel %vm2672, %v2688, %v2656
        %v2705 = vsel %vm2673, %v2689, %v2657
        %v2706 = vsel %vm2674, %v2690, %v2658
        %v2707 = vsel %vm2675, %v2691, %v2659
        %v2708 = vsel %vm2676, %v2692, %v2660
        %v2709 = vsel %vm2677, %v2693, %v2661
        %v2710 = vsel %vm2678, %v2694, %v2662
        %v2711 = vadd.f32 %v2695, 3.455752
        %v2712 = vadd.f32 %v2696, 3.455752
        %v2713 = vadd.f32 %v2697, 3.455752
        %v2714 = vadd.f32 %v2698, 3.455752
        %v2715 = vadd.f32 %v2699, 3.455752
        %v2716 = vadd.f32 %v2700, 3.455752
        %v2717 = vadd.f32 %v2701, 3.455752
        %v2718 = vadd.f32 %v2702, 3.455752
        %v2719 = vadd.f32 %v2703, 3.455752
        %v2720 = vadd.f32 %v2704, 3.455752
        %v2721 = vadd.f32 %v2705, 3.455752
        %v2722 = vadd.f32 %v2706, 3.455752
        %v2723 = vadd.f32 %v2707, 3.455752
        %v2724 = vadd.f32 %v2708, 3.455752
        %v2725 = vadd.f32 %v2709, 3.455752
        %v2726 = vadd.f32 %v2710, 3.455752
        %v2727 = vlog2.pop %v2711
        %v2728 = vmul.f32 %v2727, 0.6931472
        %v2729 = vlog2.pop %v2712
        %v2730 = vmul.f32 %v2729, 0.6931472
        %v2731 = vlog2.pop %v2713
        %v2732 = vmul.f32 %v2731, 0.6931472
        %v2733 = vlog2.pop %v2714
        %v2734 = vmul.f32 %v2733, 0.6931472
        %v2735 = vlog2.pop %v2715
        %v2736 = vmul.f32 %v2735, 0.6931472
        %v2737 = vlog2.pop %v2716
        %v2738 = vmul.f32 %v2737, 0.6931472
        %v2739 = vlog2.pop %v2717
        %v2740 = vmul.f32 %v2739, 0.6931472
        %v2741 = vlog2.pop %v2718
        %v2742 = vmul.f32 %v2741, 0.6931472
        %v2743 = vlog2.pop %v2719
        %v2744 = vmul.f32 %v2743, 0.6931472
        %v2745 = vlog2.pop %v2720
        %v2746 = vmul.f32 %v2745, 0.6931472
        %v2747 = vlog2.pop %v2721
        %v2748 = vmul.f32 %v2747, 0.6931472
        %v2749 = vlog2.pop %v2722
        %v2750 = vmul.f32 %v2749, 0.6931472
        %v2751 = vlog2.pop %v2723
        %v2752 = vmul.f32 %v2751, 0.6931472
        %v2753 = vlog2.pop %v2724
        %v2754 = vmul.f32 %v2753, 0.6931472
        %v2755 = vlog2.pop %v2725
        %v2756 = vmul.f32 %v2755, 0.6931472
        %v2757 = vlog2.pop %v2726
        %v2758 = vmul.f32 %v2757, 0.6931472
        %v2759 = vadd.f32 %v2263, %v2728
        %v2760 = vadd.f32 %v2264, %v2730
        %v2761 = vadd.f32 %v2265, %v2732
        %v2762 = vadd.f32 %v2266, %v2734
        %v2763 = vadd.f32 %v2267, %v2736
        %v2764 = vadd.f32 %v2268, %v2738
        %v2765 = vadd.f32 %v2269, %v2740
        %v2766 = vadd.f32 %v2270, %v2742
        %v2767 = vadd.f32 %v2271, %v2744
        %v2768 = vadd.f32 %v2272, %v2746
        %v2769 = vadd.f32 %v2273, %v2748
        %v2770 = vadd.f32 %v2274, %v2750
        %v2771 = vadd.f32 %v2275, %v2752
        %v2772 = vadd.f32 %v2276, %v2754
        %v2773 = vadd.f32 %v2277, %v2756
        %v2774 = vadd.f32 %v2278, %v2758
        %2775 = vst.msk [vmem:[%s2262] sm:$0x3] %vm1008, %v2759
        %2776 = vst.msk [vmem:[%s2262 + $0x2] sm:$0x3] %vm1008, %v2760
        %2777 = vst.msk [vmem:[%s2262 + $0x4] sm:$0x3] %vm1008, %v2761
        %2778 = vst.msk [vmem:[%s2262 + $0x6] sm:$0x3] %vm1008, %v2762
        %2779 = vst.msk [vmem:[%s2262 + $0x8] sm:$0x3] %vm1008, %v2763
        %2780 = vst.msk [vmem:[%s2262 + $0xa] sm:$0x3] %vm1008, %v2764
        %2781 = vst.msk [vmem:[%s2262 + $0xc] sm:$0x3] %vm1008, %v2765
        %2782 = vst.msk [vmem:[%s2262 + $0xe] sm:$0x3] %vm1008, %v2766
        %2783 = vst.msk [vmem:[%s2262 + $0x10] sm:$0x3] %vm1008, %v2767
        %2784 = vst.msk [vmem:[%s2262 + $0x12] sm:$0x3] %vm1008, %v2768
        %2785 = vst.msk [vmem:[%s2262 + $0x14] sm:$0x3] %vm1008, %v2769
        %2786 = vst.msk [vmem:[%s2262 + $0x16] sm:$0x3] %vm1008, %v2770
        %2787 = vst.msk [vmem:[%s2262 + $0x18] sm:$0x3] %vm1008, %v2771
        %2788 = vst.msk [vmem:[%s2262 + $0x1a] sm:$0x3] %vm1008, %v2772
        %2789 = vst.msk [vmem:[%s2262 + $0x1c] sm:$0x3] %vm1008, %v2773
        %2790 = vst.msk [vmem:[%s2262 + $0x1e] sm:$0x3] %vm1008, %v2774
        %s2791 = scalar_lea.vmem %s318, 64
        %v2792 = vld [vmem:[%s2791] sm:$0x3]
        %v2793 = vld [vmem:[%s2791 + $0x2] sm:$0x3]
        %v2794 = vld [vmem:[%s2791 + $0x4] sm:$0x3]
        %v2795 = vld [vmem:[%s2791 + $0x6] sm:$0x3]
        %v2796 = vld [vmem:[%s2791 + $0x8] sm:$0x3]
        %v2797 = vld [vmem:[%s2791 + $0xa] sm:$0x3]
        %v2798 = vld [vmem:[%s2791 + $0xc] sm:$0x3]
        %v2799 = vld [vmem:[%s2791 + $0xe] sm:$0x3]
        %v2800 = vld [vmem:[%s2791 + $0x10] sm:$0x3]
        %v2801 = vld [vmem:[%s2791 + $0x12] sm:$0x3]
        %v2802 = vld [vmem:[%s2791 + $0x14] sm:$0x3]
        %v2803 = vld [vmem:[%s2791 + $0x16] sm:$0x3]
        %v2804 = vld [vmem:[%s2791 + $0x18] sm:$0x3]
        %v2805 = vld [vmem:[%s2791 + $0x1a] sm:$0x3]
        %v2806 = vld [vmem:[%s2791 + $0x1c] sm:$0x3]
        %v2807 = vld [vmem:[%s2791 + $0x1e] sm:$0x3]
        %s2808 = scalar_lea.vmem %s322, 4
        %v2809 = vld [vmem:[%s2808] sm:$0x1]
        %s2810 = scalar_lea.vmem %s326, 4
        %v2811 = vld [vmem:[%s2810] sm:$0x1]
        %v2813 = vlaneseq
        %v2814 = vshrl.u32 %v2813, 7
        %v2815 = vsub.s32 0, %v2814
        %v2816 = vrot.slane %v2809, %v2815
        %2817 = vset.pattern.permute.xlu0 0
        %2818 = vperm.xlu0 %2817, %v2816
        %v2819 = vpop.permute.xlu0 %2818
        %v2821 = vmul.f32 %v2792, %v2819
        %v2822 = vmul.f32 %v2793, %v2819
        %v2823 = vmul.f32 %v2794, %v2819
        %v2824 = vmul.f32 %v2795, %v2819
        %v2825 = vmul.f32 %v2796, %v2819
        %v2826 = vmul.f32 %v2797, %v2819
        %v2827 = vmul.f32 %v2798, %v2819
        %v2828 = vmul.f32 %v2799, %v2819
        %v2829 = vmul.f32 %v2800, %v2819
        %v2830 = vmul.f32 %v2801, %v2819
        %v2831 = vmul.f32 %v2802, %v2819
        %v2832 = vmul.f32 %v2803, %v2819
        %v2833 = vmul.f32 %v2804, %v2819
        %v2834 = vmul.f32 %v2805, %v2819
        %v2835 = vmul.f32 %v2806, %v2819
        %v2836 = vmul.f32 %v2807, %v2819
        %v2838 = vlaneseq
        %v2839 = vshrl.u32 %v2838, 7
        %v2840 = vsub.s32 0, %v2839
        %v2841 = vrot.slane %v2811, %v2840
        %2842 = vset.pattern.permute.xlu0 0
        %2843 = vperm.xlu0 %2842, %v2841
        %v2844 = vpop.permute.xlu0 %2843
        %v2846 = vsub.f32 %v2821, %v2844
        %v2847 = vsub.f32 %v2822, %v2844
        %v2848 = vsub.f32 %v2823, %v2844
        %v2849 = vsub.f32 %v2824, %v2844
        %v2850 = vsub.f32 %v2825, %v2844
        %v2851 = vsub.f32 %v2826, %v2844
        %v2852 = vsub.f32 %v2827, %v2844
        %v2853 = vsub.f32 %v2828, %v2844
        %v2854 = vsub.f32 %v2829, %v2844
        %v2855 = vsub.f32 %v2830, %v2844
        %v2856 = vsub.f32 %v2831, %v2844
        %v2857 = vsub.f32 %v2832, %v2844
        %v2858 = vsub.f32 %v2833, %v2844
        %v2859 = vsub.f32 %v2834, %v2844
        %v2860 = vsub.f32 %v2835, %v2844
        %v2861 = vsub.f32 %v2836, %v2844
        %s2862 = scalar_lea.vmem [#allocation2], 128
        %v2863 = vld [vmem:[%s2862] sm:$0x3]
        %v2864 = vld [vmem:[%s2862 + $0x2] sm:$0x3]
        %v2865 = vld [vmem:[%s2862 + $0x4] sm:$0x3]
        %v2866 = vld [vmem:[%s2862 + $0x6] sm:$0x3]
        %v2867 = vld [vmem:[%s2862 + $0x8] sm:$0x3]
        %v2868 = vld [vmem:[%s2862 + $0xa] sm:$0x3]
        %v2869 = vld [vmem:[%s2862 + $0xc] sm:$0x3]
        %v2870 = vld [vmem:[%s2862 + $0xe] sm:$0x3]
        %v2871 = vld [vmem:[%s2862 + $0x10] sm:$0x3]
        %v2872 = vld [vmem:[%s2862 + $0x12] sm:$0x3]
        %v2873 = vld [vmem:[%s2862 + $0x14] sm:$0x3]
        %v2874 = vld [vmem:[%s2862 + $0x16] sm:$0x3]
        %v2875 = vld [vmem:[%s2862 + $0x18] sm:$0x3]
        %v2876 = vld [vmem:[%s2862 + $0x1a] sm:$0x3]
        %v2877 = vld [vmem:[%s2862 + $0x1c] sm:$0x3]
        %v2878 = vld [vmem:[%s2862 + $0x1e] sm:$0x3]
        %v2879 = vand.u32 2147483647, %v2846
        %v2880 = vand.u32 2147483647, %v2847
        %v2881 = vand.u32 2147483647, %v2848
        %v2882 = vand.u32 2147483647, %v2849
        %v2883 = vand.u32 2147483647, %v2850
        %v2884 = vand.u32 2147483647, %v2851
        %v2885 = vand.u32 2147483647, %v2852
        %v2886 = vand.u32 2147483647, %v2853
        %v2887 = vand.u32 2147483647, %v2854
        %v2888 = vand.u32 2147483647, %v2855
        %v2889 = vand.u32 2147483647, %v2856
        %v2890 = vand.u32 2147483647, %v2857
        %v2891 = vand.u32 2147483647, %v2858
        %v2892 = vand.u32 2147483647, %v2859
        %v2893 = vand.u32 2147483647, %v2860
        %v2894 = vand.u32 2147483647, %v2861
        %vm2895 = vcmp.gt.f32.partialorder %v2879, 2.4142137
        %vm2896 = vcmp.gt.f32.partialorder %v2880, 2.4142137
        %vm2897 = vcmp.gt.f32.partialorder %v2881, 2.4142137
        %vm2898 = vcmp.gt.f32.partialorder %v2882, 2.4142137
        %vm2899 = vcmp.gt.f32.partialorder %v2883, 2.4142137
        %vm2900 = vcmp.gt.f32.partialorder %v2884, 2.4142137
        %vm2901 = vcmp.gt.f32.partialorder %v2885, 2.4142137
        %vm2902 = vcmp.gt.f32.partialorder %v2886, 2.4142137
        %vm2903 = vcmp.gt.f32.partialorder %v2887, 2.4142137
        %vm2904 = vcmp.gt.f32.partialorder %v2888, 2.4142137
        %vm2905 = vcmp.gt.f32.partialorder %v2889, 2.4142137
        %vm2906 = vcmp.gt.f32.partialorder %v2890, 2.4142137
        %vm2907 = vcmp.gt.f32.partialorder %v2891, 2.4142137
        %vm2908 = vcmp.gt.f32.partialorder %v2892, 2.4142137
        %vm2909 = vcmp.gt.f32.partialorder %v2893, 2.4142137
        %vm2910 = vcmp.gt.f32.partialorder %v2894, 2.4142137
        %vm2911 = vcmp.gt.f32.partialorder %v2879, 0.41421357
        %vm2912 = vcmp.gt.f32.partialorder %v2880, 0.41421357
        %vm2913 = vcmp.gt.f32.partialorder %v2881, 0.41421357
        %vm2914 = vcmp.gt.f32.partialorder %v2882, 0.41421357
        %vm2915 = vcmp.gt.f32.partialorder %v2883, 0.41421357
        %vm2916 = vcmp.gt.f32.partialorder %v2884, 0.41421357
        %vm2917 = vcmp.gt.f32.partialorder %v2885, 0.41421357
        %vm2918 = vcmp.gt.f32.partialorder %v2886, 0.41421357
        %vm2919 = vcmp.gt.f32.partialorder %v2887, 0.41421357
        %vm2920 = vcmp.gt.f32.partialorder %v2888, 0.41421357
        %vm2921 = vcmp.gt.f32.partialorder %v2889, 0.41421357
        %vm2922 = vcmp.gt.f32.partialorder %v2890, 0.41421357
        %vm2923 = vcmp.gt.f32.partialorder %v2891, 0.41421357
        %vm2924 = vcmp.gt.f32.partialorder %v2892, 0.41421357
        %vm2925 = vcmp.gt.f32.partialorder %v2893, 0.41421357
        %vm2926 = vcmp.gt.f32.partialorder %v2894, 0.41421357
        %v2927 = vsub.f32 %v2879, 1.0
        %v2928 = vsub.f32 %v2880, 1.0
        %v2929 = vsub.f32 %v2881, 1.0
        %v2930 = vsub.f32 %v2882, 1.0
        %v2931 = vsub.f32 %v2883, 1.0
        %v2932 = vsub.f32 %v2884, 1.0
        %v2933 = vsub.f32 %v2885, 1.0
        %v2934 = vsub.f32 %v2886, 1.0
        %v2935 = vsub.f32 %v2887, 1.0
        %v2936 = vsub.f32 %v2888, 1.0
        %v2937 = vsub.f32 %v2889, 1.0
        %v2938 = vsub.f32 %v2890, 1.0
        %v2939 = vsub.f32 %v2891, 1.0
        %v2940 = vsub.f32 %v2892, 1.0
        %v2941 = vsub.f32 %v2893, 1.0
        %v2942 = vsub.f32 %v2894, 1.0
        %v2943 = vsel %vm2911, %v2927, %v2879
        %v2944 = vsel %vm2912, %v2928, %v2880
        %v2945 = vsel %vm2913, %v2929, %v2881
        %v2946 = vsel %vm2914, %v2930, %v2882
        %v2947 = vsel %vm2915, %v2931, %v2883
        %v2948 = vsel %vm2916, %v2932, %v2884
        %v2949 = vsel %vm2917, %v2933, %v2885
        %v2950 = vsel %vm2918, %v2934, %v2886
        %v2951 = vsel %vm2919, %v2935, %v2887
        %v2952 = vsel %vm2920, %v2936, %v2888
        %v2953 = vsel %vm2921, %v2937, %v2889
        %v2954 = vsel %vm2922, %v2938, %v2890
        %v2955 = vsel %vm2923, %v2939, %v2891
        %v2956 = vsel %vm2924, %v2940, %v2892
        %v2957 = vsel %vm2925, %v2941, %v2893
        %v2958 = vsel %vm2926, %v2942, %v2894
        %v2959 = vsel %vm2895, -1.0, %v2943
        %v2960 = vsel %vm2896, -1.0, %v2944
        %v2961 = vsel %vm2897, -1.0, %v2945
        %v2962 = vsel %vm2898, -1.0, %v2946
        %v2963 = vsel %vm2899, -1.0, %v2947
        %v2964 = vsel %vm2900, -1.0, %v2948
        %v2965 = vsel %vm2901, -1.0, %v2949
        %v2966 = vsel %vm2902, -1.0, %v2950
        %v2967 = vsel %vm2903, -1.0, %v2951
        %v2968 = vsel %vm2904, -1.0, %v2952
        %v2969 = vsel %vm2905, -1.0, %v2953
        %v2970 = vsel %vm2906, -1.0, %v2954
        %v2971 = vsel %vm2907, -1.0, %v2955
        %v2972 = vsel %vm2908, -1.0, %v2956
        %v2973 = vsel %vm2909, -1.0, %v2957
        %v2974 = vsel %vm2910, -1.0, %v2958
        %v2975 = vadd.f32 %v2879, 1.0
        %v2976 = vadd.f32 %v2880, 1.0
        %v2977 = vadd.f32 %v2881, 1.0
        %v2978 = vadd.f32 %v2882, 1.0
        %v2979 = vadd.f32 %v2883, 1.0
        %v2980 = vadd.f32 %v2884, 1.0
        %v2981 = vadd.f32 %v2885, 1.0
        %v2982 = vadd.f32 %v2886, 1.0
        %v2983 = vadd.f32 %v2887, 1.0
        %v2984 = vadd.f32 %v2888, 1.0
        %v2985 = vadd.f32 %v2889, 1.0
        %v2986 = vadd.f32 %v2890, 1.0
        %v2987 = vadd.f32 %v2891, 1.0
        %v2988 = vadd.f32 %v2892, 1.0
        %v2989 = vadd.f32 %v2893, 1.0
        %v2990 = vadd.f32 %v2894, 1.0
        %v2991 = vsel %vm2911, %v2975, 1.0
        %v2992 = vsel %vm2912, %v2976, 1.0
        %v2993 = vsel %vm2913, %v2977, 1.0
        %v2994 = vsel %vm2914, %v2978, 1.0
        %v2995 = vsel %vm2915, %v2979, 1.0
        %v2996 = vsel %vm2916, %v2980, 1.0
        %v2997 = vsel %vm2917, %v2981, 1.0
        %v2998 = vsel %vm2918, %v2982, 1.0
        %v2999 = vsel %vm2919, %v2983, 1.0
        %v3000 = vsel %vm2920, %v2984, 1.0
        %v3001 = vsel %vm2921, %v2985, 1.0
        %v3002 = vsel %vm2922, %v2986, 1.0
        %v3003 = vsel %vm2923, %v2987, 1.0
        %v3004 = vsel %vm2924, %v2988, 1.0
        %v3005 = vsel %vm2925, %v2989, 1.0
        %v3006 = vsel %vm2926, %v2990, 1.0
        %v3007 = vsel %vm2895, %v2879, %v2991
        %v3008 = vsel %vm2896, %v2880, %v2992
        %v3009 = vsel %vm2897, %v2881, %v2993
        %v3010 = vsel %vm2898, %v2882, %v2994
        %v3011 = vsel %vm2899, %v2883, %v2995
        %v3012 = vsel %vm2900, %v2884, %v2996
        %v3013 = vsel %vm2901, %v2885, %v2997
        %v3014 = vsel %vm2902, %v2886, %v2998
        %v3015 = vsel %vm2903, %v2887, %v2999
        %v3016 = vsel %vm2904, %v2888, %v3000
        %v3017 = vsel %vm2905, %v2889, %v3001
        %v3018 = vsel %vm2906, %v2890, %v3002
        %v3019 = vsel %vm2907, %v2891, %v3003
        %v3020 = vsel %vm2908, %v2892, %v3004
        %v3021 = vsel %vm2909, %v2893, %v3005
        %v3022 = vsel %vm2910, %v2894, %v3006
        %v3023 = vrcp.pop %v3007
        %v3024 = vmul.f32 %v2959, %v3023
        %v3025 = vrcp.pop %v3008
        %v3026 = vmul.f32 %v2960, %v3025
        %v3027 = vrcp.pop %v3009
        %v3028 = vmul.f32 %v2961, %v3027
        %v3029 = vrcp.pop %v3010
        %v3030 = vmul.f32 %v2962, %v3029
        %v3031 = vrcp.pop %v3011
        %v3032 = vmul.f32 %v2963, %v3031
        %v3033 = vrcp.pop %v3012
        %v3034 = vmul.f32 %v2964, %v3033
        %v3035 = vrcp.pop %v3013
        %v3036 = vmul.f32 %v2965, %v3035
        %v3037 = vrcp.pop %v3014
        %v3038 = vmul.f32 %v2966, %v3037
        %v3039 = vrcp.pop %v3015
        %v3040 = vmul.f32 %v2967, %v3039
        %v3041 = vrcp.pop %v3016
        %v3042 = vmul.f32 %v2968, %v3041
        %v3043 = vrcp.pop %v3017
        %v3044 = vmul.f32 %v2969, %v3043
        %v3045 = vrcp.pop %v3018
        %v3046 = vmul.f32 %v2970, %v3045
        %v3047 = vrcp.pop %v3019
        %v3048 = vmul.f32 %v2971, %v3047
        %v3049 = vrcp.pop %v3020
        %v3050 = vmul.f32 %v2972, %v3049
        %v3051 = vrcp.pop %v3021
        %v3052 = vmul.f32 %v2973, %v3051
        %v3053 = vrcp.pop %v3022
        %v3054 = vmul.f32 %v2974, %v3053
        %v3055 = vsel %vm2911, 0.7853982, 0.0
        %v3056 = vsel %vm2912, 0.7853982, 0.0
        %v3057 = vsel %vm2913, 0.7853982, 0.0
        %v3058 = vsel %vm2914, 0.7853982, 0.0
        %v3059 = vsel %vm2915, 0.7853982, 0.0
        %v3060 = vsel %vm2916, 0.7853982, 0.0
        %v3061 = vsel %vm2917, 0.7853982, 0.0
        %v3062 = vsel %vm2918, 0.7853982, 0.0
        %v3063 = vsel %vm2919, 0.7853982, 0.0
        %v3064 = vsel %vm2920, 0.7853982, 0.0
        %v3065 = vsel %vm2921, 0.7853982, 0.0
        %v3066 = vsel %vm2922, 0.7853982, 0.0
        %v3067 = vsel %vm2923, 0.7853982, 0.0
        %v3068 = vsel %vm2924, 0.7853982, 0.0
        %v3069 = vsel %vm2925, 0.7853982, 0.0
        %v3070 = vsel %vm2926, 0.7853982, 0.0
        %v3071 = vsel %vm2895, 1.5707964, %v3055
        %v3072 = vsel %vm2896, 1.5707964, %v3056
        %v3073 = vsel %vm2897, 1.5707964, %v3057
        %v3074 = vsel %vm2898, 1.5707964, %v3058
        %v3075 = vsel %vm2899, 1.5707964, %v3059
        %v3076 = vsel %vm2900, 1.5707964, %v3060
        %v3077 = vsel %vm2901, 1.5707964, %v3061
        %v3078 = vsel %vm2902, 1.5707964, %v3062
        %v3079 = vsel %vm2903, 1.5707964, %v3063
        %v3080 = vsel %vm2904, 1.5707964, %v3064
        %v3081 = vsel %vm2905, 1.5707964, %v3065
        %v3082 = vsel %vm2906, 1.5707964, %v3066
        %v3083 = vsel %vm2907, 1.5707964, %v3067
        %v3084 = vsel %vm2908, 1.5707964, %v3068
        %v3085 = vsel %vm2909, 1.5707964, %v3069
        %v3086 = vsel %vm2910, 1.5707964, %v3070
        %v3087 = vmul.f32 %v3024, %v3024
        %v3088 = vmul.f32 %v3026, %v3026
        %v3089 = vmul.f32 %v3028, %v3028
        %v3090 = vmul.f32 %v3030, %v3030
        %v3091 = vmul.f32 %v3032, %v3032
        %v3092 = vmul.f32 %v3034, %v3034
        %v3093 = vmul.f32 %v3036, %v3036
        %v3094 = vmul.f32 %v3038, %v3038
        %v3095 = vmul.f32 %v3040, %v3040
        %v3096 = vmul.f32 %v3042, %v3042
        %v3097 = vmul.f32 %v3044, %v3044
        %v3098 = vmul.f32 %v3046, %v3046
        %v3099 = vmul.f32 %v3048, %v3048
        %v3100 = vmul.f32 %v3050, %v3050
        %v3101 = vmul.f32 %v3052, %v3052
        %v3102 = vmul.f32 %v3054, %v3054
        %v3103 = vmul.f32 %v3087, 0.080537446
        %v3104 = vmul.f32 %v3088, 0.080537446
        %v3105 = vmul.f32 %v3089, 0.080537446
        %v3106 = vmul.f32 %v3090, 0.080537446
        %v3107 = vmul.f32 %v3091, 0.080537446
        %v3108 = vmul.f32 %v3092, 0.080537446
        %v3109 = vmul.f32 %v3093, 0.080537446
        %v3110 = vmul.f32 %v3094, 0.080537446
        %v3111 = vmul.f32 %v3095, 0.080537446
        %v3112 = vmul.f32 %v3096, 0.080537446
        %v3113 = vmul.f32 %v3097, 0.080537446
        %v3114 = vmul.f32 %v3098, 0.080537446
        %v3115 = vmul.f32 %v3099, 0.080537446
        %v3116 = vmul.f32 %v3100, 0.080537446
        %v3117 = vmul.f32 %v3101, 0.080537446
        %v3118 = vmul.f32 %v3102, 0.080537446
        %v3119 = vsub.f32 %v3103, 0.13877685
        %v3120 = vsub.f32 %v3104, 0.13877685
        %v3121 = vsub.f32 %v3105, 0.13877685
        %v3122 = vsub.f32 %v3106, 0.13877685
        %v3123 = vsub.f32 %v3107, 0.13877685
        %v3124 = vsub.f32 %v3108, 0.13877685
        %v3125 = vsub.f32 %v3109, 0.13877685
        %v3126 = vsub.f32 %v3110, 0.13877685
        %v3127 = vsub.f32 %v3111, 0.13877685
        %v3128 = vsub.f32 %v3112, 0.13877685
        %v3129 = vsub.f32 %v3113, 0.13877685
        %v3130 = vsub.f32 %v3114, 0.13877685
        %v3131 = vsub.f32 %v3115, 0.13877685
        %v3132 = vsub.f32 %v3116, 0.13877685
        %v3133 = vsub.f32 %v3117, 0.13877685
        %v3134 = vsub.f32 %v3118, 0.13877685
        %v3135 = vmul.f32 %v3119, %v3087
        %v3136 = vmul.f32 %v3120, %v3088
        %v3137 = vmul.f32 %v3121, %v3089
        %v3138 = vmul.f32 %v3122, %v3090
        %v3139 = vmul.f32 %v3123, %v3091
        %v3140 = vmul.f32 %v3124, %v3092
        %v3141 = vmul.f32 %v3125, %v3093
        %v3142 = vmul.f32 %v3126, %v3094
        %v3143 = vmul.f32 %v3127, %v3095
        %v3144 = vmul.f32 %v3128, %v3096
        %v3145 = vmul.f32 %v3129, %v3097
        %v3146 = vmul.f32 %v3130, %v3098
        %v3147 = vmul.f32 %v3131, %v3099
        %v3148 = vmul.f32 %v3132, %v3100
        %v3149 = vmul.f32 %v3133, %v3101
        %v3150 = vmul.f32 %v3134, %v3102
        %v3151 = vadd.f32 %v3135, 0.19977711
        %v3152 = vadd.f32 %v3136, 0.19977711
        %v3153 = vadd.f32 %v3137, 0.19977711
        %v3154 = vadd.f32 %v3138, 0.19977711
        %v3155 = vadd.f32 %v3139, 0.19977711
        %v3156 = vadd.f32 %v3140, 0.19977711
        %v3157 = vadd.f32 %v3141, 0.19977711
        %v3158 = vadd.f32 %v3142, 0.19977711
        %v3159 = vadd.f32 %v3143, 0.19977711
        %v3160 = vadd.f32 %v3144, 0.19977711
        %v3161 = vadd.f32 %v3145, 0.19977711
        %v3162 = vadd.f32 %v3146, 0.19977711
        %v3163 = vadd.f32 %v3147, 0.19977711
        %v3164 = vadd.f32 %v3148, 0.19977711
        %v3165 = vadd.f32 %v3149, 0.19977711
        %v3166 = vadd.f32 %v3150, 0.19977711
        %v3167 = vmul.f32 %v3151, %v3087
        %v3168 = vmul.f32 %v3152, %v3088
        %v3169 = vmul.f32 %v3153, %v3089
        %v3170 = vmul.f32 %v3154, %v3090
        %v3171 = vmul.f32 %v3155, %v3091
        %v3172 = vmul.f32 %v3156, %v3092
        %v3173 = vmul.f32 %v3157, %v3093
        %v3174 = vmul.f32 %v3158, %v3094
        %v3175 = vmul.f32 %v3159, %v3095
        %v3176 = vmul.f32 %v3160, %v3096
        %v3177 = vmul.f32 %v3161, %v3097
        %v3178 = vmul.f32 %v3162, %v3098
        %v3179 = vmul.f32 %v3163, %v3099
        %v3180 = vmul.f32 %v3164, %v3100
        %v3181 = vmul.f32 %v3165, %v3101
        %v3182 = vmul.f32 %v3166, %v3102
        %v3183 = vsub.f32 %v3167, 0.3333295
        %v3184 = vsub.f32 %v3168, 0.3333295
        %v3185 = vsub.f32 %v3169, 0.3333295
        %v3186 = vsub.f32 %v3170, 0.3333295
        %v3187 = vsub.f32 %v3171, 0.3333295
        %v3188 = vsub.f32 %v3172, 0.3333295
        %v3189 = vsub.f32 %v3173, 0.3333295
        %v3190 = vsub.f32 %v3174, 0.3333295
        %v3191 = vsub.f32 %v3175, 0.3333295
        %v3192 = vsub.f32 %v3176, 0.3333295
        %v3193 = vsub.f32 %v3177, 0.3333295
        %v3194 = vsub.f32 %v3178, 0.3333295
        %v3195 = vsub.f32 %v3179, 0.3333295
        %v3196 = vsub.f32 %v3180, 0.3333295
        %v3197 = vsub.f32 %v3181, 0.3333295
        %v3198 = vsub.f32 %v3182, 0.3333295
        %v3199 = vmul.f32 %v3183, %v3087
        %v3200 = vmul.f32 %v3184, %v3088
        %v3201 = vmul.f32 %v3185, %v3089
        %v3202 = vmul.f32 %v3186, %v3090
        %v3203 = vmul.f32 %v3187, %v3091
        %v3204 = vmul.f32 %v3188, %v3092
        %v3205 = vmul.f32 %v3189, %v3093
        %v3206 = vmul.f32 %v3190, %v3094
        %v3207 = vmul.f32 %v3191, %v3095
        %v3208 = vmul.f32 %v3192, %v3096
        %v3209 = vmul.f32 %v3193, %v3097
        %v3210 = vmul.f32 %v3194, %v3098
        %v3211 = vmul.f32 %v3195, %v3099
        %v3212 = vmul.f32 %v3196, %v3100
        %v3213 = vmul.f32 %v3197, %v3101
        %v3214 = vmul.f32 %v3198, %v3102
        %v3215 = vmul.f32 %v3199, %v3024
        %v3216 = vmul.f32 %v3200, %v3026
        %v3217 = vmul.f32 %v3201, %v3028
        %v3218 = vmul.f32 %v3202, %v3030
        %v3219 = vmul.f32 %v3203, %v3032
        %v3220 = vmul.f32 %v3204, %v3034
        %v3221 = vmul.f32 %v3205, %v3036
        %v3222 = vmul.f32 %v3206, %v3038
        %v3223 = vmul.f32 %v3207, %v3040
        %v3224 = vmul.f32 %v3208, %v3042
        %v3225 = vmul.f32 %v3209, %v3044
        %v3226 = vmul.f32 %v3210, %v3046
        %v3227 = vmul.f32 %v3211, %v3048
        %v3228 = vmul.f32 %v3212, %v3050
        %v3229 = vmul.f32 %v3213, %v3052
        %v3230 = vmul.f32 %v3214, %v3054
        %v3231 = vadd.f32 %v3215, %v3024
        %v3232 = vadd.f32 %v3216, %v3026
        %v3233 = vadd.f32 %v3217, %v3028
        %v3234 = vadd.f32 %v3218, %v3030
        %v3235 = vadd.f32 %v3219, %v3032
        %v3236 = vadd.f32 %v3220, %v3034
        %v3237 = vadd.f32 %v3221, %v3036
        %v3238 = vadd.f32 %v3222, %v3038
        %v3239 = vadd.f32 %v3223, %v3040
        %v3240 = vadd.f32 %v3224, %v3042
        %v3241 = vadd.f32 %v3225, %v3044
        %v3242 = vadd.f32 %v3226, %v3046
        %v3243 = vadd.f32 %v3227, %v3048
        %v3244 = vadd.f32 %v3228, %v3050
        %v3245 = vadd.f32 %v3229, %v3052
        %v3246 = vadd.f32 %v3230, %v3054
        %v3247 = vadd.f32 %v3071, %v3231
        %v3248 = vadd.f32 %v3072, %v3232
        %v3249 = vadd.f32 %v3073, %v3233
        %v3250 = vadd.f32 %v3074, %v3234
        %v3251 = vadd.f32 %v3075, %v3235
        %v3252 = vadd.f32 %v3076, %v3236
        %v3253 = vadd.f32 %v3077, %v3237
        %v3254 = vadd.f32 %v3078, %v3238
        %v3255 = vadd.f32 %v3079, %v3239
        %v3256 = vadd.f32 %v3080, %v3240
        %v3257 = vadd.f32 %v3081, %v3241
        %v3258 = vadd.f32 %v3082, %v3242
        %v3259 = vadd.f32 %v3083, %v3243
        %v3260 = vadd.f32 %v3084, %v3244
        %v3261 = vadd.f32 %v3085, %v3245
        %v3262 = vadd.f32 %v3086, %v3246
        %vm3263 = vcmp.lt.f32.partialorder %v2846, 0.0
        %vm3264 = vcmp.lt.f32.partialorder %v2847, 0.0
        %vm3265 = vcmp.lt.f32.partialorder %v2848, 0.0
        %vm3266 = vcmp.lt.f32.partialorder %v2849, 0.0
        %vm3267 = vcmp.lt.f32.partialorder %v2850, 0.0
        %vm3268 = vcmp.lt.f32.partialorder %v2851, 0.0
        %vm3269 = vcmp.lt.f32.partialorder %v2852, 0.0
        %vm3270 = vcmp.lt.f32.partialorder %v2853, 0.0
        %vm3271 = vcmp.lt.f32.partialorder %v2854, 0.0
        %vm3272 = vcmp.lt.f32.partialorder %v2855, 0.0
        %vm3273 = vcmp.lt.f32.partialorder %v2856, 0.0
        %vm3274 = vcmp.lt.f32.partialorder %v2857, 0.0
        %vm3275 = vcmp.lt.f32.partialorder %v2858, 0.0
        %vm3276 = vcmp.lt.f32.partialorder %v2859, 0.0
        %vm3277 = vcmp.lt.f32.partialorder %v2860, 0.0
        %vm3278 = vcmp.lt.f32.partialorder %v2861, 0.0
        %v3279 = vsub.f32 0.0, %v3247
        %v3280 = vsub.f32 0.0, %v3248
        %v3281 = vsub.f32 0.0, %v3249
        %v3282 = vsub.f32 0.0, %v3250
        %v3283 = vsub.f32 0.0, %v3251
        %v3284 = vsub.f32 0.0, %v3252
        %v3285 = vsub.f32 0.0, %v3253
        %v3286 = vsub.f32 0.0, %v3254
        %v3287 = vsub.f32 0.0, %v3255
        %v3288 = vsub.f32 0.0, %v3256
        %v3289 = vsub.f32 0.0, %v3257
        %v3290 = vsub.f32 0.0, %v3258
        %v3291 = vsub.f32 0.0, %v3259
        %v3292 = vsub.f32 0.0, %v3260
        %v3293 = vsub.f32 0.0, %v3261
        %v3294 = vsub.f32 0.0, %v3262
        %v3295 = vsel %vm3263, %v3279, %v3247
        %v3296 = vsel %vm3264, %v3280, %v3248
        %v3297 = vsel %vm3265, %v3281, %v3249
        %v3298 = vsel %vm3266, %v3282, %v3250
        %v3299 = vsel %vm3267, %v3283, %v3251
        %v3300 = vsel %vm3268, %v3284, %v3252
        %v3301 = vsel %vm3269, %v3285, %v3253
        %v3302 = vsel %vm3270, %v3286, %v3254
        %v3303 = vsel %vm3271, %v3287, %v3255
        %v3304 = vsel %vm3272, %v3288, %v3256
        %v3305 = vsel %vm3273, %v3289, %v3257
        %v3306 = vsel %vm3274, %v3290, %v3258
        %v3307 = vsel %vm3275, %v3291, %v3259
        %v3308 = vsel %vm3276, %v3292, %v3260
        %v3309 = vsel %vm3277, %v3293, %v3261
        %v3310 = vsel %vm3278, %v3294, %v3262
        %v3311 = vadd.f32 %v3295, 3.455752
        %v3312 = vadd.f32 %v3296, 3.455752
        %v3313 = vadd.f32 %v3297, 3.455752
        %v3314 = vadd.f32 %v3298, 3.455752
        %v3315 = vadd.f32 %v3299, 3.455752
        %v3316 = vadd.f32 %v3300, 3.455752
        %v3317 = vadd.f32 %v3301, 3.455752
        %v3318 = vadd.f32 %v3302, 3.455752
        %v3319 = vadd.f32 %v3303, 3.455752
        %v3320 = vadd.f32 %v3304, 3.455752
        %v3321 = vadd.f32 %v3305, 3.455752
        %v3322 = vadd.f32 %v3306, 3.455752
        %v3323 = vadd.f32 %v3307, 3.455752
        %v3324 = vadd.f32 %v3308, 3.455752
        %v3325 = vadd.f32 %v3309, 3.455752
        %v3326 = vadd.f32 %v3310, 3.455752
        %v3327 = vlog2.pop %v3311
        %v3328 = vmul.f32 %v3327, 0.6931472
        %v3329 = vlog2.pop %v3312
        %v3330 = vmul.f32 %v3329, 0.6931472
        %v3331 = vlog2.pop %v3313
        %v3332 = vmul.f32 %v3331, 0.6931472
        %v3333 = vlog2.pop %v3314
        %v3334 = vmul.f32 %v3333, 0.6931472
        %v3335 = vlog2.pop %v3315
        %v3336 = vmul.f32 %v3335, 0.6931472
        %v3337 = vlog2.pop %v3316
        %v3338 = vmul.f32 %v3337, 0.6931472
        %v3339 = vlog2.pop %v3317
        %v3340 = vmul.f32 %v3339, 0.6931472
        %v3341 = vlog2.pop %v3318
        %v3342 = vmul.f32 %v3341, 0.6931472
        %v3343 = vlog2.pop %v3319
        %v3344 = vmul.f32 %v3343, 0.6931472
        %v3345 = vlog2.pop %v3320
        %v3346 = vmul.f32 %v3345, 0.6931472
        %v3347 = vlog2.pop %v3321
        %v3348 = vmul.f32 %v3347, 0.6931472
        %v3349 = vlog2.pop %v3322
        %v3350 = vmul.f32 %v3349, 0.6931472
        %v3351 = vlog2.pop %v3323
        %v3352 = vmul.f32 %v3351, 0.6931472
        %v3353 = vlog2.pop %v3324
        %v3354 = vmul.f32 %v3353, 0.6931472
        %v3355 = vlog2.pop %v3325
        %v3356 = vmul.f32 %v3355, 0.6931472
        %v3357 = vlog2.pop %v3326
        %v3358 = vmul.f32 %v3357, 0.6931472
        %v3359 = vadd.f32 %v2863, %v3328
        %v3360 = vadd.f32 %v2864, %v3330
        %v3361 = vadd.f32 %v2865, %v3332
        %v3362 = vadd.f32 %v2866, %v3334
        %v3363 = vadd.f32 %v2867, %v3336
        %v3364 = vadd.f32 %v2868, %v3338
        %v3365 = vadd.f32 %v2869, %v3340
        %v3366 = vadd.f32 %v2870, %v3342
        %v3367 = vadd.f32 %v2871, %v3344
        %v3368 = vadd.f32 %v2872, %v3346
        %v3369 = vadd.f32 %v2873, %v3348
        %v3370 = vadd.f32 %v2874, %v3350
        %v3371 = vadd.f32 %v2875, %v3352
        %v3372 = vadd.f32 %v2876, %v3354
        %v3373 = vadd.f32 %v2877, %v3356
        %v3374 = vadd.f32 %v2878, %v3358
        %3375 = vst.msk [vmem:[%s2862] sm:$0x3] %vm1008, %v3359
        %3376 = vst.msk [vmem:[%s2862 + $0x2] sm:$0x3] %vm1008, %v3360
        %3377 = vst.msk [vmem:[%s2862 + $0x4] sm:$0x3] %vm1008, %v3361
        %3378 = vst.msk [vmem:[%s2862 + $0x6] sm:$0x3] %vm1008, %v3362
        %3379 = vst.msk [vmem:[%s2862 + $0x8] sm:$0x3] %vm1008, %v3363
        %3380 = vst.msk [vmem:[%s2862 + $0xa] sm:$0x3] %vm1008, %v3364
        %3381 = vst.msk [vmem:[%s2862 + $0xc] sm:$0x3] %vm1008, %v3365
        %3382 = vst.msk [vmem:[%s2862 + $0xe] sm:$0x3] %vm1008, %v3366
        %3383 = vst.msk [vmem:[%s2862 + $0x10] sm:$0x3] %vm1008, %v3367
        %3384 = vst.msk [vmem:[%s2862 + $0x12] sm:$0x3] %vm1008, %v3368
        %3385 = vst.msk [vmem:[%s2862 + $0x14] sm:$0x3] %vm1008, %v3369
        %3386 = vst.msk [vmem:[%s2862 + $0x16] sm:$0x3] %vm1008, %v3370
        %3387 = vst.msk [vmem:[%s2862 + $0x18] sm:$0x3] %vm1008, %v3371
        %3388 = vst.msk [vmem:[%s2862 + $0x1a] sm:$0x3] %vm1008, %v3372
        %3389 = vst.msk [vmem:[%s2862 + $0x1c] sm:$0x3] %vm1008, %v3373
        %3390 = vst.msk [vmem:[%s2862 + $0x1e] sm:$0x3] %vm1008, %v3374
        %s3391 = scalar_lea.vmem %s322, 5
        %v3392 = vld [vmem:[%s3391] sm:$0x1]
        %s3393 = scalar_lea.vmem %s326, 5
        %v3394 = vld [vmem:[%s3393] sm:$0x1]
        %v3396 = vlaneseq
        %v3397 = vshrl.u32 %v3396, 7
        %v3398 = vsub.s32 0, %v3397
        %v3399 = vrot.slane %v3392, %v3398
        %3400 = vset.pattern.permute.xlu0 0
        %3401 = vperm.xlu0 %3400, %v3399
        %v3402 = vpop.permute.xlu0 %3401
        %v3404 = vmul.f32 %v2792, %v3402
        %v3405 = vmul.f32 %v2793, %v3402
        %v3406 = vmul.f32 %v2794, %v3402
        %v3407 = vmul.f32 %v2795, %v3402
        %v3408 = vmul.f32 %v2796, %v3402
        %v3409 = vmul.f32 %v2797, %v3402
        %v3410 = vmul.f32 %v2798, %v3402
        %v3411 = vmul.f32 %v2799, %v3402
        %v3412 = vmul.f32 %v2800, %v3402
        %v3413 = vmul.f32 %v2801, %v3402
        %v3414 = vmul.f32 %v2802, %v3402
        %v3415 = vmul.f32 %v2803, %v3402
        %v3416 = vmul.f32 %v2804, %v3402
        %v3417 = vmul.f32 %v2805, %v3402
        %v3418 = vmul.f32 %v2806, %v3402
        %v3419 = vmul.f32 %v2807, %v3402
        %v3421 = vlaneseq
        %v3422 = vshrl.u32 %v3421, 7
        %v3423 = vsub.s32 0, %v3422
        %v3424 = vrot.slane %v3394, %v3423
        %3425 = vset.pattern.permute.xlu0 0
        %3426 = vperm.xlu0 %3425, %v3424
        %v3427 = vpop.permute.xlu0 %3426
        %v3429 = vsub.f32 %v3404, %v3427
        %v3430 = vsub.f32 %v3405, %v3427
        %v3431 = vsub.f32 %v3406, %v3427
        %v3432 = vsub.f32 %v3407, %v3427
        %v3433 = vsub.f32 %v3408, %v3427
        %v3434 = vsub.f32 %v3409, %v3427
        %v3435 = vsub.f32 %v3410, %v3427
        %v3436 = vsub.f32 %v3411, %v3427
        %v3437 = vsub.f32 %v3412, %v3427
        %v3438 = vsub.f32 %v3413, %v3427
        %v3439 = vsub.f32 %v3414, %v3427
        %v3440 = vsub.f32 %v3415, %v3427
        %v3441 = vsub.f32 %v3416, %v3427
        %v3442 = vsub.f32 %v3417, %v3427
        %v3443 = vsub.f32 %v3418, %v3427
        %v3444 = vsub.f32 %v3419, %v3427
        %s3445 = scalar_lea.vmem [#allocation2], 160
        %v3446 = vld [vmem:[%s3445] sm:$0x3]
        %v3447 = vld [vmem:[%s3445 + $0x2] sm:$0x3]
        %v3448 = vld [vmem:[%s3445 + $0x4] sm:$0x3]
        %v3449 = vld [vmem:[%s3445 + $0x6] sm:$0x3]
        %v3450 = vld [vmem:[%s3445 + $0x8] sm:$0x3]
        %v3451 = vld [vmem:[%s3445 + $0xa] sm:$0x3]
        %v3452 = vld [vmem:[%s3445 + $0xc] sm:$0x3]
        %v3453 = vld [vmem:[%s3445 + $0xe] sm:$0x3]
        %v3454 = vld [vmem:[%s3445 + $0x10] sm:$0x3]
        %v3455 = vld [vmem:[%s3445 + $0x12] sm:$0x3]
        %v3456 = vld [vmem:[%s3445 + $0x14] sm:$0x3]
        %v3457 = vld [vmem:[%s3445 + $0x16] sm:$0x3]
        %v3458 = vld [vmem:[%s3445 + $0x18] sm:$0x3]
        %v3459 = vld [vmem:[%s3445 + $0x1a] sm:$0x3]
        %v3460 = vld [vmem:[%s3445 + $0x1c] sm:$0x3]
        %v3461 = vld [vmem:[%s3445 + $0x1e] sm:$0x3]
        %v3462 = vand.u32 2147483647, %v3429
        %v3463 = vand.u32 2147483647, %v3430
        %v3464 = vand.u32 2147483647, %v3431
        %v3465 = vand.u32 2147483647, %v3432
        %v3466 = vand.u32 2147483647, %v3433
        %v3467 = vand.u32 2147483647, %v3434
        %v3468 = vand.u32 2147483647, %v3435
        %v3469 = vand.u32 2147483647, %v3436
        %v3470 = vand.u32 2147483647, %v3437
        %v3471 = vand.u32 2147483647, %v3438
        %v3472 = vand.u32 2147483647, %v3439
        %v3473 = vand.u32 2147483647, %v3440
        %v3474 = vand.u32 2147483647, %v3441
        %v3475 = vand.u32 2147483647, %v3442
        %v3476 = vand.u32 2147483647, %v3443
        %v3477 = vand.u32 2147483647, %v3444
        %vm3478 = vcmp.gt.f32.partialorder %v3462, 2.4142137
        %vm3479 = vcmp.gt.f32.partialorder %v3463, 2.4142137
        %vm3480 = vcmp.gt.f32.partialorder %v3464, 2.4142137
        %vm3481 = vcmp.gt.f32.partialorder %v3465, 2.4142137
        %vm3482 = vcmp.gt.f32.partialorder %v3466, 2.4142137
        %vm3483 = vcmp.gt.f32.partialorder %v3467, 2.4142137
        %vm3484 = vcmp.gt.f32.partialorder %v3468, 2.4142137
        %vm3485 = vcmp.gt.f32.partialorder %v3469, 2.4142137
        %vm3486 = vcmp.gt.f32.partialorder %v3470, 2.4142137
        %vm3487 = vcmp.gt.f32.partialorder %v3471, 2.4142137
        %vm3488 = vcmp.gt.f32.partialorder %v3472, 2.4142137
        %vm3489 = vcmp.gt.f32.partialorder %v3473, 2.4142137
        %vm3490 = vcmp.gt.f32.partialorder %v3474, 2.4142137
        %vm3491 = vcmp.gt.f32.partialorder %v3475, 2.4142137
        %vm3492 = vcmp.gt.f32.partialorder %v3476, 2.4142137
        %vm3493 = vcmp.gt.f32.partialorder %v3477, 2.4142137
        %vm3494 = vcmp.gt.f32.partialorder %v3462, 0.41421357
        %vm3495 = vcmp.gt.f32.partialorder %v3463, 0.41421357
        %vm3496 = vcmp.gt.f32.partialorder %v3464, 0.41421357
        %vm3497 = vcmp.gt.f32.partialorder %v3465, 0.41421357
        %vm3498 = vcmp.gt.f32.partialorder %v3466, 0.41421357
        %vm3499 = vcmp.gt.f32.partialorder %v3467, 0.41421357
        %vm3500 = vcmp.gt.f32.partialorder %v3468, 0.41421357
        %vm3501 = vcmp.gt.f32.partialorder %v3469, 0.41421357
        %vm3502 = vcmp.gt.f32.partialorder %v3470, 0.41421357
        %vm3503 = vcmp.gt.f32.partialorder %v3471, 0.41421357
        %vm3504 = vcmp.gt.f32.partialorder %v3472, 0.41421357
        %vm3505 = vcmp.gt.f32.partialorder %v3473, 0.41421357
        %vm3506 = vcmp.gt.f32.partialorder %v3474, 0.41421357
        %vm3507 = vcmp.gt.f32.partialorder %v3475, 0.41421357
        %vm3508 = vcmp.gt.f32.partialorder %v3476, 0.41421357
        %vm3509 = vcmp.gt.f32.partialorder %v3477, 0.41421357
        %v3510 = vsub.f32 %v3462, 1.0
        %v3511 = vsub.f32 %v3463, 1.0
        %v3512 = vsub.f32 %v3464, 1.0
        %v3513 = vsub.f32 %v3465, 1.0
        %v3514 = vsub.f32 %v3466, 1.0
        %v3515 = vsub.f32 %v3467, 1.0
        %v3516 = vsub.f32 %v3468, 1.0
        %v3517 = vsub.f32 %v3469, 1.0
        %v3518 = vsub.f32 %v3470, 1.0
        %v3519 = vsub.f32 %v3471, 1.0
        %v3520 = vsub.f32 %v3472, 1.0
        %v3521 = vsub.f32 %v3473, 1.0
        %v3522 = vsub.f32 %v3474, 1.0
        %v3523 = vsub.f32 %v3475, 1.0
        %v3524 = vsub.f32 %v3476, 1.0
        %v3525 = vsub.f32 %v3477, 1.0
        %v3526 = vsel %vm3494, %v3510, %v3462
        %v3527 = vsel %vm3495, %v3511, %v3463
        %v3528 = vsel %vm3496, %v3512, %v3464
        %v3529 = vsel %vm3497, %v3513, %v3465
        %v3530 = vsel %vm3498, %v3514, %v3466
        %v3531 = vsel %vm3499, %v3515, %v3467
        %v3532 = vsel %vm3500, %v3516, %v3468
        %v3533 = vsel %vm3501, %v3517, %v3469
        %v3534 = vsel %vm3502, %v3518, %v3470
        %v3535 = vsel %vm3503, %v3519, %v3471
        %v3536 = vsel %vm3504, %v3520, %v3472
        %v3537 = vsel %vm3505, %v3521, %v3473
        %v3538 = vsel %vm3506, %v3522, %v3474
        %v3539 = vsel %vm3507, %v3523, %v3475
        %v3540 = vsel %vm3508, %v3524, %v3476
        %v3541 = vsel %vm3509, %v3525, %v3477
        %v3542 = vsel %vm3478, -1.0, %v3526
        %v3543 = vsel %vm3479, -1.0, %v3527
        %v3544 = vsel %vm3480, -1.0, %v3528
        %v3545 = vsel %vm3481, -1.0, %v3529
        %v3546 = vsel %vm3482, -1.0, %v3530
        %v3547 = vsel %vm3483, -1.0, %v3531
        %v3548 = vsel %vm3484, -1.0, %v3532
        %v3549 = vsel %vm3485, -1.0, %v3533
        %v3550 = vsel %vm3486, -1.0, %v3534
        %v3551 = vsel %vm3487, -1.0, %v3535
        %v3552 = vsel %vm3488, -1.0, %v3536
        %v3553 = vsel %vm3489, -1.0, %v3537
        %v3554 = vsel %vm3490, -1.0, %v3538
        %v3555 = vsel %vm3491, -1.0, %v3539
        %v3556 = vsel %vm3492, -1.0, %v3540
        %v3557 = vsel %vm3493, -1.0, %v3541
        %v3558 = vadd.f32 %v3462, 1.0
        %v3559 = vadd.f32 %v3463, 1.0
        %v3560 = vadd.f32 %v3464, 1.0
        %v3561 = vadd.f32 %v3465, 1.0
        %v3562 = vadd.f32 %v3466, 1.0
        %v3563 = vadd.f32 %v3467, 1.0
        %v3564 = vadd.f32 %v3468, 1.0
        %v3565 = vadd.f32 %v3469, 1.0
        %v3566 = vadd.f32 %v3470, 1.0
        %v3567 = vadd.f32 %v3471, 1.0
        %v3568 = vadd.f32 %v3472, 1.0
        %v3569 = vadd.f32 %v3473, 1.0
        %v3570 = vadd.f32 %v3474, 1.0
        %v3571 = vadd.f32 %v3475, 1.0
        %v3572 = vadd.f32 %v3476, 1.0
        %v3573 = vadd.f32 %v3477, 1.0
        %v3574 = vsel %vm3494, %v3558, 1.0
        %v3575 = vsel %vm3495, %v3559, 1.0
        %v3576 = vsel %vm3496, %v3560, 1.0
        %v3577 = vsel %vm3497, %v3561, 1.0
        %v3578 = vsel %vm3498, %v3562, 1.0
        %v3579 = vsel %vm3499, %v3563, 1.0
        %v3580 = vsel %vm3500, %v3564, 1.0
        %v3581 = vsel %vm3501, %v3565, 1.0
        %v3582 = vsel %vm3502, %v3566, 1.0
        %v3583 = vsel %vm3503, %v3567, 1.0
        %v3584 = vsel %vm3504, %v3568, 1.0
        %v3585 = vsel %vm3505, %v3569, 1.0
        %v3586 = vsel %vm3506, %v3570, 1.0
        %v3587 = vsel %vm3507, %v3571, 1.0
        %v3588 = vsel %vm3508, %v3572, 1.0
        %v3589 = vsel %vm3509, %v3573, 1.0
        %v3590 = vsel %vm3478, %v3462, %v3574
        %v3591 = vsel %vm3479, %v3463, %v3575
        %v3592 = vsel %vm3480, %v3464, %v3576
        %v3593 = vsel %vm3481, %v3465, %v3577
        %v3594 = vsel %vm3482, %v3466, %v3578
        %v3595 = vsel %vm3483, %v3467, %v3579
        %v3596 = vsel %vm3484, %v3468, %v3580
        %v3597 = vsel %vm3485, %v3469, %v3581
        %v3598 = vsel %vm3486, %v3470, %v3582
        %v3599 = vsel %vm3487, %v3471, %v3583
        %v3600 = vsel %vm3488, %v3472, %v3584
        %v3601 = vsel %vm3489, %v3473, %v3585
        %v3602 = vsel %vm3490, %v3474, %v3586
        %v3603 = vsel %vm3491, %v3475, %v3587
        %v3604 = vsel %vm3492, %v3476, %v3588
        %v3605 = vsel %vm3493, %v3477, %v3589
        %v3606 = vrcp.pop %v3590
        %v3607 = vmul.f32 %v3542, %v3606
        %v3608 = vrcp.pop %v3591
        %v3609 = vmul.f32 %v3543, %v3608
        %v3610 = vrcp.pop %v3592
        %v3611 = vmul.f32 %v3544, %v3610
        %v3612 = vrcp.pop %v3593
        %v3613 = vmul.f32 %v3545, %v3612
        %v3614 = vrcp.pop %v3594
        %v3615 = vmul.f32 %v3546, %v3614
        %v3616 = vrcp.pop %v3595
        %v3617 = vmul.f32 %v3547, %v3616
        %v3618 = vrcp.pop %v3596
        %v3619 = vmul.f32 %v3548, %v3618
        %v3620 = vrcp.pop %v3597
        %v3621 = vmul.f32 %v3549, %v3620
        %v3622 = vrcp.pop %v3598
        %v3623 = vmul.f32 %v3550, %v3622
        %v3624 = vrcp.pop %v3599
        %v3625 = vmul.f32 %v3551, %v3624
        %v3626 = vrcp.pop %v3600
        %v3627 = vmul.f32 %v3552, %v3626
        %v3628 = vrcp.pop %v3601
        %v3629 = vmul.f32 %v3553, %v3628
        %v3630 = vrcp.pop %v3602
        %v3631 = vmul.f32 %v3554, %v3630
        %v3632 = vrcp.pop %v3603
        %v3633 = vmul.f32 %v3555, %v3632
        %v3634 = vrcp.pop %v3604
        %v3635 = vmul.f32 %v3556, %v3634
        %v3636 = vrcp.pop %v3605
        %v3637 = vmul.f32 %v3557, %v3636
        %v3638 = vsel %vm3494, 0.7853982, 0.0
        %v3639 = vsel %vm3495, 0.7853982, 0.0
        %v3640 = vsel %vm3496, 0.7853982, 0.0
        %v3641 = vsel %vm3497, 0.7853982, 0.0
        %v3642 = vsel %vm3498, 0.7853982, 0.0
        %v3643 = vsel %vm3499, 0.7853982, 0.0
        %v3644 = vsel %vm3500, 0.7853982, 0.0
        %v3645 = vsel %vm3501, 0.7853982, 0.0
        %v3646 = vsel %vm3502, 0.7853982, 0.0
        %v3647 = vsel %vm3503, 0.7853982, 0.0
        %v3648 = vsel %vm3504, 0.7853982, 0.0
        %v3649 = vsel %vm3505, 0.7853982, 0.0
        %v3650 = vsel %vm3506, 0.7853982, 0.0
        %v3651 = vsel %vm3507, 0.7853982, 0.0
        %v3652 = vsel %vm3508, 0.7853982, 0.0
        %v3653 = vsel %vm3509, 0.7853982, 0.0
        %v3654 = vsel %vm3478, 1.5707964, %v3638
        %v3655 = vsel %vm3479, 1.5707964, %v3639
        %v3656 = vsel %vm3480, 1.5707964, %v3640
        %v3657 = vsel %vm3481, 1.5707964, %v3641
        %v3658 = vsel %vm3482, 1.5707964, %v3642
        %v3659 = vsel %vm3483, 1.5707964, %v3643
        %v3660 = vsel %vm3484, 1.5707964, %v3644
        %v3661 = vsel %vm3485, 1.5707964, %v3645
        %v3662 = vsel %vm3486, 1.5707964, %v3646
        %v3663 = vsel %vm3487, 1.5707964, %v3647
        %v3664 = vsel %vm3488, 1.5707964, %v3648
        %v3665 = vsel %vm3489, 1.5707964, %v3649
        %v3666 = vsel %vm3490, 1.5707964, %v3650
        %v3667 = vsel %vm3491, 1.5707964, %v3651
        %v3668 = vsel %vm3492, 1.5707964, %v3652
        %v3669 = vsel %vm3493, 1.5707964, %v3653
        %v3670 = vmul.f32 %v3607, %v3607
        %v3671 = vmul.f32 %v3609, %v3609
        %v3672 = vmul.f32 %v3611, %v3611
        %v3673 = vmul.f32 %v3613, %v3613
        %v3674 = vmul.f32 %v3615, %v3615
        %v3675 = vmul.f32 %v3617, %v3617
        %v3676 = vmul.f32 %v3619, %v3619
        %v3677 = vmul.f32 %v3621, %v3621
        %v3678 = vmul.f32 %v3623, %v3623
        %v3679 = vmul.f32 %v3625, %v3625
        %v3680 = vmul.f32 %v3627, %v3627
        %v3681 = vmul.f32 %v3629, %v3629
        %v3682 = vmul.f32 %v3631, %v3631
        %v3683 = vmul.f32 %v3633, %v3633
        %v3684 = vmul.f32 %v3635, %v3635
        %v3685 = vmul.f32 %v3637, %v3637
        %v3686 = vmul.f32 %v3670, 0.080537446
        %v3687 = vmul.f32 %v3671, 0.080537446
        %v3688 = vmul.f32 %v3672, 0.080537446
        %v3689 = vmul.f32 %v3673, 0.080537446
        %v3690 = vmul.f32 %v3674, 0.080537446
        %v3691 = vmul.f32 %v3675, 0.080537446
        %v3692 = vmul.f32 %v3676, 0.080537446
        %v3693 = vmul.f32 %v3677, 0.080537446
        %v3694 = vmul.f32 %v3678, 0.080537446
        %v3695 = vmul.f32 %v3679, 0.080537446
        %v3696 = vmul.f32 %v3680, 0.080537446
        %v3697 = vmul.f32 %v3681, 0.080537446
        %v3698 = vmul.f32 %v3682, 0.080537446
        %v3699 = vmul.f32 %v3683, 0.080537446
        %v3700 = vmul.f32 %v3684, 0.080537446
        %v3701 = vmul.f32 %v3685, 0.080537446
        %v3702 = vsub.f32 %v3686, 0.13877685
        %v3703 = vsub.f32 %v3687, 0.13877685
        %v3704 = vsub.f32 %v3688, 0.13877685
        %v3705 = vsub.f32 %v3689, 0.13877685
        %v3706 = vsub.f32 %v3690, 0.13877685
        %v3707 = vsub.f32 %v3691, 0.13877685
        %v3708 = vsub.f32 %v3692, 0.13877685
        %v3709 = vsub.f32 %v3693, 0.13877685
        %v3710 = vsub.f32 %v3694, 0.13877685
        %v3711 = vsub.f32 %v3695, 0.13877685
        %v3712 = vsub.f32 %v3696, 0.13877685
        %v3713 = vsub.f32 %v3697, 0.13877685
        %v3714 = vsub.f32 %v3698, 0.13877685
        %v3715 = vsub.f32 %v3699, 0.13877685
        %v3716 = vsub.f32 %v3700, 0.13877685
        %v3717 = vsub.f32 %v3701, 0.13877685
        %v3718 = vmul.f32 %v3702, %v3670
        %v3719 = vmul.f32 %v3703, %v3671
        %v3720 = vmul.f32 %v3704, %v3672
        %v3721 = vmul.f32 %v3705, %v3673
        %v3722 = vmul.f32 %v3706, %v3674
        %v3723 = vmul.f32 %v3707, %v3675
        %v3724 = vmul.f32 %v3708, %v3676
        %v3725 = vmul.f32 %v3709, %v3677
        %v3726 = vmul.f32 %v3710, %v3678
        %v3727 = vmul.f32 %v3711, %v3679
        %v3728 = vmul.f32 %v3712, %v3680
        %v3729 = vmul.f32 %v3713, %v3681
        %v3730 = vmul.f32 %v3714, %v3682
        %v3731 = vmul.f32 %v3715, %v3683
        %v3732 = vmul.f32 %v3716, %v3684
        %v3733 = vmul.f32 %v3717, %v3685
        %v3734 = vadd.f32 %v3718, 0.19977711
        %v3735 = vadd.f32 %v3719, 0.19977711
        %v3736 = vadd.f32 %v3720, 0.19977711
        %v3737 = vadd.f32 %v3721, 0.19977711
        %v3738 = vadd.f32 %v3722, 0.19977711
        %v3739 = vadd.f32 %v3723, 0.19977711
        %v3740 = vadd.f32 %v3724, 0.19977711
        %v3741 = vadd.f32 %v3725, 0.19977711
        %v3742 = vadd.f32 %v3726, 0.19977711
        %v3743 = vadd.f32 %v3727, 0.19977711
        %v3744 = vadd.f32 %v3728, 0.19977711
        %v3745 = vadd.f32 %v3729, 0.19977711
        %v3746 = vadd.f32 %v3730, 0.19977711
        %v3747 = vadd.f32 %v3731, 0.19977711
        %v3748 = vadd.f32 %v3732, 0.19977711
        %v3749 = vadd.f32 %v3733, 0.19977711
        %v3750 = vmul.f32 %v3734, %v3670
        %v3751 = vmul.f32 %v3735, %v3671
        %v3752 = vmul.f32 %v3736, %v3672
        %v3753 = vmul.f32 %v3737, %v3673
        %v3754 = vmul.f32 %v3738, %v3674
        %v3755 = vmul.f32 %v3739, %v3675
        %v3756 = vmul.f32 %v3740, %v3676
        %v3757 = vmul.f32 %v3741, %v3677
        %v3758 = vmul.f32 %v3742, %v3678
        %v3759 = vmul.f32 %v3743, %v3679
        %v3760 = vmul.f32 %v3744, %v3680
        %v3761 = vmul.f32 %v3745, %v3681
        %v3762 = vmul.f32 %v3746, %v3682
        %v3763 = vmul.f32 %v3747, %v3683
        %v3764 = vmul.f32 %v3748, %v3684
        %v3765 = vmul.f32 %v3749, %v3685
        %v3766 = vsub.f32 %v3750, 0.3333295
        %v3767 = vsub.f32 %v3751, 0.3333295
        %v3768 = vsub.f32 %v3752, 0.3333295
        %v3769 = vsub.f32 %v3753, 0.3333295
        %v3770 = vsub.f32 %v3754, 0.3333295
        %v3771 = vsub.f32 %v3755, 0.3333295
        %v3772 = vsub.f32 %v3756, 0.3333295
        %v3773 = vsub.f32 %v3757, 0.3333295
        %v3774 = vsub.f32 %v3758, 0.3333295
        %v3775 = vsub.f32 %v3759, 0.3333295
        %v3776 = vsub.f32 %v3760, 0.3333295
        %v3777 = vsub.f32 %v3761, 0.3333295
        %v3778 = vsub.f32 %v3762, 0.3333295
        %v3779 = vsub.f32 %v3763, 0.3333295
        %v3780 = vsub.f32 %v3764, 0.3333295
        %v3781 = vsub.f32 %v3765, 0.3333295
        %v3782 = vmul.f32 %v3766, %v3670
        %v3783 = vmul.f32 %v3767, %v3671
        %v3784 = vmul.f32 %v3768, %v3672
        %v3785 = vmul.f32 %v3769, %v3673
        %v3786 = vmul.f32 %v3770, %v3674
        %v3787 = vmul.f32 %v3771, %v3675
        %v3788 = vmul.f32 %v3772, %v3676
        %v3789 = vmul.f32 %v3773, %v3677
        %v3790 = vmul.f32 %v3774, %v3678
        %v3791 = vmul.f32 %v3775, %v3679
        %v3792 = vmul.f32 %v3776, %v3680
        %v3793 = vmul.f32 %v3777, %v3681
        %v3794 = vmul.f32 %v3778, %v3682
        %v3795 = vmul.f32 %v3779, %v3683
        %v3796 = vmul.f32 %v3780, %v3684
        %v3797 = vmul.f32 %v3781, %v3685
        %v3798 = vmul.f32 %v3782, %v3607
        %v3799 = vmul.f32 %v3783, %v3609
        %v3800 = vmul.f32 %v3784, %v3611
        %v3801 = vmul.f32 %v3785, %v3613
        %v3802 = vmul.f32 %v3786, %v3615
        %v3803 = vmul.f32 %v3787, %v3617
        %v3804 = vmul.f32 %v3788, %v3619
        %v3805 = vmul.f32 %v3789, %v3621
        %v3806 = vmul.f32 %v3790, %v3623
        %v3807 = vmul.f32 %v3791, %v3625
        %v3808 = vmul.f32 %v3792, %v3627
        %v3809 = vmul.f32 %v3793, %v3629
        %v3810 = vmul.f32 %v3794, %v3631
        %v3811 = vmul.f32 %v3795, %v3633
        %v3812 = vmul.f32 %v3796, %v3635
        %v3813 = vmul.f32 %v3797, %v3637
        %v3814 = vadd.f32 %v3798, %v3607
        %v3815 = vadd.f32 %v3799, %v3609
        %v3816 = vadd.f32 %v3800, %v3611
        %v3817 = vadd.f32 %v3801, %v3613
        %v3818 = vadd.f32 %v3802, %v3615
        %v3819 = vadd.f32 %v3803, %v3617
        %v3820 = vadd.f32 %v3804, %v3619
        %v3821 = vadd.f32 %v3805, %v3621
        %v3822 = vadd.f32 %v3806, %v3623
        %v3823 = vadd.f32 %v3807, %v3625
        %v3824 = vadd.f32 %v3808, %v3627
        %v3825 = vadd.f32 %v3809, %v3629
        %v3826 = vadd.f32 %v3810, %v3631
        %v3827 = vadd.f32 %v3811, %v3633
        %v3828 = vadd.f32 %v3812, %v3635
        %v3829 = vadd.f32 %v3813, %v3637
        %v3830 = vadd.f32 %v3654, %v3814
        %v3831 = vadd.f32 %v3655, %v3815
        %v3832 = vadd.f32 %v3656, %v3816
        %v3833 = vadd.f32 %v3657, %v3817
        %v3834 = vadd.f32 %v3658, %v3818
        %v3835 = vadd.f32 %v3659, %v3819
        %v3836 = vadd.f32 %v3660, %v3820
        %v3837 = vadd.f32 %v3661, %v3821
        %v3838 = vadd.f32 %v3662, %v3822
        %v3839 = vadd.f32 %v3663, %v3823
        %v3840 = vadd.f32 %v3664, %v3824
        %v3841 = vadd.f32 %v3665, %v3825
        %v3842 = vadd.f32 %v3666, %v3826
        %v3843 = vadd.f32 %v3667, %v3827
        %v3844 = vadd.f32 %v3668, %v3828
        %v3845 = vadd.f32 %v3669, %v3829
        %vm3846 = vcmp.lt.f32.partialorder %v3429, 0.0
        %vm3847 = vcmp.lt.f32.partialorder %v3430, 0.0
        %vm3848 = vcmp.lt.f32.partialorder %v3431, 0.0
        %vm3849 = vcmp.lt.f32.partialorder %v3432, 0.0
        %vm3850 = vcmp.lt.f32.partialorder %v3433, 0.0
        %vm3851 = vcmp.lt.f32.partialorder %v3434, 0.0
        %vm3852 = vcmp.lt.f32.partialorder %v3435, 0.0
        %vm3853 = vcmp.lt.f32.partialorder %v3436, 0.0
        %vm3854 = vcmp.lt.f32.partialorder %v3437, 0.0
        %vm3855 = vcmp.lt.f32.partialorder %v3438, 0.0
        %vm3856 = vcmp.lt.f32.partialorder %v3439, 0.0
        %vm3857 = vcmp.lt.f32.partialorder %v3440, 0.0
        %vm3858 = vcmp.lt.f32.partialorder %v3441, 0.0
        %vm3859 = vcmp.lt.f32.partialorder %v3442, 0.0
        %vm3860 = vcmp.lt.f32.partialorder %v3443, 0.0
        %vm3861 = vcmp.lt.f32.partialorder %v3444, 0.0
        %v3862 = vsub.f32 0.0, %v3830
        %v3863 = vsub.f32 0.0, %v3831
        %v3864 = vsub.f32 0.0, %v3832
        %v3865 = vsub.f32 0.0, %v3833
        %v3866 = vsub.f32 0.0, %v3834
        %v3867 = vsub.f32 0.0, %v3835
        %v3868 = vsub.f32 0.0, %v3836
        %v3869 = vsub.f32 0.0, %v3837
        %v3870 = vsub.f32 0.0, %v3838
        %v3871 = vsub.f32 0.0, %v3839
        %v3872 = vsub.f32 0.0, %v3840
        %v3873 = vsub.f32 0.0, %v3841
        %v3874 = vsub.f32 0.0, %v3842
        %v3875 = vsub.f32 0.0, %v3843
        %v3876 = vsub.f32 0.0, %v3844
        %v3877 = vsub.f32 0.0, %v3845
        %v3878 = vsel %vm3846, %v3862, %v3830
        %v3879 = vsel %vm3847, %v3863, %v3831
        %v3880 = vsel %vm3848, %v3864, %v3832
        %v3881 = vsel %vm3849, %v3865, %v3833
        %v3882 = vsel %vm3850, %v3866, %v3834
        %v3883 = vsel %vm3851, %v3867, %v3835
        %v3884 = vsel %vm3852, %v3868, %v3836
        %v3885 = vsel %vm3853, %v3869, %v3837
        %v3886 = vsel %vm3854, %v3870, %v3838
        %v3887 = vsel %vm3855, %v3871, %v3839
        %v3888 = vsel %vm3856, %v3872, %v3840
        %v3889 = vsel %vm3857, %v3873, %v3841
        %v3890 = vsel %vm3858, %v3874, %v3842
        %v3891 = vsel %vm3859, %v3875, %v3843
        %v3892 = vsel %vm3860, %v3876, %v3844
        %v3893 = vsel %vm3861, %v3877, %v3845
        %v3894 = vadd.f32 %v3878, 3.455752
        %v3895 = vadd.f32 %v3879, 3.455752
        %v3896 = vadd.f32 %v3880, 3.455752
        %v3897 = vadd.f32 %v3881, 3.455752
        %v3898 = vadd.f32 %v3882, 3.455752
        %v3899 = vadd.f32 %v3883, 3.455752
        %v3900 = vadd.f32 %v3884, 3.455752
        %v3901 = vadd.f32 %v3885, 3.455752
        %v3902 = vadd.f32 %v3886, 3.455752
        %v3903 = vadd.f32 %v3887, 3.455752
        %v3904 = vadd.f32 %v3888, 3.455752
        %v3905 = vadd.f32 %v3889, 3.455752
        %v3906 = vadd.f32 %v3890, 3.455752
        %v3907 = vadd.f32 %v3891, 3.455752
        %v3908 = vadd.f32 %v3892, 3.455752
        %v3909 = vadd.f32 %v3893, 3.455752
        %v3910 = vlog2.pop %v3894
        %v3911 = vmul.f32 %v3910, 0.6931472
        %v3912 = vlog2.pop %v3895
        %v3913 = vmul.f32 %v3912, 0.6931472
        %v3914 = vlog2.pop %v3896
        %v3915 = vmul.f32 %v3914, 0.6931472
        %v3916 = vlog2.pop %v3897
        %v3917 = vmul.f32 %v3916, 0.6931472
        %v3918 = vlog2.pop %v3898
        %v3919 = vmul.f32 %v3918, 0.6931472
        %v3920 = vlog2.pop %v3899
        %v3921 = vmul.f32 %v3920, 0.6931472
        %v3922 = vlog2.pop %v3900
        %v3923 = vmul.f32 %v3922, 0.6931472
        %v3924 = vlog2.pop %v3901
        %v3925 = vmul.f32 %v3924, 0.6931472
        %v3926 = vlog2.pop %v3902
        %v3927 = vmul.f32 %v3926, 0.6931472
        %v3928 = vlog2.pop %v3903
        %v3929 = vmul.f32 %v3928, 0.6931472
        %v3930 = vlog2.pop %v3904
        %v3931 = vmul.f32 %v3930, 0.6931472
        %v3932 = vlog2.pop %v3905
        %v3933 = vmul.f32 %v3932, 0.6931472
        %v3934 = vlog2.pop %v3906
        %v3935 = vmul.f32 %v3934, 0.6931472
        %v3936 = vlog2.pop %v3907
        %v3937 = vmul.f32 %v3936, 0.6931472
        %v3938 = vlog2.pop %v3908
        %v3939 = vmul.f32 %v3938, 0.6931472
        %v3940 = vlog2.pop %v3909
        %v3941 = vmul.f32 %v3940, 0.6931472
        %v3942 = vadd.f32 %v3446, %v3911
        %v3943 = vadd.f32 %v3447, %v3913
        %v3944 = vadd.f32 %v3448, %v3915
        %v3945 = vadd.f32 %v3449, %v3917
        %v3946 = vadd.f32 %v3450, %v3919
        %v3947 = vadd.f32 %v3451, %v3921
        %v3948 = vadd.f32 %v3452, %v3923
        %v3949 = vadd.f32 %v3453, %v3925
        %v3950 = vadd.f32 %v3454, %v3927
        %v3951 = vadd.f32 %v3455, %v3929
        %v3952 = vadd.f32 %v3456, %v3931
        %v3953 = vadd.f32 %v3457, %v3933
        %v3954 = vadd.f32 %v3458, %v3935
        %v3955 = vadd.f32 %v3459, %v3937
        %v3956 = vadd.f32 %v3460, %v3939
        %v3957 = vadd.f32 %v3461, %v3941
        %3958 = vst.msk [vmem:[%s3445] sm:$0x3] %vm1008, %v3942
        %3959 = vst.msk [vmem:[%s3445 + $0x2] sm:$0x3] %vm1008, %v3943
        %3960 = vst.msk [vmem:[%s3445 + $0x4] sm:$0x3] %vm1008, %v3944
        %3961 = vst.msk [vmem:[%s3445 + $0x6] sm:$0x3] %vm1008, %v3945
        %3962 = vst.msk [vmem:[%s3445 + $0x8] sm:$0x3] %vm1008, %v3946
        %3963 = vst.msk [vmem:[%s3445 + $0xa] sm:$0x3] %vm1008, %v3947
        %3964 = vst.msk [vmem:[%s3445 + $0xc] sm:$0x3] %vm1008, %v3948
        %3965 = vst.msk [vmem:[%s3445 + $0xe] sm:$0x3] %vm1008, %v3949
        %3966 = vst.msk [vmem:[%s3445 + $0x10] sm:$0x3] %vm1008, %v3950
        %3967 = vst.msk [vmem:[%s3445 + $0x12] sm:$0x3] %vm1008, %v3951
        %3968 = vst.msk [vmem:[%s3445 + $0x14] sm:$0x3] %vm1008, %v3952
        %3969 = vst.msk [vmem:[%s3445 + $0x16] sm:$0x3] %vm1008, %v3953
        %3970 = vst.msk [vmem:[%s3445 + $0x18] sm:$0x3] %vm1008, %v3954
        %3971 = vst.msk [vmem:[%s3445 + $0x1a] sm:$0x3] %vm1008, %v3955
        %3972 = vst.msk [vmem:[%s3445 + $0x1c] sm:$0x3] %vm1008, %v3956
        %3973 = vst.msk [vmem:[%s3445 + $0x1e] sm:$0x3] %vm1008, %v3957
        %p3974 = scmp.eq.s32.totalorder %s24, 24
        // Predicated region
        $region53: #{mdpn3_forward.1} parent=47 // pred_check
          %p3975 = pneg %p3974
        $region54: #{mdpn3_forward.1} parent=47 // pred_check_branch
          %3977 = sbr.rel (%p3975) target = $region56
        $region55: #{mdpn3_forward.1} parent=47 // pred_region
          %v3978 = vld [vmem:[%s4] sm:$0x1]
          %v3979 = vld [vmem:[#allocation2] sm:$0x3]
          %v3980 = vld [vmem:[#allocation2 + $0x2] sm:$0x3]
          %v3981 = vld [vmem:[#allocation2 + $0x4] sm:$0x3]
          %v3982 = vld [vmem:[#allocation2 + $0x6] sm:$0x3]
          %v3983 = vld [vmem:[#allocation2 + $0x8] sm:$0x3]
          %v3984 = vld [vmem:[#allocation2 + $0xa] sm:$0x3]
          %v3985 = vld [vmem:[#allocation2 + $0xc] sm:$0x3]
          %v3986 = vld [vmem:[#allocation2 + $0xe] sm:$0x3]
          %v3987 = vld [vmem:[#allocation2 + $0x10] sm:$0x3]
          %v3988 = vld [vmem:[#allocation2 + $0x12] sm:$0x3]
          %v3989 = vld [vmem:[#allocation2 + $0x14] sm:$0x3]
          %v3990 = vld [vmem:[#allocation2 + $0x16] sm:$0x3]
          %v3991 = vld [vmem:[#allocation2 + $0x18] sm:$0x3]
          %v3992 = vld [vmem:[#allocation2 + $0x1a] sm:$0x3]
          %v3993 = vld [vmem:[#allocation2 + $0x1c] sm:$0x3]
          %v3994 = vld [vmem:[#allocation2 + $0x1e] sm:$0x3]
          %v3995 = vsel %vm1008, %v3979, -inf
          %v3996 = vsel %vm1008, %v3980, -inf
          %v3997 = vsel %vm1008, %v3981, -inf
          %v3998 = vsel %vm1008, %v3982, -inf
          %v3999 = vsel %vm1008, %v3983, -inf
          %v4000 = vmax.f32 %v3995, %v3999
          %v4001 = vsel %vm1008, %v3984, -inf
          %v4002 = vmax.f32 %v3996, %v4001
          %v4003 = vsel %vm1008, %v3985, -inf
          %v4004 = vmax.f32 %v3997, %v4003
          %v4005 = vsel %vm1008, %v3986, -inf
          %v4006 = vmax.f32 %v3998, %v4005
          %v4007 = vsel %vm1008, %v3987, -inf
          %v4008 = vmax.f32 %v4000, %v4007
          %v4009 = vsel %vm1008, %v3988, -inf
          %v4010 = vmax.f32 %v4002, %v4009
          %v4011 = vsel %vm1008, %v3989, -inf
          %v4012 = vmax.f32 %v4004, %v4011
          %v4013 = vsel %vm1008, %v3990, -inf
          %v4014 = vmax.f32 %v4006, %v4013
          %v4015 = vsel %vm1008, %v3991, -inf
          %v4016 = vmax.f32 %v4008, %v4015
          %v4017 = vsel %vm1008, %v3992, -inf
          %v4018 = vmax.f32 %v4010, %v4017
          %v4019 = vsel %vm1008, %v3993, -inf
          %v4020 = vmax.f32 %v4012, %v4019
          %v4021 = vsel %vm1008, %v3994, -inf
          %v4022 = vmax.f32 %v4014, %v4021
          %v4023 = vmax.f32 %v4016, %v4018
          %v4024 = vmax.f32 %v4020, %v4022
          %v4025 = vmax.f32 %v4023, %v4024
          %v4026 = vld [vmem:[%s3] sm:$0xff]
          %v4027 = vld [vmem:[%s3 + $0x8] sm:$0x1]
          %vm4028 = vcmask 72704
          %v4030 = vsel %vm4028, %v4025, 0
          %vm4032 = vcmask 1040384
          %v4034 = vsel %vm4032, %v4027, 0
          %4036 = vmatprep.subr.mxu0 0.0
          %4037 = vmatpush1.msra.mxu0 0.0
          %4038 = vmatprep.subr.mxu0 0.0
          %4039 = vmatpush1.msra.mxu0 0.0
          %4040 = vmatprep.subr.mxu0 0.0
          %4041 = vmatpush1.msra.mxu0 0.0
          %4042 = vmatprep.subr.mxu0 0.0
          %4043 = vmatpush1.msra.mxu0 0.0
          %4044 = vmatprep.subr.mxu0 0.0
          %4045 = vmatpush1.msra.mxu0 0.0
          %4046 = vmatprep.subr.mxu0 0.0
          %4047 = vmatpush1.msra.mxu0 0.0
          %4048 = vmatprep.subr.mxu0 0.0
          %4049 = vmatpush1.msra.mxu0 0.0
          %4050 = vmatprep.subr.mxu0 0.0
          %4051 = vmatpush1.msra.mxu0 0.0
          %4052 = vmatprep.subr.mxu0 0.0
          %4053 = vmatpush1.msra.mxu0 0.0
          %4054 = vmatprep.subr.mxu0 0.0
          %4055 = vmatpush1.msra.mxu0 0.0
          %4056 = vmatprep.subr.mxu0 0.0
          %4057 = vmatpush1.msra.mxu0 0.0
          %4058 = vmatprep.subr.mxu0 0.0
          %4059 = vmatpush1.msra.mxu0 0.0
          %4060 = vmatprep.subr.mxu0 0.0
          %4061 = vmatpush1.msra.mxu0 0.0
          %4062 = vmatprep.subr.mxu0 0.0
          %4063 = vmatpush1.msra.mxu0 0.0
          %4064 = vmatprep.subr.mxu0 0.0
          %4065 = vmatpush1.msra.mxu0 %v4034
          %4066 = vmatprep.subr.mxu0 0.0
          %4067 = vmatpush1.msra.mxu0 %v4026
          %4068 = vmatprep.subr.mxu0 0.0
          %4069 = vmatpush2.msra.mxu0 0.0
          %4070 = vmatprep.subr.mxu0 0.0
          %4071 = vmatpush2.msra.mxu0 0.0
          %4072 = vmatprep.subr.mxu0 0.0
          %4073 = vmatpush2.msra.mxu0 0.0
          %4074 = vmatprep.subr.mxu0 0.0
          %4075 = vmatpush2.msra.mxu0 0.0
          %4076 = vmatprep.subr.mxu0 0.0
          %4077 = vmatpush2.msra.mxu0 0.0
          %4078 = vmatprep.subr.mxu0 0.0
          %4079 = vmatpush2.msra.mxu0 0.0
          %4080 = vmatprep.subr.mxu0 0.0
          %4081 = vmatpush2.msra.mxu0 0.0
          %4082 = vmatprep.subr.mxu0 0.0
          %4083 = vmatpush2.msra.mxu0 0.0
          %4084 = vmatprep.subr.mxu0 0.0
          %4085 = vmatpush2.msra.mxu0 0.0
          %4086 = vmatprep.subr.mxu0 0.0
          %4087 = vmatpush2.msra.mxu0 0.0
          %4088 = vmatprep.subr.mxu0 0.0
          %4089 = vmatpush2.msra.mxu0 0.0
          %4090 = vmatprep.subr.mxu0 0.0
          %4091 = vmatpush2.msra.mxu0 0.0
          %4092 = vmatprep.subr.mxu0 0.0
          %4093 = vmatpush2.msra.mxu0 0.0
          %4094 = vmatprep.subr.mxu0 0.0
          %4095 = vmatpush2.msra.mxu0 0.0
          %4096 = vmatprep.subr.mxu0 0.0
          %4097 = vmatpush2.msra.mxu0 0.0
          %4098 = vmatprep.subr.mxu0 0.0
          %4099 = vmatpush2.msra.mxu0 0.0
          %4100 = vmatprep.mubr.f32.mxu0 0.0
          %4101 = vmatmul.mubr.f32.gmra.mxu0 %v4030
          %v4102 = vpop.f32.mrf.mxu0
          %v4103 = vadd.f32 0.0, %v4102
          %v4104 = vpop.f32.mrf.mxu0
          %4105 = vdwg.mxu0
          %v4107 = vlaneseq
          %v4108 = vshrl.u32 %v4107, 7
          %v4109 = vsub.s32 0, %v4108
          %v4110 = vrot.slane %v3978, %v4109
          %v4112 = vadd.f32 %v4110, %v4103
          %v4113 = vld [vmem:[%s1079] sm:$0x3]
          %v4114 = vld [vmem:[%s1079 + $0x2] sm:$0x3]
          %v4115 = vld [vmem:[%s1079 + $0x4] sm:$0x3]
          %v4116 = vld [vmem:[%s1079 + $0x6] sm:$0x3]
          %v4117 = vld [vmem:[%s1079 + $0x8] sm:$0x3]
          %v4118 = vld [vmem:[%s1079 + $0xa] sm:$0x3]
          %v4119 = vld [vmem:[%s1079 + $0xc] sm:$0x3]
          %v4120 = vld [vmem:[%s1079 + $0xe] sm:$0x3]
          %v4121 = vld [vmem:[%s1079 + $0x10] sm:$0x3]
          %v4122 = vld [vmem:[%s1079 + $0x12] sm:$0x3]
          %v4123 = vld [vmem:[%s1079 + $0x14] sm:$0x3]
          %v4124 = vld [vmem:[%s1079 + $0x16] sm:$0x3]
          %v4125 = vld [vmem:[%s1079 + $0x18] sm:$0x3]
          %v4126 = vld [vmem:[%s1079 + $0x1a] sm:$0x3]
          %v4127 = vld [vmem:[%s1079 + $0x1c] sm:$0x3]
          %v4128 = vld [vmem:[%s1079 + $0x1e] sm:$0x3]
          %v4129 = vsel %vm1008, %v4113, -inf
          %v4130 = vsel %vm1008, %v4114, -inf
          %v4131 = vsel %vm1008, %v4115, -inf
          %v4132 = vsel %vm1008, %v4116, -inf
          %v4133 = vsel %vm1008, %v4117, -inf
          %v4134 = vmax.f32 %v4129, %v4133
          %v4135 = vsel %vm1008, %v4118, -inf
          %v4136 = vmax.f32 %v4130, %v4135
          %v4137 = vsel %vm1008, %v4119, -inf
          %v4138 = vmax.f32 %v4131, %v4137
          %v4139 = vsel %vm1008, %v4120, -inf
          %v4140 = vmax.f32 %v4132, %v4139
          %v4141 = vsel %vm1008, %v4121, -inf
          %v4142 = vmax.f32 %v4134, %v4141
          %v4143 = vsel %vm1008, %v4122, -inf
          %v4144 = vmax.f32 %v4136, %v4143
          %v4145 = vsel %vm1008, %v4123, -inf
          %v4146 = vmax.f32 %v4138, %v4145
          %v4147 = vsel %vm1008, %v4124, -inf
          %v4148 = vmax.f32 %v4140, %v4147
          %v4149 = vsel %vm1008, %v4125, -inf
          %v4150 = vmax.f32 %v4142, %v4149
          %v4151 = vsel %vm1008, %v4126, -inf
          %v4152 = vmax.f32 %v4144, %v4151
          %v4153 = vsel %vm1008, %v4127, -inf
          %v4154 = vmax.f32 %v4146, %v4153
          %v4155 = vsel %vm1008, %v4128, -inf
          %v4156 = vmax.f32 %v4148, %v4155
          %v4157 = vmax.f32 %v4150, %v4152
          %v4158 = vmax.f32 %v4154, %v4156
          %v4159 = vmax.f32 %v4157, %v4158
          %s4160 = scalar_lea.vmem %s3, 16
          %v4161 = vld [vmem:[%s4160] sm:$0xff]
          %v4162 = vld [vmem:[%s4160 + $0x8] sm:$0x1]
          %v4164 = vsel %vm4028, %v4159, 0
          %v4167 = vsel %vm4032, %v4162, 0
          %4169 = vmatprep.subr.mxu0 0.0
          %4170 = vmatpush1.msra.mxu0 0.0
          %4171 = vmatprep.subr.mxu0 0.0
          %4172 = vmatpush1.msra.mxu0 0.0
          %4173 = vmatprep.subr.mxu0 0.0
          %4174 = vmatpush1.msra.mxu0 0.0
          %4175 = vmatprep.subr.mxu0 0.0
          %4176 = vmatpush1.msra.mxu0 0.0
          %4177 = vmatprep.subr.mxu0 0.0
          %4178 = vmatpush1.msra.mxu0 0.0
          %4179 = vmatprep.subr.mxu0 0.0
          %4180 = vmatpush1.msra.mxu0 0.0
          %4181 = vmatprep.subr.mxu0 0.0
          %4182 = vmatpush1.msra.mxu0 0.0
          %4183 = vmatprep.subr.mxu0 0.0
          %4184 = vmatpush1.msra.mxu0 0.0
          %4185 = vmatprep.subr.mxu0 0.0
          %4186 = vmatpush1.msra.mxu0 0.0
          %4187 = vmatprep.subr.mxu0 0.0
          %4188 = vmatpush1.msra.mxu0 0.0
          %4189 = vmatprep.subr.mxu0 0.0
          %4190 = vmatpush1.msra.mxu0 0.0
          %4191 = vmatprep.subr.mxu0 0.0
          %4192 = vmatpush1.msra.mxu0 0.0
          %4193 = vmatprep.subr.mxu0 0.0
          %4194 = vmatpush1.msra.mxu0 0.0
          %4195 = vmatprep.subr.mxu0 0.0
          %4196 = vmatpush1.msra.mxu0 0.0
          %4197 = vmatprep.subr.mxu0 0.0
          %4198 = vmatpush1.msra.mxu0 %v4167
          %4199 = vmatprep.subr.mxu0 0.0
          %4200 = vmatpush1.msra.mxu0 %v4161
          %4201 = vmatprep.subr.mxu0 0.0
          %4202 = vmatpush2.msra.mxu0 0.0
          %4203 = vmatprep.subr.mxu0 0.0
          %4204 = vmatpush2.msra.mxu0 0.0
          %4205 = vmatprep.subr.mxu0 0.0
          %4206 = vmatpush2.msra.mxu0 0.0
          %4207 = vmatprep.subr.mxu0 0.0
          %4208 = vmatpush2.msra.mxu0 0.0
          %4209 = vmatprep.subr.mxu0 0.0
          %4210 = vmatpush2.msra.mxu0 0.0
          %4211 = vmatprep.subr.mxu0 0.0
          %4212 = vmatpush2.msra.mxu0 0.0
          %4213 = vmatprep.subr.mxu0 0.0
          %4214 = vmatpush2.msra.mxu0 0.0
          %4215 = vmatprep.subr.mxu0 0.0
          %4216 = vmatpush2.msra.mxu0 0.0
          %4217 = vmatprep.subr.mxu0 0.0
          %4218 = vmatpush2.msra.mxu0 0.0
          %4219 = vmatprep.subr.mxu0 0.0
          %4220 = vmatpush2.msra.mxu0 0.0
          %4221 = vmatprep.subr.mxu0 0.0
          %4222 = vmatpush2.msra.mxu0 0.0
          %4223 = vmatprep.subr.mxu0 0.0
          %4224 = vmatpush2.msra.mxu0 0.0
          %4225 = vmatprep.subr.mxu0 0.0
          %4226 = vmatpush2.msra.mxu0 0.0
          %4227 = vmatprep.subr.mxu0 0.0
          %4228 = vmatpush2.msra.mxu0 0.0
          %4229 = vmatprep.subr.mxu0 0.0
          %4230 = vmatpush2.msra.mxu0 0.0
          %4231 = vmatprep.subr.mxu0 0.0
          %4232 = vmatpush2.msra.mxu0 0.0
          %4233 = vmatprep.mubr.f32.mxu0 0.0
          %4234 = vmatmul.mubr.f32.gmra.mxu0 %v4164
          %v4235 = vpop.f32.mrf.mxu0
          %v4236 = vadd.f32 0.0, %v4235
          %v4237 = vpop.f32.mrf.mxu0
          %4238 = vdwg.mxu0
          %v4239 = vadd.f32 %v4112, %v4236
          %v4240 = vld [vmem:[%s1679] sm:$0x3]
          %v4241 = vld [vmem:[%s1679 + $0x2] sm:$0x3]
          %v4242 = vld [vmem:[%s1679 + $0x4] sm:$0x3]
          %v4243 = vld [vmem:[%s1679 + $0x6] sm:$0x3]
          %v4244 = vld [vmem:[%s1679 + $0x8] sm:$0x3]
          %v4245 = vld [vmem:[%s1679 + $0xa] sm:$0x3]
          %v4246 = vld [vmem:[%s1679 + $0xc] sm:$0x3]
          %v4247 = vld [vmem:[%s1679 + $0xe] sm:$0x3]
          %v4248 = vld [vmem:[%s1679 + $0x10] sm:$0x3]
          %v4249 = vld [vmem:[%s1679 + $0x12] sm:$0x3]
          %v4250 = vld [vmem:[%s1679 + $0x14] sm:$0x3]
          %v4251 = vld [vmem:[%s1679 + $0x16] sm:$0x3]
          %v4252 = vld [vmem:[%s1679 + $0x18] sm:$0x3]
          %v4253 = vld [vmem:[%s1679 + $0x1a] sm:$0x3]
          %v4254 = vld [vmem:[%s1679 + $0x1c] sm:$0x3]
          %v4255 = vld [vmem:[%s1679 + $0x1e] sm:$0x3]
          %v4256 = vsel %vm1008, %v4240, -inf
          %v4257 = vsel %vm1008, %v4241, -inf
          %v4258 = vsel %vm1008, %v4242, -inf
          %v4259 = vsel %vm1008, %v4243, -inf
          %v4260 = vsel %vm1008, %v4244, -inf
          %v4261 = vmax.f32 %v4256, %v4260
          %v4262 = vsel %vm1008, %v4245, -inf
          %v4263 = vmax.f32 %v4257, %v4262
          %v4264 = vsel %vm1008, %v4246, -inf
          %v4265 = vmax.f32 %v4258, %v4264
          %v4266 = vsel %vm1008, %v4247, -inf
          %v4267 = vmax.f32 %v4259, %v4266
          %v4268 = vsel %vm1008, %v4248, -inf
          %v4269 = vmax.f32 %v4261, %v4268
          %v4270 = vsel %vm1008, %v4249, -inf
          %v4271 = vmax.f32 %v4263, %v4270
          %v4272 = vsel %vm1008, %v4250, -inf
          %v4273 = vmax.f32 %v4265, %v4272
          %v4274 = vsel %vm1008, %v4251, -inf
          %v4275 = vmax.f32 %v4267, %v4274
          %v4276 = vsel %vm1008, %v4252, -inf
          %v4277 = vmax.f32 %v4269, %v4276
          %v4278 = vsel %vm1008, %v4253, -inf
          %v4279 = vmax.f32 %v4271, %v4278
          %v4280 = vsel %vm1008, %v4254, -inf
          %v4281 = vmax.f32 %v4273, %v4280
          %v4282 = vsel %vm1008, %v4255, -inf
          %v4283 = vmax.f32 %v4275, %v4282
          %v4284 = vmax.f32 %v4277, %v4279
          %v4285 = vmax.f32 %v4281, %v4283
          %v4286 = vmax.f32 %v4284, %v4285
          %s4287 = scalar_lea.vmem %s3, 32
          %v4288 = vld [vmem:[%s4287] sm:$0xff]
          %v4289 = vld [vmem:[%s4287 + $0x8] sm:$0x1]
          %v4291 = vsel %vm4028, %v4286, 0
          %v4294 = vsel %vm4032, %v4289, 0
          %4296 = vmatprep.subr.mxu0 0.0
          %4297 = vmatpush1.msra.mxu0 0.0
          %4298 = vmatprep.subr.mxu0 0.0
          %4299 = vmatpush1.msra.mxu0 0.0
          %4300 = vmatprep.subr.mxu0 0.0
          %4301 = vmatpush1.msra.mxu0 0.0
          %4302 = vmatprep.subr.mxu0 0.0
          %4303 = vmatpush1.msra.mxu0 0.0
          %4304 = vmatprep.subr.mxu0 0.0
          %4305 = vmatpush1.msra.mxu0 0.0
          %4306 = vmatprep.subr.mxu0 0.0
          %4307 = vmatpush1.msra.mxu0 0.0
          %4308 = vmatprep.subr.mxu0 0.0
          %4309 = vmatpush1.msra.mxu0 0.0
          %4310 = vmatprep.subr.mxu0 0.0
          %4311 = vmatpush1.msra.mxu0 0.0
          %4312 = vmatprep.subr.mxu0 0.0
          %4313 = vmatpush1.msra.mxu0 0.0
          %4314 = vmatprep.subr.mxu0 0.0
          %4315 = vmatpush1.msra.mxu0 0.0
          %4316 = vmatprep.subr.mxu0 0.0
          %4317 = vmatpush1.msra.mxu0 0.0
          %4318 = vmatprep.subr.mxu0 0.0
          %4319 = vmatpush1.msra.mxu0 0.0
          %4320 = vmatprep.subr.mxu0 0.0
          %4321 = vmatpush1.msra.mxu0 0.0
          %4322 = vmatprep.subr.mxu0 0.0
          %4323 = vmatpush1.msra.mxu0 0.0
          %4324 = vmatprep.subr.mxu0 0.0
          %4325 = vmatpush1.msra.mxu0 %v4294
          %4326 = vmatprep.subr.mxu0 0.0
          %4327 = vmatpush1.msra.mxu0 %v4288
          %4328 = vmatprep.subr.mxu0 0.0
          %4329 = vmatpush2.msra.mxu0 0.0
          %4330 = vmatprep.subr.mxu0 0.0
          %4331 = vmatpush2.msra.mxu0 0.0
          %4332 = vmatprep.subr.mxu0 0.0
          %4333 = vmatpush2.msra.mxu0 0.0
          %4334 = vmatprep.subr.mxu0 0.0
          %4335 = vmatpush2.msra.mxu0 0.0
          %4336 = vmatprep.subr.mxu0 0.0
          %4337 = vmatpush2.msra.mxu0 0.0
          %4338 = vmatprep.subr.mxu0 0.0
          %4339 = vmatpush2.msra.mxu0 0.0
          %4340 = vmatprep.subr.mxu0 0.0
          %4341 = vmatpush2.msra.mxu0 0.0
          %4342 = vmatprep.subr.mxu0 0.0
          %4343 = vmatpush2.msra.mxu0 0.0
          %4344 = vmatprep.subr.mxu0 0.0
          %4345 = vmatpush2.msra.mxu0 0.0
          %4346 = vmatprep.subr.mxu0 0.0
          %4347 = vmatpush2.msra.mxu0 0.0
          %4348 = vmatprep.subr.mxu0 0.0
          %4349 = vmatpush2.msra.mxu0 0.0
          %4350 = vmatprep.subr.mxu0 0.0
          %4351 = vmatpush2.msra.mxu0 0.0
          %4352 = vmatprep.subr.mxu0 0.0
          %4353 = vmatpush2.msra.mxu0 0.0
          %4354 = vmatprep.subr.mxu0 0.0
          %4355 = vmatpush2.msra.mxu0 0.0
          %4356 = vmatprep.subr.mxu0 0.0
          %4357 = vmatpush2.msra.mxu0 0.0
          %4358 = vmatprep.subr.mxu0 0.0
          %4359 = vmatpush2.msra.mxu0 0.0
          %4360 = vmatprep.mubr.f32.mxu0 0.0
          %4361 = vmatmul.mubr.f32.gmra.mxu0 %v4291
          %v4362 = vpop.f32.mrf.mxu0
          %v4363 = vadd.f32 0.0, %v4362
          %v4364 = vpop.f32.mrf.mxu0
          %4365 = vdwg.mxu0
          %v4366 = vadd.f32 %v4239, %v4363
          %v4367 = vld [vmem:[%s2262] sm:$0x3]
          %v4368 = vld [vmem:[%s2262 + $0x2] sm:$0x3]
          %v4369 = vld [vmem:[%s2262 + $0x4] sm:$0x3]
          %v4370 = vld [vmem:[%s2262 + $0x6] sm:$0x3]
          %v4371 = vld [vmem:[%s2262 + $0x8] sm:$0x3]
          %v4372 = vld [vmem:[%s2262 + $0xa] sm:$0x3]
          %v4373 = vld [vmem:[%s2262 + $0xc] sm:$0x3]
          %v4374 = vld [vmem:[%s2262 + $0xe] sm:$0x3]
          %v4375 = vld [vmem:[%s2262 + $0x10] sm:$0x3]
          %v4376 = vld [vmem:[%s2262 + $0x12] sm:$0x3]
          %v4377 = vld [vmem:[%s2262 + $0x14] sm:$0x3]
          %v4378 = vld [vmem:[%s2262 + $0x16] sm:$0x3]
          %v4379 = vld [vmem:[%s2262 + $0x18] sm:$0x3]
          %v4380 = vld [vmem:[%s2262 + $0x1a] sm:$0x3]
          %v4381 = vld [vmem:[%s2262 + $0x1c] sm:$0x3]
          %v4382 = vld [vmem:[%s2262 + $0x1e] sm:$0x3]
          %v4383 = vsel %vm1008, %v4367, -inf
          %v4384 = vsel %vm1008, %v4368, -inf
          %v4385 = vsel %vm1008, %v4369, -inf
          %v4386 = vsel %vm1008, %v4370, -inf
          %v4387 = vsel %vm1008, %v4371, -inf
          %v4388 = vmax.f32 %v4383, %v4387
          %v4389 = vsel %vm1008, %v4372, -inf
          %v4390 = vmax.f32 %v4384, %v4389
          %v4391 = vsel %vm1008, %v4373, -inf
          %v4392 = vmax.f32 %v4385, %v4391
          %v4393 = vsel %vm1008, %v4374, -inf
          %v4394 = vmax.f32 %v4386, %v4393
          %v4395 = vsel %vm1008, %v4375, -inf
          %v4396 = vmax.f32 %v4388, %v4395
          %v4397 = vsel %vm1008, %v4376, -inf
          %v4398 = vmax.f32 %v4390, %v4397
          %v4399 = vsel %vm1008, %v4377, -inf
          %v4400 = vmax.f32 %v4392, %v4399
          %v4401 = vsel %vm1008, %v4378, -inf
          %v4402 = vmax.f32 %v4394, %v4401
          %v4403 = vsel %vm1008, %v4379, -inf
          %v4404 = vmax.f32 %v4396, %v4403
          %v4405 = vsel %vm1008, %v4380, -inf
          %v4406 = vmax.f32 %v4398, %v4405
          %v4407 = vsel %vm1008, %v4381, -inf
          %v4408 = vmax.f32 %v4400, %v4407
          %v4409 = vsel %vm1008, %v4382, -inf
          %v4410 = vmax.f32 %v4402, %v4409
          %v4411 = vmax.f32 %v4404, %v4406
          %v4412 = vmax.f32 %v4408, %v4410
          %v4413 = vmax.f32 %v4411, %v4412
          %s4414 = scalar_lea.vmem %s3, 48
          %v4415 = vld [vmem:[%s4414] sm:$0xff]
          %v4416 = vld [vmem:[%s4414 + $0x8] sm:$0x1]
          %v4418 = vsel %vm4028, %v4413, 0
          %v4421 = vsel %vm4032, %v4416, 0
          %4423 = vmatprep.subr.mxu0 0.0
          %4424 = vmatpush1.msra.mxu0 0.0
          %4425 = vmatprep.subr.mxu0 0.0
          %4426 = vmatpush1.msra.mxu0 0.0
          %4427 = vmatprep.subr.mxu0 0.0
          %4428 = vmatpush1.msra.mxu0 0.0
          %4429 = vmatprep.subr.mxu0 0.0
          %4430 = vmatpush1.msra.mxu0 0.0
          %4431 = vmatprep.subr.mxu0 0.0
          %4432 = vmatpush1.msra.mxu0 0.0
          %4433 = vmatprep.subr.mxu0 0.0
          %4434 = vmatpush1.msra.mxu0 0.0
          %4435 = vmatprep.subr.mxu0 0.0
          %4436 = vmatpush1.msra.mxu0 0.0
          %4437 = vmatprep.subr.mxu0 0.0
          %4438 = vmatpush1.msra.mxu0 0.0
          %4439 = vmatprep.subr.mxu0 0.0
          %4440 = vmatpush1.msra.mxu0 0.0
          %4441 = vmatprep.subr.mxu0 0.0
          %4442 = vmatpush1.msra.mxu0 0.0
          %4443 = vmatprep.subr.mxu0 0.0
          %4444 = vmatpush1.msra.mxu0 0.0
          %4445 = vmatprep.subr.mxu0 0.0
          %4446 = vmatpush1.msra.mxu0 0.0
          %4447 = vmatprep.subr.mxu0 0.0
          %4448 = vmatpush1.msra.mxu0 0.0
          %4449 = vmatprep.subr.mxu0 0.0
          %4450 = vmatpush1.msra.mxu0 0.0
          %4451 = vmatprep.subr.mxu0 0.0
          %4452 = vmatpush1.msra.mxu0 %v4421
          %4453 = vmatprep.subr.mxu0 0.0
          %4454 = vmatpush1.msra.mxu0 %v4415
          %4455 = vmatprep.subr.mxu0 0.0
          %4456 = vmatpush2.msra.mxu0 0.0
          %4457 = vmatprep.subr.mxu0 0.0
          %4458 = vmatpush2.msra.mxu0 0.0
          %4459 = vmatprep.subr.mxu0 0.0
          %4460 = vmatpush2.msra.mxu0 0.0
          %4461 = vmatprep.subr.mxu0 0.0
          %4462 = vmatpush2.msra.mxu0 0.0
          %4463 = vmatprep.subr.mxu0 0.0
          %4464 = vmatpush2.msra.mxu0 0.0
          %4465 = vmatprep.subr.mxu0 0.0
          %4466 = vmatpush2.msra.mxu0 0.0
          %4467 = vmatprep.subr.mxu0 0.0
          %4468 = vmatpush2.msra.mxu0 0.0
          %4469 = vmatprep.subr.mxu0 0.0
          %4470 = vmatpush2.msra.mxu0 0.0
          %4471 = vmatprep.subr.mxu0 0.0
          %4472 = vmatpush2.msra.mxu0 0.0
          %4473 = vmatprep.subr.mxu0 0.0
          %4474 = vmatpush2.msra.mxu0 0.0
          %4475 = vmatprep.subr.mxu0 0.0
          %4476 = vmatpush2.msra.mxu0 0.0
          %4477 = vmatprep.subr.mxu0 0.0
          %4478 = vmatpush2.msra.mxu0 0.0
          %4479 = vmatprep.subr.mxu0 0.0
          %4480 = vmatpush2.msra.mxu0 0.0
          %4481 = vmatprep.subr.mxu0 0.0
          %4482 = vmatpush2.msra.mxu0 0.0
          %4483 = vmatprep.subr.mxu0 0.0
          %4484 = vmatpush2.msra.mxu0 0.0
          %4485 = vmatprep.subr.mxu0 0.0
          %4486 = vmatpush2.msra.mxu0 0.0
          %4487 = vmatprep.mubr.f32.mxu0 0.0
          %4488 = vmatmul.mubr.f32.gmra.mxu0 %v4418
          %v4489 = vpop.f32.mrf.mxu0
          %v4490 = vadd.f32 0.0, %v4489
          %v4491 = vpop.f32.mrf.mxu0
          %4492 = vdwg.mxu0
          %v4493 = vadd.f32 %v4366, %v4490
          %v4494 = vld [vmem:[%s2862] sm:$0x3]
          %v4495 = vld [vmem:[%s2862 + $0x2] sm:$0x3]
          %v4496 = vld [vmem:[%s2862 + $0x4] sm:$0x3]
          %v4497 = vld [vmem:[%s2862 + $0x6] sm:$0x3]
          %v4498 = vld [vmem:[%s2862 + $0x8] sm:$0x3]
          %v4499 = vld [vmem:[%s2862 + $0xa] sm:$0x3]
          %v4500 = vld [vmem:[%s2862 + $0xc] sm:$0x3]
          %v4501 = vld [vmem:[%s2862 + $0xe] sm:$0x3]
          %v4502 = vld [vmem:[%s2862 + $0x10] sm:$0x3]
          %v4503 = vld [vmem:[%s2862 + $0x12] sm:$0x3]
          %v4504 = vld [vmem:[%s2862 + $0x14] sm:$0x3]
          %v4505 = vld [vmem:[%s2862 + $0x16] sm:$0x3]
          %v4506 = vld [vmem:[%s2862 + $0x18] sm:$0x3]
          %v4507 = vld [vmem:[%s2862 + $0x1a] sm:$0x3]
          %v4508 = vld [vmem:[%s2862 + $0x1c] sm:$0x3]
          %v4509 = vld [vmem:[%s2862 + $0x1e] sm:$0x3]
          %v4510 = vsel %vm1008, %v4494, -inf
          %v4511 = vsel %vm1008, %v4495, -inf
          %v4512 = vsel %vm1008, %v4496, -inf
          %v4513 = vsel %vm1008, %v4497, -inf
          %v4514 = vsel %vm1008, %v4498, -inf
          %v4515 = vmax.f32 %v4510, %v4514
          %v4516 = vsel %vm1008, %v4499, -inf
          %v4517 = vmax.f32 %v4511, %v4516
          %v4518 = vsel %vm1008, %v4500, -inf
          %v4519 = vmax.f32 %v4512, %v4518
          %v4520 = vsel %vm1008, %v4501, -inf
          %v4521 = vmax.f32 %v4513, %v4520
          %v4522 = vsel %vm1008, %v4502, -inf
          %v4523 = vmax.f32 %v4515, %v4522
          %v4524 = vsel %vm1008, %v4503, -inf
          %v4525 = vmax.f32 %v4517, %v4524
          %v4526 = vsel %vm1008, %v4504, -inf
          %v4527 = vmax.f32 %v4519, %v4526
          %v4528 = vsel %vm1008, %v4505, -inf
          %v4529 = vmax.f32 %v4521, %v4528
          %v4530 = vsel %vm1008, %v4506, -inf
          %v4531 = vmax.f32 %v4523, %v4530
          %v4532 = vsel %vm1008, %v4507, -inf
          %v4533 = vmax.f32 %v4525, %v4532
          %v4534 = vsel %vm1008, %v4508, -inf
          %v4535 = vmax.f32 %v4527, %v4534
          %v4536 = vsel %vm1008, %v4509, -inf
          %v4537 = vmax.f32 %v4529, %v4536
          %v4538 = vmax.f32 %v4531, %v4533
          %v4539 = vmax.f32 %v4535, %v4537
          %v4540 = vmax.f32 %v4538, %v4539
          %s4541 = scalar_lea.vmem %s3, 64
          %v4542 = vld [vmem:[%s4541] sm:$0xff]
          %v4543 = vld [vmem:[%s4541 + $0x8] sm:$0x1]
          %v4545 = vsel %vm4028, %v4540, 0
          %v4548 = vsel %vm4032, %v4543, 0
          %4550 = vmatprep.subr.mxu0 0.0
          %4551 = vmatpush1.msra.mxu0 0.0
          %4552 = vmatprep.subr.mxu0 0.0
          %4553 = vmatpush1.msra.mxu0 0.0
          %4554 = vmatprep.subr.mxu0 0.0
          %4555 = vmatpush1.msra.mxu0 0.0
          %4556 = vmatprep.subr.mxu0 0.0
          %4557 = vmatpush1.msra.mxu0 0.0
          %4558 = vmatprep.subr.mxu0 0.0
          %4559 = vmatpush1.msra.mxu0 0.0
          %4560 = vmatprep.subr.mxu0 0.0
          %4561 = vmatpush1.msra.mxu0 0.0
          %4562 = vmatprep.subr.mxu0 0.0
          %4563 = vmatpush1.msra.mxu0 0.0
          %4564 = vmatprep.subr.mxu0 0.0
          %4565 = vmatpush1.msra.mxu0 0.0
          %4566 = vmatprep.subr.mxu0 0.0
          %4567 = vmatpush1.msra.mxu0 0.0
          %4568 = vmatprep.subr.mxu0 0.0
          %4569 = vmatpush1.msra.mxu0 0.0
          %4570 = vmatprep.subr.mxu0 0.0
          %4571 = vmatpush1.msra.mxu0 0.0
          %4572 = vmatprep.subr.mxu0 0.0
          %4573 = vmatpush1.msra.mxu0 0.0
          %4574 = vmatprep.subr.mxu0 0.0
          %4575 = vmatpush1.msra.mxu0 0.0
          %4576 = vmatprep.subr.mxu0 0.0
          %4577 = vmatpush1.msra.mxu0 0.0
          %4578 = vmatprep.subr.mxu0 0.0
          %4579 = vmatpush1.msra.mxu0 %v4548
          %4580 = vmatprep.subr.mxu0 0.0
          %4581 = vmatpush1.msra.mxu0 %v4542
          %4582 = vmatprep.subr.mxu0 0.0
          %4583 = vmatpush2.msra.mxu0 0.0
          %4584 = vmatprep.subr.mxu0 0.0
          %4585 = vmatpush2.msra.mxu0 0.0
          %4586 = vmatprep.subr.mxu0 0.0
          %4587 = vmatpush2.msra.mxu0 0.0
          %4588 = vmatprep.subr.mxu0 0.0
          %4589 = vmatpush2.msra.mxu0 0.0
          %4590 = vmatprep.subr.mxu0 0.0
          %4591 = vmatpush2.msra.mxu0 0.0
          %4592 = vmatprep.subr.mxu0 0.0
          %4593 = vmatpush2.msra.mxu0 0.0
          %4594 = vmatprep.subr.mxu0 0.0
          %4595 = vmatpush2.msra.mxu0 0.0
          %4596 = vmatprep.subr.mxu0 0.0
          %4597 = vmatpush2.msra.mxu0 0.0
          %4598 = vmatprep.subr.mxu0 0.0
          %4599 = vmatpush2.msra.mxu0 0.0
          %4600 = vmatprep.subr.mxu0 0.0
          %4601 = vmatpush2.msra.mxu0 0.0
          %4602 = vmatprep.subr.mxu0 0.0
          %4603 = vmatpush2.msra.mxu0 0.0
          %4604 = vmatprep.subr.mxu0 0.0
          %4605 = vmatpush2.msra.mxu0 0.0
          %4606 = vmatprep.subr.mxu0 0.0
          %4607 = vmatpush2.msra.mxu0 0.0
          %4608 = vmatprep.subr.mxu0 0.0
          %4609 = vmatpush2.msra.mxu0 0.0
          %4610 = vmatprep.subr.mxu0 0.0
          %4611 = vmatpush2.msra.mxu0 0.0
          %4612 = vmatprep.subr.mxu0 0.0
          %4613 = vmatpush2.msra.mxu0 0.0
          %4614 = vmatprep.mubr.f32.mxu0 0.0
          %4615 = vmatmul.mubr.f32.gmra.mxu0 %v4545
          %v4616 = vpop.f32.mrf.mxu0
          %v4617 = vadd.f32 0.0, %v4616
          %v4618 = vpop.f32.mrf.mxu0
          %4619 = vdwg.mxu0
          %v4620 = vadd.f32 %v4493, %v4617
          %v4621 = vld [vmem:[%s3445] sm:$0x3]
          %v4622 = vld [vmem:[%s3445 + $0x2] sm:$0x3]
          %v4623 = vld [vmem:[%s3445 + $0x4] sm:$0x3]
          %v4624 = vld [vmem:[%s3445 + $0x6] sm:$0x3]
          %v4625 = vld [vmem:[%s3445 + $0x8] sm:$0x3]
          %v4626 = vld [vmem:[%s3445 + $0xa] sm:$0x3]
          %v4627 = vld [vmem:[%s3445 + $0xc] sm:$0x3]
          %v4628 = vld [vmem:[%s3445 + $0xe] sm:$0x3]
          %v4629 = vld [vmem:[%s3445 + $0x10] sm:$0x3]
          %v4630 = vld [vmem:[%s3445 + $0x12] sm:$0x3]
          %v4631 = vld [vmem:[%s3445 + $0x14] sm:$0x3]
          %v4632 = vld [vmem:[%s3445 + $0x16] sm:$0x3]
          %v4633 = vld [vmem:[%s3445 + $0x18] sm:$0x3]
          %v4634 = vld [vmem:[%s3445 + $0x1a] sm:$0x3]
          %v4635 = vld [vmem:[%s3445 + $0x1c] sm:$0x3]
          %v4636 = vld [vmem:[%s3445 + $0x1e] sm:$0x3]
          %v4637 = vsel %vm1008, %v4621, -inf
          %v4638 = vsel %vm1008, %v4622, -inf
          %v4639 = vsel %vm1008, %v4623, -inf
          %v4640 = vsel %vm1008, %v4624, -inf
          %v4641 = vsel %vm1008, %v4625, -inf
          %v4642 = vmax.f32 %v4637, %v4641
          %v4643 = vsel %vm1008, %v4626, -inf
          %v4644 = vmax.f32 %v4638, %v4643
          %v4645 = vsel %vm1008, %v4627, -inf
          %v4646 = vmax.f32 %v4639, %v4645
          %v4647 = vsel %vm1008, %v4628, -inf
          %v4648 = vmax.f32 %v4640, %v4647
          %v4649 = vsel %vm1008, %v4629, -inf
          %v4650 = vmax.f32 %v4642, %v4649
          %v4651 = vsel %vm1008, %v4630, -inf
          %v4652 = vmax.f32 %v4644, %v4651
          %v4653 = vsel %vm1008, %v4631, -inf
          %v4654 = vmax.f32 %v4646, %v4653
          %v4655 = vsel %vm1008, %v4632, -inf
          %v4656 = vmax.f32 %v4648, %v4655
          %v4657 = vsel %vm1008, %v4633, -inf
          %v4658 = vmax.f32 %v4650, %v4657
          %v4659 = vsel %vm1008, %v4634, -inf
          %v4660 = vmax.f32 %v4652, %v4659
          %v4661 = vsel %vm1008, %v4635, -inf
          %v4662 = vmax.f32 %v4654, %v4661
          %v4663 = vsel %vm1008, %v4636, -inf
          %v4664 = vmax.f32 %v4656, %v4663
          %v4665 = vmax.f32 %v4658, %v4660
          %v4666 = vmax.f32 %v4662, %v4664
          %v4667 = vmax.f32 %v4665, %v4666
          %s4668 = scalar_lea.vmem %s3, 80
          %v4669 = vld [vmem:[%s4668] sm:$0xff]
          %v4670 = vld [vmem:[%s4668 + $0x8] sm:$0x1]
          %v4672 = vsel %vm4028, %v4667, 0
          %v4675 = vsel %vm4032, %v4670, 0
          %4677 = vmatprep.subr.mxu0 0.0
          %4678 = vmatpush1.msra.mxu0 0.0
          %4679 = vmatprep.subr.mxu0 0.0
          %4680 = vmatpush1.msra.mxu0 0.0
          %4681 = vmatprep.subr.mxu0 0.0
          %4682 = vmatpush1.msra.mxu0 0.0
          %4683 = vmatprep.subr.mxu0 0.0
          %4684 = vmatpush1.msra.mxu0 0.0
          %4685 = vmatprep.subr.mxu0 0.0
          %4686 = vmatpush1.msra.mxu0 0.0
          %4687 = vmatprep.subr.mxu0 0.0
          %4688 = vmatpush1.msra.mxu0 0.0
          %4689 = vmatprep.subr.mxu0 0.0
          %4690 = vmatpush1.msra.mxu0 0.0
          %4691 = vmatprep.subr.mxu0 0.0
          %4692 = vmatpush1.msra.mxu0 0.0
          %4693 = vmatprep.subr.mxu0 0.0
          %4694 = vmatpush1.msra.mxu0 0.0
          %4695 = vmatprep.subr.mxu0 0.0
          %4696 = vmatpush1.msra.mxu0 0.0
          %4697 = vmatprep.subr.mxu0 0.0
          %4698 = vmatpush1.msra.mxu0 0.0
          %4699 = vmatprep.subr.mxu0 0.0
          %4700 = vmatpush1.msra.mxu0 0.0
          %4701 = vmatprep.subr.mxu0 0.0
          %4702 = vmatpush1.msra.mxu0 0.0
          %4703 = vmatprep.subr.mxu0 0.0
          %4704 = vmatpush1.msra.mxu0 0.0
          %4705 = vmatprep.subr.mxu0 0.0
          %4706 = vmatpush1.msra.mxu0 %v4675
          %4707 = vmatprep.subr.mxu0 0.0
          %4708 = vmatpush1.msra.mxu0 %v4669
          %4709 = vmatprep.subr.mxu0 0.0
          %4710 = vmatpush2.msra.mxu0 0.0
          %4711 = vmatprep.subr.mxu0 0.0
          %4712 = vmatpush2.msra.mxu0 0.0
          %4713 = vmatprep.subr.mxu0 0.0
          %4714 = vmatpush2.msra.mxu0 0.0
          %4715 = vmatprep.subr.mxu0 0.0
          %4716 = vmatpush2.msra.mxu0 0.0
          %4717 = vmatprep.subr.mxu0 0.0
          %4718 = vmatpush2.msra.mxu0 0.0
          %4719 = vmatprep.subr.mxu0 0.0
          %4720 = vmatpush2.msra.mxu0 0.0
          %4721 = vmatprep.subr.mxu0 0.0
          %4722 = vmatpush2.msra.mxu0 0.0
          %4723 = vmatprep.subr.mxu0 0.0
          %4724 = vmatpush2.msra.mxu0 0.0
          %4725 = vmatprep.subr.mxu0 0.0
          %4726 = vmatpush2.msra.mxu0 0.0
          %4727 = vmatprep.subr.mxu0 0.0
          %4728 = vmatpush2.msra.mxu0 0.0
          %4729 = vmatprep.subr.mxu0 0.0
          %4730 = vmatpush2.msra.mxu0 0.0
          %4731 = vmatprep.subr.mxu0 0.0
          %4732 = vmatpush2.msra.mxu0 0.0
          %4733 = vmatprep.subr.mxu0 0.0
          %4734 = vmatpush2.msra.mxu0 0.0
          %4735 = vmatprep.subr.mxu0 0.0
          %4736 = vmatpush2.msra.mxu0 0.0
          %4737 = vmatprep.subr.mxu0 0.0
          %4738 = vmatpush2.msra.mxu0 0.0
          %4739 = vmatprep.subr.mxu0 0.0
          %4740 = vmatpush2.msra.mxu0 0.0
          %4741 = vmatprep.mubr.f32.mxu0 0.0
          %4742 = vmatmul.mubr.f32.gmra.mxu0 %v4672
          %v4743 = vpop.f32.mrf.mxu0
          %v4744 = vadd.f32 0.0, %v4743
          %v4745 = vpop.f32.mrf.mxu0
          %4746 = vdwg.mxu0
          %v4747 = vadd.f32 %v4620, %v4744
          %v4748 = vmax.f32 %v4747, 0.0
          %v4749 = vld [vmem:[%s5] sm:$0xff]
          %v4750 = vld [vmem:[%s5 + $0x8] sm:$0xff]
          %v4751 = vld [vmem:[%s5 + $0x10] sm:$0xff]
          %v4752 = vld [vmem:[%s5 + $0x18] sm:$0xff]
          %v4753 = vld [vmem:[%s5 + $0x20] sm:$0xff]
          %v4754 = vld [vmem:[%s5 + $0x28] sm:$0xff]
          %v4755 = vld [vmem:[%s5 + $0x30] sm:$0xff]
          %v4756 = vld [vmem:[%s5 + $0x38] sm:$0xff]
          %v4757 = vld [vmem:[%s5 + $0x40] sm:$0xff]
          %v4758 = vld [vmem:[%s5 + $0x48] sm:$0xff]
          %v4759 = vld [vmem:[%s5 + $0x50] sm:$0xff]
          %v4760 = vld [vmem:[%s5 + $0x58] sm:$0xff]
          %v4761 = vld [vmem:[%s5 + $0x60] sm:$0xff]
          %v4762 = vld [vmem:[%s5 + $0x68] sm:$0xff]
          %v4763 = vld [vmem:[%s5 + $0x70] sm:$0xff]
          %v4764 = vld [vmem:[%s5 + $0x78] sm:$0xff]
          %v4765 = vld [vmem:[%s6] sm:$0x1]
          %v4767 = vlaneseq
          %v4768 = vshrl.u32 %v4767, 7
          %v4769 = vsub.s32 0, %v4768
          %v4770 = vrot.slane %v4765, %v4769
          %4772 = vmatprep.subr.mxu0 0.0
          %4773 = vmatpush1.msra.mxu0 %v4764
          %4774 = vmatprep.subr.mxu0 0.0
          %4775 = vmatpush1.msra.mxu0 %v4763
          %4776 = vmatprep.subr.mxu0 0.0
          %4777 = vmatpush1.msra.mxu0 %v4762
          %4778 = vmatprep.subr.mxu0 0.0
          %4779 = vmatpush1.msra.mxu0 %v4761
          %4780 = vmatprep.subr.mxu0 0.0
          %4781 = vmatpush1.msra.mxu0 %v4760
          %4782 = vmatprep.subr.mxu0 0.0
          %4783 = vmatpush1.msra.mxu0 %v4759
          %4784 = vmatprep.subr.mxu0 0.0
          %4785 = vmatpush1.msra.mxu0 %v4758
          %4786 = vmatprep.subr.mxu0 0.0
          %4787 = vmatpush1.msra.mxu0 %v4757
          %4788 = vmatprep.subr.mxu0 0.0
          %4789 = vmatpush1.msra.mxu0 %v4756
          %4790 = vmatprep.subr.mxu0 0.0
          %4791 = vmatpush1.msra.mxu0 %v4755
          %4792 = vmatprep.subr.mxu0 0.0
          %4793 = vmatpush1.msra.mxu0 %v4754
          %4794 = vmatprep.subr.mxu0 0.0
          %4795 = vmatpush1.msra.mxu0 %v4753
          %4796 = vmatprep.subr.mxu0 0.0
          %4797 = vmatpush1.msra.mxu0 %v4752
          %4798 = vmatprep.subr.mxu0 0.0
          %4799 = vmatpush1.msra.mxu0 %v4751
          %4800 = vmatprep.subr.mxu0 0.0
          %4801 = vmatpush1.msra.mxu0 %v4750
          %4802 = vmatprep.subr.mxu0 0.0
          %4803 = vmatpush1.msra.mxu0 %v4749
          %4804 = vmatprep.subr.mxu0 0.0
          %4805 = vmatpush2.msra.mxu0 0.0
          %4806 = vmatprep.subr.mxu0 0.0
          %4807 = vmatpush2.msra.mxu0 0.0
          %4808 = vmatprep.subr.mxu0 0.0
          %4809 = vmatpush2.msra.mxu0 0.0
          %4810 = vmatprep.subr.mxu0 0.0
          %4811 = vmatpush2.msra.mxu0 0.0
          %4812 = vmatprep.subr.mxu0 0.0
          %4813 = vmatpush2.msra.mxu0 0.0
          %4814 = vmatprep.subr.mxu0 0.0
          %4815 = vmatpush2.msra.mxu0 0.0
          %4816 = vmatprep.subr.mxu0 0.0
          %4817 = vmatpush2.msra.mxu0 0.0
          %4818 = vmatprep.subr.mxu0 0.0
          %4819 = vmatpush2.msra.mxu0 0.0
          %4820 = vmatprep.subr.mxu0 0.0
          %4821 = vmatpush2.msra.mxu0 0.0
          %4822 = vmatprep.subr.mxu0 0.0
          %4823 = vmatpush2.msra.mxu0 0.0
          %4824 = vmatprep.subr.mxu0 0.0
          %4825 = vmatpush2.msra.mxu0 0.0
          %4826 = vmatprep.subr.mxu0 0.0
          %4827 = vmatpush2.msra.mxu0 0.0
          %4828 = vmatprep.subr.mxu0 0.0
          %4829 = vmatpush2.msra.mxu0 0.0
          %4830 = vmatprep.subr.mxu0 0.0
          %4831 = vmatpush2.msra.mxu0 0.0
          %4832 = vmatprep.subr.mxu0 0.0
          %4833 = vmatpush2.msra.mxu0 0.0
          %4834 = vmatprep.subr.mxu0 0.0
          %4835 = vmatpush2.msra.mxu0 0.0
          %4836 = vmatprep.mubr.f32.mxu0 0.0
          %4837 = vmatmul.mubr.f32.gmra.mxu0 %v4748
          %v4838 = vpop.f32.mrf.mxu0
          %v4839 = vadd.f32 %v4770, %v4838
          %v4840 = vpop.f32.mrf.mxu0
          %4841 = vdwg.mxu0
          %vm4842 = vcmask 58368
          %4843 = vst.msk [vmem:[#allocation3] sm:$0x3] %vm4842, %v4839
        $region56: #{mdpn3_forward.1} parent=47 // pred_fallthru
          _
        // Predicated region
        $region57: #{mdpn3_forward.1} parent=47 // pred_check
          %p4844 = pneg %p213
        $region58: #{mdpn3_forward.1} parent=47 // pred_check_branch
          %4846 = sbr.rel (%p4844) target = $region60
        $region59: #{mdpn3_forward.1} parent=47 // pred_region
          %s4848 = ssub.s32 32, 32
          %4849 = vsyncadd [#allocation4], %s4848
          %s4850 = smul.addr %s23, 32
          %s4851 = scalar_lea.hbm %s7, %s4850
          %s4853 = sshll.u32 [#allocation3], 4
          %s4854 = int_to_ptr.vmem [resolvable:$true] %s4853
          %4856 = dma.vmem_to_hbm [thread:$0]  %s4854, 32, %s4851, [#allocation4]
        $region60: #{mdpn3_forward.1} parent=47 // pred_fallthru
          _
        // Predicated region
        $region61: #{mdpn3_forward.1} parent=47 // pred_check
          %p4857 = pneg %p213
        $region62: #{mdpn3_forward.1} parent=47 // pred_check_branch
          %4859 = sbr.rel (%p4857) target = $region64
        $region63: #{mdpn3_forward.1} parent=47 // pred_region
          %4860 = dma.done [#allocation4], 32
        $region64: #{mdpn3_forward.1} parent=47 // pred_fallthru
          _
      $region48: #{mdpn3_forward.1} parent=5 // pred_fallthru
        _
      %p4861 = scmp.le.s32.totalorder 2, %s14
      // Predicated region
      $region65: #{mdpn3_forward.1} parent=5 // pred_check
        %p4862 = pneg %p4861
      $region66: #{mdpn3_forward.1} parent=5 // pred_check_branch
        %4864 = sbr.rel (%p4862) target = $region68
      $region67: #{mdpn3_forward.1} parent=5 // pred_region
        %s4865 = ssub.s32 %s14, 2
      $region68: #{mdpn3_forward.1} parent=5 // pred_fallthru
        _
    $region6: #{mdpn3_forward.1} parent=1 // loop_footer
      %s18 = sadd.s32 1, %s14
    $region7: #{mdpn3_forward.1} parent=1 // loop_footer_branch
      %13 = sbr.rel target = $region3
    $region8: #{mdpn3_forward.1} parent=1 // loop_exit
      _
    %4866 = vsyncpa [#allocation4], 1
    %s4867 = scalar_lea.sflag [#allocation4], 1
    %4868 = vsyncpa %s4867, 1

</llo_original>
